<compile_context>
chip_gen: v5e
topology: v5e:2x2
jax: 0.10.0
libtpu: 0.0.40
codegen_flags: <defaults>
</compile_context>

<pallas_src>
import jax
import jax.numpy as jnp
from jax.experimental import pallas as pl
from jax.experimental.pallas import tpu as pltpu

# ----------------------------- model hyper-params (small) -----------------------------
L = 64          # sequence length
CIN = 4         # one-hot DNA channels
K = 8           # conv kernel width
CK = CIN * K
COUT = 32       # conv filters
POOL = 4        # MaxPool1d(4)
LP = (L - K + 1) // POOL    # 14 pooled time steps (conv position 56 dropped, floor pooling)
H = 16          # LSTM hidden (per direction)
D1 = 64         # DanQ dense width
NNODE = 8       # GCN nodes
FNODE = 16      # node feature dim
G1, G2 = 32, 32
EMB = 32        # epigenetic embedding dim
DTYPE = jnp.float32

NUM_VARIANTS = 8    # total (wt, mt) pairs scored per call
BV = 4              # variant pairs per grid step
BT = 2 * BV         # wt + mt stacked along batch within a grid step
ROWS = POOL * LP * BT   # im2col rows per grid step


# ------------------------------- fused per-group kernel ---------------------------------
def fused_forward_kernel(
    index_ref,                                    # SMEM [NV] int32 (scalar prefetch)
    patches_ref,                                  # [ROWS, CK] im2col patches for this group
    conv_w_ref, conv_b_ref,                       # [CK, COUT], [1, COUT]
    w_ih_ref, b_lstm_ref, w_hh_ref,               # [COUT, 16H], [1, 8H], [2H, 8H]
    fc1_w_ref, fc1_b_ref,                         # [LP*2H, D1] (row-permuted), [1, D1]
    node_ref, adj_ref,                            # [N, F], [N, N]
    gcn_w1_ref, gcn_b1_ref, gcn_w2_ref, gcn_b2_ref,
    emb_wd_ref, emb_wg_ref, emb_b_ref,            # [D1, EMB], [G2, EMB], [1, EMB]
    head_w1_ref, head_b1_ref, head_w2_ref, head_b2_ref,
    out_ref,                                      # [1, BV, 1]
):
    f32 = jnp.float32
    grp = pl.program_id(0)

    # ---- Conv1d (im2col matmul) + ReLU + MaxPool1d(POOL) --------------------------------
    y = jnp.dot(patches_ref[...], conv_w_ref[...], preferred_element_type=f32) + conv_b_ref[...]
    y = jnp.maximum(y, 0.0)                                       # [ROWS, COUT]
    nrow = LP * BT
    pooled = y[0:nrow, :]
    for p in range(1, POOL):                                      # contiguous-slab max -> VPU only
        pooled = jnp.maximum(pooled, y[p * nrow:(p + 1) * nrow, :])
    # pooled: [LP*BT, COUT], row = t*BT + b (time-major)

    # ---- BiLSTM: hoisted input projection, joint state, reordered gates -----------------
    # Gate column layout (8H wide): [i_f|i_b|f_f|f_b|o_f|o_b|g_f|g_b].
    gproj = jnp.dot(pooled, w_ih_ref[...], preferred_element_type=f32)    # [LP*BT, 16H]
    gfwd = gproj[:, 0:8 * H] + b_lstm_ref[...]    # fwd input weights + full bias (once)
    gbwd = gproj[:, 8 * H:16 * H]                 # bwd input weights (disjoint gate columns)

    w_hh = w_hh_ref[...]                          # [2H, 8H] block structure by direction
    h = jnp.zeros((BT, 2 * H), f32)               # cols 0:H fwd, H:2H bwd
    c = jnp.zeros((BT, 2 * H), f32)
    danq_acc = jnp.zeros((BT, D1), f32)

    for s in range(LP):                           # static unroll (LP = 14)
        r = LP - 1 - s
        gx = gfwd[s * BT:(s + 1) * BT, :] + gbwd[r * BT:(r + 1) * BT, :]   # [BT, 8H]
        gates = jnp.dot(h, w_hh, preferred_element_type=f32) + gx
        sg = jax.nn.sigmoid(gates[:, 0:6 * H])    # one EUP push: i_f|i_b|f_f|f_b|o_f|o_b
        gg = jnp.tanh(gates[:, 6 * H:8 * H])      # one EUP push: g_f|g_b
        c = sg[:, 2 * H:4 * H] * c + sg[:, 0:2 * H] * gg
        h = sg[:, 4 * H:6 * H] * jnp.tanh(c)
        # fc1 accumulated per step (fc1_w pre-permuted: slab s = rows for fwd(s) + bwd(LP-1-s));
        # rides the otherwise-idle MXU slot, off the recurrence critical path.
        danq_acc = danq_acc + jnp.dot(h, fc1_w_ref[s * 2 * H:(s + 1) * 2 * H, :],
                                      preferred_element_type=f32)

    danq = jnp.maximum(danq_acc + fc1_b_ref[...], 0.0)            # [BT, D1]

    # ---- GCN branch (shared by wt and mt; tiny, so per-group recompute is negligible) ----
    adjm = adj_ref[...]
    g1 = jnp.dot(node_ref[...], gcn_w1_ref[...], preferred_element_type=f32)
    g1 = jnp.maximum(jnp.dot(adjm, g1, preferred_element_type=f32) + gcn_b1_ref[...], 0.0)
    g2 = jnp.dot(g1, gcn_w2_ref[...], preferred_element_type=f32)
    g2 = jnp.maximum(jnp.dot(adjm, g2, preferred_element_type=f32) + gcn_b2_ref[...], 0.0)  # [N, G2]

    # node gather as one-hot @ g2 (per-variant index from SMEM scalar prefetch)
    node_iota = jax.lax.broadcasted_iota(jnp.int32, (1, NNODE), 1)
    onehot = jnp.concatenate(
        [(node_iota == index_ref[grp * BV + j]).astype(f32) for j in range(BV)], axis=0)   # [BV, N]
    sel = jnp.dot(onehot, g2, preferred_element_type=f32)                                   # [BV, G2]

    # ---- embedding layer with split weights (no concats), then "diff" pathogenic head ----
    sel_w = jnp.dot(sel, emb_wg_ref[...], preferred_element_type=f32)                       # [BV, EMB]
    d_w = jnp.dot(danq, emb_wd_ref[...], preferred_element_type=f32) + emb_b_ref[...]       # [BT, EMB]
    emb_wt = jnp.maximum(d_w[0:BV, :] + sel_w, 0.0)
    emb_mt = jnp.maximum(d_w[BV:2 * BV, :] + sel_w, 0.0)

    diff = emb_wt - emb_mt                                                                  # wt - mt
    h1 = jnp.maximum(
        jnp.dot(diff, head_w1_ref[...], preferred_element_type=f32) + head_b1_ref[...], 0.0)
    out = jnp.dot(h1, head_w2_ref[...], preferred_element_type=f32) + head_b2_ref[...]      # [BV, 1]
    out_ref[...] = jax.nn.sigmoid(out).reshape(1, BV, 1).astype(out_ref.dtype)


# --------------------------------------- glue -------------------------------------------
def im2col_groups(seq):
    """seq: [G, BT, CIN, L] -> patches [G*POOL*LP*BT, CIN*K].

    Row index within a group = (p*LP + t)*BT + b; feature order (cin, k) matches PyTorch
    Conv1d weight [COUT, CIN, K] flattened to CIN*K.  Pool windows are contiguous row slabs
    so pooling inside the kernel is a chunk-wise max.
    """
    idx = (jnp.arange(POOL)[:, None, None]
           + (jnp.arange(LP) * POOL)[None, :, None]
           + jnp.arange(K)[None, None, :])                     # [POOL, LP, K]
    p = seq[:, :, :, idx]                                       # [G, BT, CIN, POOL, LP, K]
    p = jnp.transpose(p, (0, 3, 4, 1, 2, 5))                    # [G, POOL, LP, BT, CIN, K]
    return p.reshape(seq.shape[0] * POOL * LP * seq.shape[1], CIN * K)


def _const2(i, idx_ref):           # constant index_map: weight block DMAed once, stays resident
    return (0, 0)


def pathogenic_prediction_model(seq_wt, seq_mt, node, adj, index, P):
    """seq_wt/seq_mt: [NV, CIN, L]; node [N,F]; adj [N,N]; index [NV] int32 -> [NV, 1]."""
    nv = seq_wt.shape[0]
    g = nv // BV
    wt = seq_wt.reshape(g, BV, CIN, L)
    mt = seq_mt.reshape(g, BV, CIN, L)
    seq_groups = jnp.concatenate([wt, mt], axis=1)              # [G, BT, CIN, L]  (wt first, then mt)
    patches = im2col_groups(seq_groups)                         # [G*ROWS, CK]

    weights = [P["conv_w"], P["conv_b"],
               P["w_ih_cat"], P["b_lstm_cat"], P["w_hh_cat"],
               P["fc1_w_perm"], P["fc1_b"],
               node, adj, P["gcn_w1"], P["gcn_b1"], P["gcn_w2"], P["gcn_b2"],
               P["emb_w_danq"], P["emb_w_gcn"], P["emb_b"],
               P["head_w1"], P["head_b1"], P["head_w2"], P["head_b2"]]

    grid_spec = pltpu.PrefetchScalarGridSpec(
        num_scalar_prefetch=1,                                   # `index` -> SMEM
        grid=(g,),
        in_specs=[pl.BlockSpec((ROWS, CK), lambda i, idx_ref: (i, 0))]
                 + [pl.BlockSpec(w.shape, _const2) for w in weights],
        out_specs=pl.BlockSpec((1, BV, 1), lambda i, idx_ref: (i, 0, 0)),
    )

    out = pl.pallas_call(
        fused_forward_kernel,
        out_shape=jax.ShapeDtypeStruct((g, BV, 1), DTYPE),
        grid_spec=grid_spec,
        compiler_params=pltpu.CompilerParams(
            dimension_semantics=("parallel",)),                  # shards variant groups across TCs (v7x)
    )(index, patches, *weights)
    return out.reshape(nv, 1)


# ------------------------------- deterministic params ------------------------------------
def init_params(key):
    ks = jax.random.split(key, 16)
    n = lambda k, s: (0.1 * jax.random.normal(k, s)).astype(DTYPE)

    # ---- Conv1d ----
    conv_w_pt = n(ks[0], (COUT, CIN, K))                         # PyTorch Conv1d weight layout
    conv_w = conv_w_pt.reshape(COUT, CIN * K).T                  # [CK, COUT]
    conv_b = n(ks[1], (1, COUT))

    # ---- BiLSTM weights in PyTorch per-direction column order [i|f|g|o] ----
    w_ih_f = n(ks[2], (COUT, 4 * H)); w_hh_f = n(ks[3], (H, 4 * H)); b_f = n(ks[4], (1, 4 * H))
    w_ih_b = n(ks[5], (COUT, 4 * H)); w_hh_b = n(ks[6], (H, 4 * H)); b_b = n(ks[7], (1, 4 * H))
    # TODO(synk): PyTorch nn.LSTM has b_ih + b_hh per direction; pre-sum them when loading a
    # real checkpoint (a single fused bias per direction is used here).

    def place_gates(w, direction):
        # Reorder PyTorch gate columns [i|f|g|o] into the fused kernel layout
        # [i_f|i_b|f_f|f_b|o_f|o_b|g_f|g_b] (sigmoid block first, tanh block last).
        i_, f_, g_, o_ = jnp.split(w, 4, axis=-1)
        z = jnp.zeros_like(i_)
        if direction == "fwd":
            blocks = [i_, z, f_, z, o_, z, g_, z]
        else:
            blocks = [z, i_, z, f_, z, o_, z, g_]
        return jnp.concatenate(blocks, axis=-1)

    w_ih_cat = jnp.concatenate(
        [place_gates(w_ih_f, "fwd"), place_gates(w_ih_b, "bwd")], axis=1)   # [COUT, 16H]
    w_hh_cat = jnp.concatenate(
        [place_gates(w_hh_f, "fwd"), place_gates(w_hh_b, "bwd")], axis=0)   # [2H, 8H]
    b_lstm_cat = place_gates(b_f, "fwd") + place_gates(b_b, "bwd")          # [1, 8H]

    # ---- DanQ fc1: row-permute so the kernel accumulates one [2H, D1] slab per LSTM step ----
    fc1_w_pt = n(ks[8], (LP * 2 * H, D1))     # row r = t*2H + dir*H + h (PyTorch flatten order)
    perm = []
    for s in range(LP):
        perm.extend(range(s * 2 * H, s * 2 * H + H))                        # fwd hidden at step s
        tb = LP - 1 - s
        perm.extend(range(tb * 2 * H + H, tb * 2 * H + 2 * H))              # bwd hidden emitted at step s
    fc1_w_perm = fc1_w_pt[jnp.array(perm, dtype=jnp.int32), :]
    fc1_b = n(ks[9], (1, D1))

    # ---- GCN ----
    gcn_w1 = n(ks[10], (FNODE, G1)); gcn_b1 = n(ks[11], (1, G1))
    gcn_w2 = n(ks[12], (G1, G2));    gcn_b2 = n(ks[13], (1, G2))

    # ---- embedding layer, split into DanQ / GCN column blocks (no in-kernel concat) ----
    emb_w = n(ks[14], (D1 + G2, EMB))
    emb_b = n(ks[15], (1, EMB))

    return {
        "conv_w": conv_w, "conv_b": conv_b,
        "w_ih_cat": w_ih_cat, "w_hh_cat": w_hh_cat, "b_lstm_cat": b_lstm_cat,
        "fc1_w_perm": fc1_w_perm, "fc1_b": fc1_b,
        "gcn_w1": gcn_w1, "gcn_b1": gcn_b1, "gcn_w2": gcn_w2, "gcn_b2": gcn_b2,
        "emb_w_danq": emb_w[:D1, :], "emb_w_gcn": emb_w[D1:, :], "emb_b": emb_b,
        # finetune_fc1: weight filled with 1.0, bias with 0.0 (as in the module __init__)
        "head_w1": jnp.ones((EMB, EMB), DTYPE),
        "head_b1": jnp.zeros((1, EMB), DTYPE),
        "head_w2": jnp.full((EMB, 1), 0.05, DTYPE),
        "head_b2": jnp.zeros((1, 1), DTYPE),
    }


# --------------------------------------- main --------------------------------------------
if __name__ == "__main__":
    root = jax.random.PRNGKey(0)
    k_par, k_seq, k_node, k_adj, k_idx = jax.random.split(root, 5)

    params = init_params(k_par)

    NV = NUM_VARIANTS
    # one-hot DNA sequences, NCL layout [NV, 4, L]
    bases = jax.random.randint(k_seq, (NV, L), 0, CIN)
    seq_wt = jnp.transpose(jax.nn.one_hot(bases, CIN, dtype=DTYPE), (0, 2, 1))
    # mutant: flip the centre base of every variant
    mut_bases = bases.at[:, L // 2].set((bases[:, L // 2] + 1) % CIN)
    seq_mt = jnp.transpose(jax.nn.one_hot(mut_bases, CIN, dtype=DTYPE), (0, 2, 1))

    # node features + normalized adjacency (with self loops)
    node_input = (0.1 * jax.random.normal(k_node, (NNODE, FNODE))).astype(DTYPE)
    a = (jax.random.uniform(k_adj, (NNODE, NNODE)) > 0.6).astype(DTYPE)
    a = jnp.maximum(a, a.T) + jnp.eye(NNODE, dtype=DTYPE)
    adj_input = a / jnp.sum(a, axis=1, keepdims=True)

    # variant node index per (wt, mt) pair
    index_input = jax.random.randint(k_idx, (NV,), 0, NNODE).astype(jnp.int32)

    fwd = jax.jit(pathogenic_prediction_model)
    out = fwd(seq_wt, seq_mt, node_input, adj_input, index_input, params)
    out = jax.block_until_ready(out)

    assert out.shape == (NV, 1) and out.dtype == DTYPE
    assert bool(jnp.all(jnp.isfinite(out)))
    print("KERNEL_OK")
</pallas_src>

<mosaic_0001>
module attributes {stable_mosaic.version = 11 : i64} {
  func.func @fused_forward_kernel(%arg0: i32, %arg1: memref<8xi32, #tpu.memory_space<smem>>, %arg2: memref<448x32xf32, #tpu.memory_space<vmem>>, %arg3: memref<32x32xf32, #tpu.memory_space<vmem>>, %arg4: memref<1x32xf32, #tpu.memory_space<vmem>>, %arg5: memref<32x256xf32, #tpu.memory_space<vmem>>, %arg6: memref<1x128xf32, #tpu.memory_space<vmem>>, %arg7: memref<32x128xf32, #tpu.memory_space<vmem>>, %arg8: memref<448x64xf32, #tpu.memory_space<vmem>>, %arg9: memref<1x64xf32, #tpu.memory_space<vmem>>, %arg10: memref<8x16xf32, #tpu.memory_space<vmem>>, %arg11: memref<8x8xf32, #tpu.memory_space<vmem>>, %arg12: memref<16x32xf32, #tpu.memory_space<vmem>>, %arg13: memref<1x32xf32, #tpu.memory_space<vmem>>, %arg14: memref<32x32xf32, #tpu.memory_space<vmem>>, %arg15: memref<1x32xf32, #tpu.memory_space<vmem>>, %arg16: memref<64x32xf32, #tpu.memory_space<vmem>>, %arg17: memref<32x32xf32, #tpu.memory_space<vmem>>, %arg18: memref<1x32xf32, #tpu.memory_space<vmem>>, %arg19: memref<32x32xf32, #tpu.memory_space<vmem>>, %arg20: memref<1x32xf32, #tpu.memory_space<vmem>>, %arg21: memref<32x1xf32, #tpu.memory_space<vmem>>, %arg22: memref<1x1xf32, #tpu.memory_space<vmem>>, %arg23: memref<1x4x1xf32, #tpu.memory_space<vmem>>) attributes {dimension_semantics = [#tpu.dimension_semantics<parallel>], iteration_bounds = array<i64: 2>, scalar_prefetch = 1 : i64, scratch_operands = 0 : i64, tpu.core_type = #tpu.core_type<tc>, window_params = [{transform_indices = @transform_0, window_bounds = array<i64: 448, 32>}, {pipeline_mode = #tpu.pipeline_mode<synchronous>, transform_indices = @transform_1, window_bounds = array<i64: 32, 32>}, {pipeline_mode = #tpu.pipeline_mode<synchronous>, transform_indices = @transform_2, window_bounds = array<i64: 1, 32>}, {pipeline_mode = #tpu.pipeline_mode<synchronous>, transform_indices = @transform_3, window_bounds = array<i64: 32, 256>}, {pipeline_mode = #tpu.pipeline_mode<synchronous>, transform_indices = @transform_4, window_bounds = array<i64: 1, 128>}, {pipeline_mode = #tpu.pipeline_mode<synchronous>, transform_indices = @transform_5, window_bounds = array<i64: 32, 128>}, {pipeline_mode = #tpu.pipeline_mode<synchronous>, transform_indices = @transform_6, window_bounds = array<i64: 448, 64>}, {pipeline_mode = #tpu.pipeline_mode<synchronous>, transform_indices = @transform_7, window_bounds = array<i64: 1, 64>}, {pipeline_mode = #tpu.pipeline_mode<synchronous>, transform_indices = @transform_8, window_bounds = array<i64: 8, 16>}, {pipeline_mode = #tpu.pipeline_mode<synchronous>, transform_indices = @transform_9, window_bounds = array<i64: 8, 8>}, {pipeline_mode = #tpu.pipeline_mode<synchronous>, transform_indices = @transform_10, window_bounds = array<i64: 16, 32>}, {pipeline_mode = #tpu.pipeline_mode<synchronous>, transform_indices = @transform_11, window_bounds = array<i64: 1, 32>}, {pipeline_mode = #tpu.pipeline_mode<synchronous>, transform_indices = @transform_12, window_bounds = array<i64: 32, 32>}, {pipeline_mode = #tpu.pipeline_mode<synchronous>, transform_indices = @transform_13, window_bounds = array<i64: 1, 32>}, {pipeline_mode = #tpu.pipeline_mode<synchronous>, transform_indices = @transform_14, window_bounds = array<i64: 64, 32>}, {pipeline_mode = #tpu.pipeline_mode<synchronous>, transform_indices = @transform_15, window_bounds = array<i64: 32, 32>}, {pipeline_mode = #tpu.pipeline_mode<synchronous>, transform_indices = @transform_16, window_bounds = array<i64: 1, 32>}, {pipeline_mode = #tpu.pipeline_mode<synchronous>, transform_indices = @transform_17, window_bounds = array<i64: 32, 32>}, {pipeline_mode = #tpu.pipeline_mode<synchronous>, transform_indices = @transform_18, window_bounds = array<i64: 1, 32>}, {pipeline_mode = #tpu.pipeline_mode<synchronous>, transform_indices = @transform_19, window_bounds = array<i64: 32, 1>}, {pipeline_mode = #tpu.pipeline_mode<synchronous>, transform_indices = @transform_20, window_bounds = array<i64: 1, 1>}, {transform_indices = @transform_21, window_bounds = array<i64: 1, 4, 1>}]} {
    %c0 = arith.constant 0 : index
    %c0_0 = arith.constant 0 : index
    %0 = vector.load %arg2[%c0, %c0_0] : memref<448x32xf32, #tpu.memory_space<vmem>>, vector<448x32xf32>
    %c0_1 = arith.constant 0 : index
    %c0_2 = arith.constant 0 : index
    %1 = vector.load %arg3[%c0_1, %c0_2] : memref<32x32xf32, #tpu.memory_space<vmem>>, vector<32x32xf32>
    %cst = arith.constant dense<0.000000e+00> : vector<448x32xf32>
    %2 = tpu.matmul %0, %1, %cst {dimension_numbers = #tpu.dot_dimension_numbers<[1], [0], [0], [1], [0, 0, 1, 1], [], []>} : vector<448x32xf32>, vector<32x32xf32>, vector<448x32xf32> -> vector<448x32xf32>
    %c0_3 = arith.constant 0 : index
    %c0_4 = arith.constant 0 : index
    %3 = vector.load %arg4[%c0_3, %c0_4] : memref<1x32xf32, #tpu.memory_space<vmem>>, vector<1x32xf32>
    %4 = vector.broadcast %3 : vector<1x32xf32> to vector<448x32xf32>
    %5 = arith.addf %2, %4 : vector<448x32xf32>
    %cst_5 = arith.constant 0.000000e+00 : f32
    %6 = vector.broadcast %cst_5 : f32 to vector<448x32xf32>
    %7 = arith.maximumf %5, %6 : vector<448x32xf32>
    %8 = vector.extract_strided_slice %7 {offsets = [0, 0], sizes = [112, 32], strides = [1, 1]} : vector<448x32xf32> to vector<112x32xf32>
    %9 = vector.extract_strided_slice %7 {offsets = [112, 0], sizes = [112, 32], strides = [1, 1]} : vector<448x32xf32> to vector<112x32xf32>
    %10 = arith.maximumf %8, %9 : vector<112x32xf32>
    %11 = vector.extract_strided_slice %7 {offsets = [224, 0], sizes = [112, 32], strides = [1, 1]} : vector<448x32xf32> to vector<112x32xf32>
    %12 = arith.maximumf %10, %11 : vector<112x32xf32>
    %13 = vector.extract_strided_slice %7 {offsets = [336, 0], sizes = [112, 32], strides = [1, 1]} : vector<448x32xf32> to vector<112x32xf32>
    %14 = arith.maximumf %12, %13 : vector<112x32xf32>
    %c0_6 = arith.constant 0 : index
    %c0_7 = arith.constant 0 : index
    %15 = vector.load %arg5[%c0_6, %c0_7] : memref<32x256xf32, #tpu.memory_space<vmem>>, vector<32x256xf32>
    %cst_8 = arith.constant dense<0.000000e+00> : vector<112x256xf32>
    %16 = tpu.matmul %14, %15, %cst_8 {dimension_numbers = #tpu.dot_dimension_numbers<[1], [0], [0], [1], [0, 0, 1, 1], [], []>} : vector<112x32xf32>, vector<32x256xf32>, vector<112x256xf32> -> vector<112x256xf32>
    %17 = vector.extract_strided_slice %16 {offsets = [0, 0], sizes = [112, 128], strides = [1, 1]} : vector<112x256xf32> to vector<112x128xf32>
    %c0_9 = arith.constant 0 : index
    %c0_10 = arith.constant 0 : index
    %18 = vector.load %arg6[%c0_9, %c0_10] : memref<1x128xf32, #tpu.memory_space<vmem>>, vector<1x128xf32>
    %19 = vector.broadcast %18 : vector<1x128xf32> to vector<112x128xf32>
    %20 = arith.addf %17, %19 : vector<112x128xf32>
    %21 = vector.extract_strided_slice %16 {offsets = [0, 128], sizes = [112, 128], strides = [1, 1]} : vector<112x256xf32> to vector<112x128xf32>
    %c0_11 = arith.constant 0 : index
    %c0_12 = arith.constant 0 : index
    %22 = vector.load %arg7[%c0_11, %c0_12] : memref<32x128xf32, #tpu.memory_space<vmem>>, vector<32x128xf32>
    %cst_13 = arith.constant 0.000000e+00 : f32
    %23 = vector.broadcast %cst_13 : f32 to vector<8x32xf32>
    %cst_14 = arith.constant 0.000000e+00 : f32
    %24 = vector.broadcast %cst_14 : f32 to vector<8x32xf32>
    %cst_15 = arith.constant 0.000000e+00 : f32
    %25 = vector.broadcast %cst_15 : f32 to vector<8x64xf32>
    %26 = vector.extract_strided_slice %20 {offsets = [0, 0], sizes = [8, 128], strides = [1, 1]} : vector<112x128xf32> to vector<8x128xf32>
    %27 = vector.extract_strided_slice %21 {offsets = [104, 0], sizes = [8, 128], strides = [1, 1]} : vector<112x128xf32> to vector<8x128xf32>
    %28 = arith.addf %26, %27 : vector<8x128xf32>
    %cst_16 = arith.constant dense<0.000000e+00> : vector<8x128xf32>
    %29 = tpu.matmul %23, %22, %cst_16 {dimension_numbers = #tpu.dot_dimension_numbers<[1], [0], [0], [1], [0, 0, 1, 1], [], []>} : vector<8x32xf32>, vector<32x128xf32>, vector<8x128xf32> -> vector<8x128xf32>
    %30 = arith.addf %29, %28 : vector<8x128xf32>
    %31 = vector.extract_strided_slice %30 {offsets = [0, 0], sizes = [8, 96], strides = [1, 1]} : vector<8x128xf32> to vector<8x96xf32>
    %32 = arith.negf %31 : vector<8x96xf32>
    %33 = math.exp %32 : vector<8x96xf32>
    %cst_17 = arith.constant 1.000000e+00 : f32
    %34 = vector.broadcast %cst_17 : f32 to vector<8x96xf32>
    %35 = arith.addf %34, %33 : vector<8x96xf32>
    %36 = arith.divf %34, %35 : vector<8x96xf32>
    %37 = vector.extract_strided_slice %30 {offsets = [0, 96], sizes = [8, 32], strides = [1, 1]} : vector<8x128xf32> to vector<8x32xf32>
    %38 = math.tanh %37 : vector<8x32xf32>
    %39 = vector.extract_strided_slice %36 {offsets = [0, 32], sizes = [8, 32], strides = [1, 1]} : vector<8x96xf32> to vector<8x32xf32>
    %40 = arith.mulf %39, %24 : vector<8x32xf32>
    %41 = vector.extract_strided_slice %36 {offsets = [0, 0], sizes = [8, 32], strides = [1, 1]} : vector<8x96xf32> to vector<8x32xf32>
    %42 = arith.mulf %41, %38 : vector<8x32xf32>
    %43 = arith.addf %40, %42 : vector<8x32xf32>
    %44 = vector.extract_strided_slice %36 {offsets = [0, 64], sizes = [8, 32], strides = [1, 1]} : vector<8x96xf32> to vector<8x32xf32>
    %45 = math.tanh %43 : vector<8x32xf32>
    %46 = arith.mulf %44, %45 : vector<8x32xf32>
    %c0_18 = arith.constant 0 : index
    %c0_19 = arith.constant 0 : index
    %47 = vector.load %arg8[%c0_18, %c0_19] : memref<448x64xf32, #tpu.memory_space<vmem>>, vector<32x64xf32>
    %cst_20 = arith.constant dense<0.000000e+00> : vector<8x64xf32>
    %48 = tpu.matmul %46, %47, %cst_20 {dimension_numbers = #tpu.dot_dimension_numbers<[1], [0], [0], [1], [0, 0, 1, 1], [], []>} : vector<8x32xf32>, vector<32x64xf32>, vector<8x64xf32> -> vector<8x64xf32>
    %49 = arith.addf %25, %48 : vector<8x64xf32>
    %50 = vector.extract_strided_slice %20 {offsets = [8, 0], sizes = [8, 128], strides = [1, 1]} : vector<112x128xf32> to vector<8x128xf32>
    %51 = vector.extract_strided_slice %21 {offsets = [96, 0], sizes = [8, 128], strides = [1, 1]} : vector<112x128xf32> to vector<8x128xf32>
    %52 = arith.addf %50, %51 : vector<8x128xf32>
    %cst_21 = arith.constant dense<0.000000e+00> : vector<8x128xf32>
    %53 = tpu.matmul %46, %22, %cst_21 {dimension_numbers = #tpu.dot_dimension_numbers<[1], [0], [0], [1], [0, 0, 1, 1], [], []>} : vector<8x32xf32>, vector<32x128xf32>, vector<8x128xf32> -> vector<8x128xf32>
    %54 = arith.addf %53, %52 : vector<8x128xf32>
    %55 = vector.extract_strided_slice %54 {offsets = [0, 0], sizes = [8, 96], strides = [1, 1]} : vector<8x128xf32> to vector<8x96xf32>
    %56 = arith.negf %55 : vector<8x96xf32>
    %57 = math.exp %56 : vector<8x96xf32>
    %cst_22 = arith.constant 1.000000e+00 : f32
    %58 = vector.broadcast %cst_22 : f32 to vector<8x96xf32>
    %59 = arith.addf %58, %57 : vector<8x96xf32>
    %60 = arith.divf %58, %59 : vector<8x96xf32>
    %61 = vector.extract_strided_slice %54 {offsets = [0, 96], sizes = [8, 32], strides = [1, 1]} : vector<8x128xf32> to vector<8x32xf32>
    %62 = math.tanh %61 : vector<8x32xf32>
    %63 = vector.extract_strided_slice %60 {offsets = [0, 32], sizes = [8, 32], strides = [1, 1]} : vector<8x96xf32> to vector<8x32xf32>
    %64 = arith.mulf %63, %43 : vector<8x32xf32>
    %65 = vector.extract_strided_slice %60 {offsets = [0, 0], sizes = [8, 32], strides = [1, 1]} : vector<8x96xf32> to vector<8x32xf32>
    %66 = arith.mulf %65, %62 : vector<8x32xf32>
    %67 = arith.addf %64, %66 : vector<8x32xf32>
    %68 = vector.extract_strided_slice %60 {offsets = [0, 64], sizes = [8, 32], strides = [1, 1]} : vector<8x96xf32> to vector<8x32xf32>
    %69 = math.tanh %67 : vector<8x32xf32>
    %70 = arith.mulf %68, %69 : vector<8x32xf32>
    %c32 = arith.constant 32 : index
    %c0_23 = arith.constant 0 : index
    %71 = vector.load %arg8[%c32, %c0_23] : memref<448x64xf32, #tpu.memory_space<vmem>>, vector<32x64xf32>
    %cst_24 = arith.constant dense<0.000000e+00> : vector<8x64xf32>
    %72 = tpu.matmul %70, %71, %cst_24 {dimension_numbers = #tpu.dot_dimension_numbers<[1], [0], [0], [1], [0, 0, 1, 1], [], []>} : vector<8x32xf32>, vector<32x64xf32>, vector<8x64xf32> -> vector<8x64xf32>
    %73 = arith.addf %49, %72 : vector<8x64xf32>
    %74 = vector.extract_strided_slice %20 {offsets = [16, 0], sizes = [8, 128], strides = [1, 1]} : vector<112x128xf32> to vector<8x128xf32>
    %75 = vector.extract_strided_slice %21 {offsets = [88, 0], sizes = [8, 128], strides = [1, 1]} : vector<112x128xf32> to vector<8x128xf32>
    %76 = arith.addf %74, %75 : vector<8x128xf32>
    %cst_25 = arith.constant dense<0.000000e+00> : vector<8x128xf32>
    %77 = tpu.matmul %70, %22, %cst_25 {dimension_numbers = #tpu.dot_dimension_numbers<[1], [0], [0], [1], [0, 0, 1, 1], [], []>} : vector<8x32xf32>, vector<32x128xf32>, vector<8x128xf32> -> vector<8x128xf32>
    %78 = arith.addf %77, %76 : vector<8x128xf32>
    %79 = vector.extract_strided_slice %78 {offsets = [0, 0], sizes = [8, 96], strides = [1, 1]} : vector<8x128xf32> to vector<8x96xf32>
    %80 = arith.negf %79 : vector<8x96xf32>
    %81 = math.exp %80 : vector<8x96xf32>
    %cst_26 = arith.constant 1.000000e+00 : f32
    %82 = vector.broadcast %cst_26 : f32 to vector<8x96xf32>
    %83 = arith.addf %82, %81 : vector<8x96xf32>
    %84 = arith.divf %82, %83 : vector<8x96xf32>
    %85 = vector.extract_strided_slice %78 {offsets = [0, 96], sizes = [8, 32], strides = [1, 1]} : vector<8x128xf32> to vector<8x32xf32>
    %86 = math.tanh %85 : vector<8x32xf32>
    %87 = vector.extract_strided_slice %84 {offsets = [0, 32], sizes = [8, 32], strides = [1, 1]} : vector<8x96xf32> to vector<8x32xf32>
    %88 = arith.mulf %87, %67 : vector<8x32xf32>
    %89 = vector.extract_strided_slice %84 {offsets = [0, 0], sizes = [8, 32], strides = [1, 1]} : vector<8x96xf32> to vector<8x32xf32>
    %90 = arith.mulf %89, %86 : vector<8x32xf32>
    %91 = arith.addf %88, %90 : vector<8x32xf32>
    %92 = vector.extract_strided_slice %84 {offsets = [0, 64], sizes = [8, 32], strides = [1, 1]} : vector<8x96xf32> to vector<8x32xf32>
    %93 = math.tanh %91 : vector<8x32xf32>
    %94 = arith.mulf %92, %93 : vector<8x32xf32>
    %c64 = arith.constant 64 : index
    %c0_27 = arith.constant 0 : index
    %95 = vector.load %arg8[%c64, %c0_27] : memref<448x64xf32, #tpu.memory_space<vmem>>, vector<32x64xf32>
    %cst_28 = arith.constant dense<0.000000e+00> : vector<8x64xf32>
    %96 = tpu.matmul %94, %95, %cst_28 {dimension_numbers = #tpu.dot_dimension_numbers<[1], [0], [0], [1], [0, 0, 1, 1], [], []>} : vector<8x32xf32>, vector<32x64xf32>, vector<8x64xf32> -> vector<8x64xf32>
    %97 = arith.addf %73, %96 : vector<8x64xf32>
    %98 = vector.extract_strided_slice %20 {offsets = [24, 0], sizes = [8, 128], strides = [1, 1]} : vector<112x128xf32> to vector<8x128xf32>
    %99 = vector.extract_strided_slice %21 {offsets = [80, 0], sizes = [8, 128], strides = [1, 1]} : vector<112x128xf32> to vector<8x128xf32>
    %100 = arith.addf %98, %99 : vector<8x128xf32>
    %cst_29 = arith.constant dense<0.000000e+00> : vector<8x128xf32>
    %101 = tpu.matmul %94, %22, %cst_29 {dimension_numbers = #tpu.dot_dimension_numbers<[1], [0], [0], [1], [0, 0, 1, 1], [], []>} : vector<8x32xf32>, vector<32x128xf32>, vector<8x128xf32> -> vector<8x128xf32>
    %102 = arith.addf %101, %100 : vector<8x128xf32>
    %103 = vector.extract_strided_slice %102 {offsets = [0, 0], sizes = [8, 96], strides = [1, 1]} : vector<8x128xf32> to vector<8x96xf32>
    %104 = arith.negf %103 : vector<8x96xf32>
    %105 = math.exp %104 : vector<8x96xf32>
    %cst_30 = arith.constant 1.000000e+00 : f32
    %106 = vector.broadcast %cst_30 : f32 to vector<8x96xf32>
    %107 = arith.addf %106, %105 : vector<8x96xf32>
    %108 = arith.divf %106, %107 : vector<8x96xf32>
    %109 = vector.extract_strided_slice %102 {offsets = [0, 96], sizes = [8, 32], strides = [1, 1]} : vector<8x128xf32> to vector<8x32xf32>
    %110 = math.tanh %109 : vector<8x32xf32>
    %111 = vector.extract_strided_slice %108 {offsets = [0, 32], sizes = [8, 32], strides = [1, 1]} : vector<8x96xf32> to vector<8x32xf32>
    %112 = arith.mulf %111, %91 : vector<8x32xf32>
    %113 = vector.extract_strided_slice %108 {offsets = [0, 0], sizes = [8, 32], strides = [1, 1]} : vector<8x96xf32> to vector<8x32xf32>
    %114 = arith.mulf %113, %110 : vector<8x32xf32>
    %115 = arith.addf %112, %114 : vector<8x32xf32>
    %116 = vector.extract_strided_slice %108 {offsets = [0, 64], sizes = [8, 32], strides = [1, 1]} : vector<8x96xf32> to vector<8x32xf32>
    %117 = math.tanh %115 : vector<8x32xf32>
    %118 = arith.mulf %116, %117 : vector<8x32xf32>
    %c96 = arith.constant 96 : index
    %c0_31 = arith.constant 0 : index
    %119 = vector.load %arg8[%c96, %c0_31] : memref<448x64xf32, #tpu.memory_space<vmem>>, vector<32x64xf32>
    %cst_32 = arith.constant dense<0.000000e+00> : vector<8x64xf32>
    %120 = tpu.matmul %118, %119, %cst_32 {dimension_numbers = #tpu.dot_dimension_numbers<[1], [0], [0], [1], [0, 0, 1, 1], [], []>} : vector<8x32xf32>, vector<32x64xf32>, vector<8x64xf32> -> vector<8x64xf32>
    %121 = arith.addf %97, %120 : vector<8x64xf32>
    %122 = vector.extract_strided_slice %20 {offsets = [32, 0], sizes = [8, 128], strides = [1, 1]} : vector<112x128xf32> to vector<8x128xf32>
    %123 = vector.extract_strided_slice %21 {offsets = [72, 0], sizes = [8, 128], strides = [1, 1]} : vector<112x128xf32> to vector<8x128xf32>
    %124 = arith.addf %122, %123 : vector<8x128xf32>
    %cst_33 = arith.constant dense<0.000000e+00> : vector<8x128xf32>
    %125 = tpu.matmul %118, %22, %cst_33 {dimension_numbers = #tpu.dot_dimension_numbers<[1], [0], [0], [1], [0, 0, 1, 1], [], []>} : vector<8x32xf32>, vector<32x128xf32>, vector<8x128xf32> -> vector<8x128xf32>
    %126 = arith.addf %125, %124 : vector<8x128xf32>
    %127 = vector.extract_strided_slice %126 {offsets = [0, 0], sizes = [8, 96], strides = [1, 1]} : vector<8x128xf32> to vector<8x96xf32>
    %128 = arith.negf %127 : vector<8x96xf32>
    %129 = math.exp %128 : vector<8x96xf32>
    %cst_34 = arith.constant 1.000000e+00 : f32
    %130 = vector.broadcast %cst_34 : f32 to vector<8x96xf32>
    %131 = arith.addf %130, %129 : vector<8x96xf32>
    %132 = arith.divf %130, %131 : vector<8x96xf32>
    %133 = vector.extract_strided_slice %126 {offsets = [0, 96], sizes = [8, 32], strides = [1, 1]} : vector<8x128xf32> to vector<8x32xf32>
    %134 = math.tanh %133 : vector<8x32xf32>
    %135 = vector.extract_strided_slice %132 {offsets = [0, 32], sizes = [8, 32], strides = [1, 1]} : vector<8x96xf32> to vector<8x32xf32>
    %136 = arith.mulf %135, %115 : vector<8x32xf32>
    %137 = vector.extract_strided_slice %132 {offsets = [0, 0], sizes = [8, 32], strides = [1, 1]} : vector<8x96xf32> to vector<8x32xf32>
    %138 = arith.mulf %137, %134 : vector<8x32xf32>
    %139 = arith.addf %136, %138 : vector<8x32xf32>
    %140 = vector.extract_strided_slice %132 {offsets = [0, 64], sizes = [8, 32], strides = [1, 1]} : vector<8x96xf32> to vector<8x32xf32>
    %141 = math.tanh %139 : vector<8x32xf32>
    %142 = arith.mulf %140, %141 : vector<8x32xf32>
    %c128 = arith.constant 128 : index
    %c0_35 = arith.constant 0 : index
    %143 = vector.load %arg8[%c128, %c0_35] : memref<448x64xf32, #tpu.memory_space<vmem>>, vector<32x64xf32>
    %cst_36 = arith.constant dense<0.000000e+00> : vector<8x64xf32>
    %144 = tpu.matmul %142, %143, %cst_36 {dimension_numbers = #tpu.dot_dimension_numbers<[1], [0], [0], [1], [0, 0, 1, 1], [], []>} : vector<8x32xf32>, vector<32x64xf32>, vector<8x64xf32> -> vector<8x64xf32>
    %145 = arith.addf %121, %144 : vector<8x64xf32>
    %146 = vector.extract_strided_slice %20 {offsets = [40, 0], sizes = [8, 128], strides = [1, 1]} : vector<112x128xf32> to vector<8x128xf32>
    %147 = vector.extract_strided_slice %21 {offsets = [64, 0], sizes = [8, 128], strides = [1, 1]} : vector<112x128xf32> to vector<8x128xf32>
    %148 = arith.addf %146, %147 : vector<8x128xf32>
    %cst_37 = arith.constant dense<0.000000e+00> : vector<8x128xf32>
    %149 = tpu.matmul %142, %22, %cst_37 {dimension_numbers = #tpu.dot_dimension_numbers<[1], [0], [0], [1], [0, 0, 1, 1], [], []>} : vector<8x32xf32>, vector<32x128xf32>, vector<8x128xf32> -> vector<8x128xf32>
    %150 = arith.addf %149, %148 : vector<8x128xf32>
    %151 = vector.extract_strided_slice %150 {offsets = [0, 0], sizes = [8, 96], strides = [1, 1]} : vector<8x128xf32> to vector<8x96xf32>
    %152 = arith.negf %151 : vector<8x96xf32>
    %153 = math.exp %152 : vector<8x96xf32>
    %cst_38 = arith.constant 1.000000e+00 : f32
    %154 = vector.broadcast %cst_38 : f32 to vector<8x96xf32>
    %155 = arith.addf %154, %153 : vector<8x96xf32>
    %156 = arith.divf %154, %155 : vector<8x96xf32>
    %157 = vector.extract_strided_slice %150 {offsets = [0, 96], sizes = [8, 32], strides = [1, 1]} : vector<8x128xf32> to vector<8x32xf32>
    %158 = math.tanh %157 : vector<8x32xf32>
    %159 = vector.extract_strided_slice %156 {offsets = [0, 32], sizes = [8, 32], strides = [1, 1]} : vector<8x96xf32> to vector<8x32xf32>
    %160 = arith.mulf %159, %139 : vector<8x32xf32>
    %161 = vector.extract_strided_slice %156 {offsets = [0, 0], sizes = [8, 32], strides = [1, 1]} : vector<8x96xf32> to vector<8x32xf32>
    %162 = arith.mulf %161, %158 : vector<8x32xf32>
    %163 = arith.addf %160, %162 : vector<8x32xf32>
    %164 = vector.extract_strided_slice %156 {offsets = [0, 64], sizes = [8, 32], strides = [1, 1]} : vector<8x96xf32> to vector<8x32xf32>
    %165 = math.tanh %163 : vector<8x32xf32>
    %166 = arith.mulf %164, %165 : vector<8x32xf32>
    %c160 = arith.constant 160 : index
    %c0_39 = arith.constant 0 : index
    %167 = vector.load %arg8[%c160, %c0_39] : memref<448x64xf32, #tpu.memory_space<vmem>>, vector<32x64xf32>
    %cst_40 = arith.constant dense<0.000000e+00> : vector<8x64xf32>
    %168 = tpu.matmul %166, %167, %cst_40 {dimension_numbers = #tpu.dot_dimension_numbers<[1], [0], [0], [1], [0, 0, 1, 1], [], []>} : vector<8x32xf32>, vector<32x64xf32>, vector<8x64xf32> -> vector<8x64xf32>
    %169 = arith.addf %145, %168 : vector<8x64xf32>
    %170 = vector.extract_strided_slice %20 {offsets = [48, 0], sizes = [8, 128], strides = [1, 1]} : vector<112x128xf32> to vector<8x128xf32>
    %171 = vector.extract_strided_slice %21 {offsets = [56, 0], sizes = [8, 128], strides = [1, 1]} : vector<112x128xf32> to vector<8x128xf32>
    %172 = arith.addf %170, %171 : vector<8x128xf32>
    %cst_41 = arith.constant dense<0.000000e+00> : vector<8x128xf32>
    %173 = tpu.matmul %166, %22, %cst_41 {dimension_numbers = #tpu.dot_dimension_numbers<[1], [0], [0], [1], [0, 0, 1, 1], [], []>} : vector<8x32xf32>, vector<32x128xf32>, vector<8x128xf32> -> vector<8x128xf32>
    %174 = arith.addf %173, %172 : vector<8x128xf32>
    %175 = vector.extract_strided_slice %174 {offsets = [0, 0], sizes = [8, 96], strides = [1, 1]} : vector<8x128xf32> to vector<8x96xf32>
    %176 = arith.negf %175 : vector<8x96xf32>
    %177 = math.exp %176 : vector<8x96xf32>
    %cst_42 = arith.constant 1.000000e+00 : f32
    %178 = vector.broadcast %cst_42 : f32 to vector<8x96xf32>
    %179 = arith.addf %178, %177 : vector<8x96xf32>
    %180 = arith.divf %178, %179 : vector<8x96xf32>
    %181 = vector.extract_strided_slice %174 {offsets = [0, 96], sizes = [8, 32], strides = [1, 1]} : vector<8x128xf32> to vector<8x32xf32>
    %182 = math.tanh %181 : vector<8x32xf32>
    %183 = vector.extract_strided_slice %180 {offsets = [0, 32], sizes = [8, 32], strides = [1, 1]} : vector<8x96xf32> to vector<8x32xf32>
    %184 = arith.mulf %183, %163 : vector<8x32xf32>
    %185 = vector.extract_strided_slice %180 {offsets = [0, 0], sizes = [8, 32], strides = [1, 1]} : vector<8x96xf32> to vector<8x32xf32>
    %186 = arith.mulf %185, %182 : vector<8x32xf32>
    %187 = arith.addf %184, %186 : vector<8x32xf32>
    %188 = vector.extract_strided_slice %180 {offsets = [0, 64], sizes = [8, 32], strides = [1, 1]} : vector<8x96xf32> to vector<8x32xf32>
    %189 = math.tanh %187 : vector<8x32xf32>
    %190 = arith.mulf %188, %189 : vector<8x32xf32>
    %c192 = arith.constant 192 : index
    %c0_43 = arith.constant 0 : index
    %191 = vector.load %arg8[%c192, %c0_43] : memref<448x64xf32, #tpu.memory_space<vmem>>, vector<32x64xf32>
    %cst_44 = arith.constant dense<0.000000e+00> : vector<8x64xf32>
    %192 = tpu.matmul %190, %191, %cst_44 {dimension_numbers = #tpu.dot_dimension_numbers<[1], [0], [0], [1], [0, 0, 1, 1], [], []>} : vector<8x32xf32>, vector<32x64xf32>, vector<8x64xf32> -> vector<8x64xf32>
    %193 = arith.addf %169, %192 : vector<8x64xf32>
    %194 = vector.extract_strided_slice %20 {offsets = [56, 0], sizes = [8, 128], strides = [1, 1]} : vector<112x128xf32> to vector<8x128xf32>
    %195 = vector.extract_strided_slice %21 {offsets = [48, 0], sizes = [8, 128], strides = [1, 1]} : vector<112x128xf32> to vector<8x128xf32>
    %196 = arith.addf %194, %195 : vector<8x128xf32>
    %cst_45 = arith.constant dense<0.000000e+00> : vector<8x128xf32>
    %197 = tpu.matmul %190, %22, %cst_45 {dimension_numbers = #tpu.dot_dimension_numbers<[1], [0], [0], [1], [0, 0, 1, 1], [], []>} : vector<8x32xf32>, vector<32x128xf32>, vector<8x128xf32> -> vector<8x128xf32>
    %198 = arith.addf %197, %196 : vector<8x128xf32>
    %199 = vector.extract_strided_slice %198 {offsets = [0, 0], sizes = [8, 96], strides = [1, 1]} : vector<8x128xf32> to vector<8x96xf32>
    %200 = arith.negf %199 : vector<8x96xf32>
    %201 = math.exp %200 : vector<8x96xf32>
    %cst_46 = arith.constant 1.000000e+00 : f32
    %202 = vector.broadcast %cst_46 : f32 to vector<8x96xf32>
    %203 = arith.addf %202, %201 : vector<8x96xf32>
    %204 = arith.divf %202, %203 : vector<8x96xf32>
    %205 = vector.extract_strided_slice %198 {offsets = [0, 96], sizes = [8, 32], strides = [1, 1]} : vector<8x128xf32> to vector<8x32xf32>
    %206 = math.tanh %205 : vector<8x32xf32>
    %207 = vector.extract_strided_slice %204 {offsets = [0, 32], sizes = [8, 32], strides = [1, 1]} : vector<8x96xf32> to vector<8x32xf32>
    %208 = arith.mulf %207, %187 : vector<8x32xf32>
    %209 = vector.extract_strided_slice %204 {offsets = [0, 0], sizes = [8, 32], strides = [1, 1]} : vector<8x96xf32> to vector<8x32xf32>
    %210 = arith.mulf %209, %206 : vector<8x32xf32>
    %211 = arith.addf %208, %210 : vector<8x32xf32>
    %212 = vector.extract_strided_slice %204 {offsets = [0, 64], sizes = [8, 32], strides = [1, 1]} : vector<8x96xf32> to vector<8x32xf32>
    %213 = math.tanh %211 : vector<8x32xf32>
    %214 = arith.mulf %212, %213 : vector<8x32xf32>
    %c224 = arith.constant 224 : index
    %c0_47 = arith.constant 0 : index
    %215 = vector.load %arg8[%c224, %c0_47] : memref<448x64xf32, #tpu.memory_space<vmem>>, vector<32x64xf32>
    %cst_48 = arith.constant dense<0.000000e+00> : vector<8x64xf32>
    %216 = tpu.matmul %214, %215, %cst_48 {dimension_numbers = #tpu.dot_dimension_numbers<[1], [0], [0], [1], [0, 0, 1, 1], [], []>} : vector<8x32xf32>, vector<32x64xf32>, vector<8x64xf32> -> vector<8x64xf32>
    %217 = arith.addf %193, %216 : vector<8x64xf32>
    %218 = vector.extract_strided_slice %20 {offsets = [64, 0], sizes = [8, 128], strides = [1, 1]} : vector<112x128xf32> to vector<8x128xf32>
    %219 = vector.extract_strided_slice %21 {offsets = [40, 0], sizes = [8, 128], strides = [1, 1]} : vector<112x128xf32> to vector<8x128xf32>
    %220 = arith.addf %218, %219 : vector<8x128xf32>
    %cst_49 = arith.constant dense<0.000000e+00> : vector<8x128xf32>
    %221 = tpu.matmul %214, %22, %cst_49 {dimension_numbers = #tpu.dot_dimension_numbers<[1], [0], [0], [1], [0, 0, 1, 1], [], []>} : vector<8x32xf32>, vector<32x128xf32>, vector<8x128xf32> -> vector<8x128xf32>
    %222 = arith.addf %221, %220 : vector<8x128xf32>
    %223 = vector.extract_strided_slice %222 {offsets = [0, 0], sizes = [8, 96], strides = [1, 1]} : vector<8x128xf32> to vector<8x96xf32>
    %224 = arith.negf %223 : vector<8x96xf32>
    %225 = math.exp %224 : vector<8x96xf32>
    %cst_50 = arith.constant 1.000000e+00 : f32
    %226 = vector.broadcast %cst_50 : f32 to vector<8x96xf32>
    %227 = arith.addf %226, %225 : vector<8x96xf32>
    %228 = arith.divf %226, %227 : vector<8x96xf32>
    %229 = vector.extract_strided_slice %222 {offsets = [0, 96], sizes = [8, 32], strides = [1, 1]} : vector<8x128xf32> to vector<8x32xf32>
    %230 = math.tanh %229 : vector<8x32xf32>
    %231 = vector.extract_strided_slice %228 {offsets = [0, 32], sizes = [8, 32], strides = [1, 1]} : vector<8x96xf32> to vector<8x32xf32>
    %232 = arith.mulf %231, %211 : vector<8x32xf32>
    %233 = vector.extract_strided_slice %228 {offsets = [0, 0], sizes = [8, 32], strides = [1, 1]} : vector<8x96xf32> to vector<8x32xf32>
    %234 = arith.mulf %233, %230 : vector<8x32xf32>
    %235 = arith.addf %232, %234 : vector<8x32xf32>
    %236 = vector.extract_strided_slice %228 {offsets = [0, 64], sizes = [8, 32], strides = [1, 1]} : vector<8x96xf32> to vector<8x32xf32>
    %237 = math.tanh %235 : vector<8x32xf32>
    %238 = arith.mulf %236, %237 : vector<8x32xf32>
    %c256 = arith.constant 256 : index
    %c0_51 = arith.constant 0 : index
    %239 = vector.load %arg8[%c256, %c0_51] : memref<448x64xf32, #tpu.memory_space<vmem>>, vector<32x64xf32>
    %cst_52 = arith.constant dense<0.000000e+00> : vector<8x64xf32>
    %240 = tpu.matmul %238, %239, %cst_52 {dimension_numbers = #tpu.dot_dimension_numbers<[1], [0], [0], [1], [0, 0, 1, 1], [], []>} : vector<8x32xf32>, vector<32x64xf32>, vector<8x64xf32> -> vector<8x64xf32>
    %241 = arith.addf %217, %240 : vector<8x64xf32>
    %242 = vector.extract_strided_slice %20 {offsets = [72, 0], sizes = [8, 128], strides = [1, 1]} : vector<112x128xf32> to vector<8x128xf32>
    %243 = vector.extract_strided_slice %21 {offsets = [32, 0], sizes = [8, 128], strides = [1, 1]} : vector<112x128xf32> to vector<8x128xf32>
    %244 = arith.addf %242, %243 : vector<8x128xf32>
    %cst_53 = arith.constant dense<0.000000e+00> : vector<8x128xf32>
    %245 = tpu.matmul %238, %22, %cst_53 {dimension_numbers = #tpu.dot_dimension_numbers<[1], [0], [0], [1], [0, 0, 1, 1], [], []>} : vector<8x32xf32>, vector<32x128xf32>, vector<8x128xf32> -> vector<8x128xf32>
    %246 = arith.addf %245, %244 : vector<8x128xf32>
    %247 = vector.extract_strided_slice %246 {offsets = [0, 0], sizes = [8, 96], strides = [1, 1]} : vector<8x128xf32> to vector<8x96xf32>
    %248 = arith.negf %247 : vector<8x96xf32>
    %249 = math.exp %248 : vector<8x96xf32>
    %cst_54 = arith.constant 1.000000e+00 : f32
    %250 = vector.broadcast %cst_54 : f32 to vector<8x96xf32>
    %251 = arith.addf %250, %249 : vector<8x96xf32>
    %252 = arith.divf %250, %251 : vector<8x96xf32>
    %253 = vector.extract_strided_slice %246 {offsets = [0, 96], sizes = [8, 32], strides = [1, 1]} : vector<8x128xf32> to vector<8x32xf32>
    %254 = math.tanh %253 : vector<8x32xf32>
    %255 = vector.extract_strided_slice %252 {offsets = [0, 32], sizes = [8, 32], strides = [1, 1]} : vector<8x96xf32> to vector<8x32xf32>
    %256 = arith.mulf %255, %235 : vector<8x32xf32>
    %257 = vector.extract_strided_slice %252 {offsets = [0, 0], sizes = [8, 32], strides = [1, 1]} : vector<8x96xf32> to vector<8x32xf32>
    %258 = arith.mulf %257, %254 : vector<8x32xf32>
    %259 = arith.addf %256, %258 : vector<8x32xf32>
    %260 = vector.extract_strided_slice %252 {offsets = [0, 64], sizes = [8, 32], strides = [1, 1]} : vector<8x96xf32> to vector<8x32xf32>
    %261 = math.tanh %259 : vector<8x32xf32>
    %262 = arith.mulf %260, %261 : vector<8x32xf32>
    %c288 = arith.constant 288 : index
    %c0_55 = arith.constant 0 : index
    %263 = vector.load %arg8[%c288, %c0_55] : memref<448x64xf32, #tpu.memory_space<vmem>>, vector<32x64xf32>
    %cst_56 = arith.constant dense<0.000000e+00> : vector<8x64xf32>
    %264 = tpu.matmul %262, %263, %cst_56 {dimension_numbers = #tpu.dot_dimension_numbers<[1], [0], [0], [1], [0, 0, 1, 1], [], []>} : vector<8x32xf32>, vector<32x64xf32>, vector<8x64xf32> -> vector<8x64xf32>
    %265 = arith.addf %241, %264 : vector<8x64xf32>
    %266 = vector.extract_strided_slice %20 {offsets = [80, 0], sizes = [8, 128], strides = [1, 1]} : vector<112x128xf32> to vector<8x128xf32>
    %267 = vector.extract_strided_slice %21 {offsets = [24, 0], sizes = [8, 128], strides = [1, 1]} : vector<112x128xf32> to vector<8x128xf32>
    %268 = arith.addf %266, %267 : vector<8x128xf32>
    %cst_57 = arith.constant dense<0.000000e+00> : vector<8x128xf32>
    %269 = tpu.matmul %262, %22, %cst_57 {dimension_numbers = #tpu.dot_dimension_numbers<[1], [0], [0], [1], [0, 0, 1, 1], [], []>} : vector<8x32xf32>, vector<32x128xf32>, vector<8x128xf32> -> vector<8x128xf32>
    %270 = arith.addf %269, %268 : vector<8x128xf32>
    %271 = vector.extract_strided_slice %270 {offsets = [0, 0], sizes = [8, 96], strides = [1, 1]} : vector<8x128xf32> to vector<8x96xf32>
    %272 = arith.negf %271 : vector<8x96xf32>
    %273 = math.exp %272 : vector<8x96xf32>
    %cst_58 = arith.constant 1.000000e+00 : f32
    %274 = vector.broadcast %cst_58 : f32 to vector<8x96xf32>
    %275 = arith.addf %274, %273 : vector<8x96xf32>
    %276 = arith.divf %274, %275 : vector<8x96xf32>
    %277 = vector.extract_strided_slice %270 {offsets = [0, 96], sizes = [8, 32], strides = [1, 1]} : vector<8x128xf32> to vector<8x32xf32>
    %278 = math.tanh %277 : vector<8x32xf32>
    %279 = vector.extract_strided_slice %276 {offsets = [0, 32], sizes = [8, 32], strides = [1, 1]} : vector<8x96xf32> to vector<8x32xf32>
    %280 = arith.mulf %279, %259 : vector<8x32xf32>
    %281 = vector.extract_strided_slice %276 {offsets = [0, 0], sizes = [8, 32], strides = [1, 1]} : vector<8x96xf32> to vector<8x32xf32>
    %282 = arith.mulf %281, %278 : vector<8x32xf32>
    %283 = arith.addf %280, %282 : vector<8x32xf32>
    %284 = vector.extract_strided_slice %276 {offsets = [0, 64], sizes = [8, 32], strides = [1, 1]} : vector<8x96xf32> to vector<8x32xf32>
    %285 = math.tanh %283 : vector<8x32xf32>
    %286 = arith.mulf %284, %285 : vector<8x32xf32>
    %c320 = arith.constant 320 : index
    %c0_59 = arith.constant 0 : index
    %287 = vector.load %arg8[%c320, %c0_59] : memref<448x64xf32, #tpu.memory_space<vmem>>, vector<32x64xf32>
    %cst_60 = arith.constant dense<0.000000e+00> : vector<8x64xf32>
    %288 = tpu.matmul %286, %287, %cst_60 {dimension_numbers = #tpu.dot_dimension_numbers<[1], [0], [0], [1], [0, 0, 1, 1], [], []>} : vector<8x32xf32>, vector<32x64xf32>, vector<8x64xf32> -> vector<8x64xf32>
    %289 = arith.addf %265, %288 : vector<8x64xf32>
    %290 = vector.extract_strided_slice %20 {offsets = [88, 0], sizes = [8, 128], strides = [1, 1]} : vector<112x128xf32> to vector<8x128xf32>
    %291 = vector.extract_strided_slice %21 {offsets = [16, 0], sizes = [8, 128], strides = [1, 1]} : vector<112x128xf32> to vector<8x128xf32>
    %292 = arith.addf %290, %291 : vector<8x128xf32>
    %cst_61 = arith.constant dense<0.000000e+00> : vector<8x128xf32>
    %293 = tpu.matmul %286, %22, %cst_61 {dimension_numbers = #tpu.dot_dimension_numbers<[1], [0], [0], [1], [0, 0, 1, 1], [], []>} : vector<8x32xf32>, vector<32x128xf32>, vector<8x128xf32> -> vector<8x128xf32>
    %294 = arith.addf %293, %292 : vector<8x128xf32>
    %295 = vector.extract_strided_slice %294 {offsets = [0, 0], sizes = [8, 96], strides = [1, 1]} : vector<8x128xf32> to vector<8x96xf32>
    %296 = arith.negf %295 : vector<8x96xf32>
    %297 = math.exp %296 : vector<8x96xf32>
    %cst_62 = arith.constant 1.000000e+00 : f32
    %298 = vector.broadcast %cst_62 : f32 to vector<8x96xf32>
    %299 = arith.addf %298, %297 : vector<8x96xf32>
    %300 = arith.divf %298, %299 : vector<8x96xf32>
    %301 = vector.extract_strided_slice %294 {offsets = [0, 96], sizes = [8, 32], strides = [1, 1]} : vector<8x128xf32> to vector<8x32xf32>
    %302 = math.tanh %301 : vector<8x32xf32>
    %303 = vector.extract_strided_slice %300 {offsets = [0, 32], sizes = [8, 32], strides = [1, 1]} : vector<8x96xf32> to vector<8x32xf32>
    %304 = arith.mulf %303, %283 : vector<8x32xf32>
    %305 = vector.extract_strided_slice %300 {offsets = [0, 0], sizes = [8, 32], strides = [1, 1]} : vector<8x96xf32> to vector<8x32xf32>
    %306 = arith.mulf %305, %302 : vector<8x32xf32>
    %307 = arith.addf %304, %306 : vector<8x32xf32>
    %308 = vector.extract_strided_slice %300 {offsets = [0, 64], sizes = [8, 32], strides = [1, 1]} : vector<8x96xf32> to vector<8x32xf32>
    %309 = math.tanh %307 : vector<8x32xf32>
    %310 = arith.mulf %308, %309 : vector<8x32xf32>
    %c352 = arith.constant 352 : index
    %c0_63 = arith.constant 0 : index
    %311 = vector.load %arg8[%c352, %c0_63] : memref<448x64xf32, #tpu.memory_space<vmem>>, vector<32x64xf32>
    %cst_64 = arith.constant dense<0.000000e+00> : vector<8x64xf32>
    %312 = tpu.matmul %310, %311, %cst_64 {dimension_numbers = #tpu.dot_dimension_numbers<[1], [0], [0], [1], [0, 0, 1, 1], [], []>} : vector<8x32xf32>, vector<32x64xf32>, vector<8x64xf32> -> vector<8x64xf32>
    %313 = arith.addf %289, %312 : vector<8x64xf32>
    %314 = vector.extract_strided_slice %20 {offsets = [96, 0], sizes = [8, 128], strides = [1, 1]} : vector<112x128xf32> to vector<8x128xf32>
    %315 = vector.extract_strided_slice %21 {offsets = [8, 0], sizes = [8, 128], strides = [1, 1]} : vector<112x128xf32> to vector<8x128xf32>
    %316 = arith.addf %314, %315 : vector<8x128xf32>
    %cst_65 = arith.constant dense<0.000000e+00> : vector<8x128xf32>
    %317 = tpu.matmul %310, %22, %cst_65 {dimension_numbers = #tpu.dot_dimension_numbers<[1], [0], [0], [1], [0, 0, 1, 1], [], []>} : vector<8x32xf32>, vector<32x128xf32>, vector<8x128xf32> -> vector<8x128xf32>
    %318 = arith.addf %317, %316 : vector<8x128xf32>
    %319 = vector.extract_strided_slice %318 {offsets = [0, 0], sizes = [8, 96], strides = [1, 1]} : vector<8x128xf32> to vector<8x96xf32>
    %320 = arith.negf %319 : vector<8x96xf32>
    %321 = math.exp %320 : vector<8x96xf32>
    %cst_66 = arith.constant 1.000000e+00 : f32
    %322 = vector.broadcast %cst_66 : f32 to vector<8x96xf32>
    %323 = arith.addf %322, %321 : vector<8x96xf32>
    %324 = arith.divf %322, %323 : vector<8x96xf32>
    %325 = vector.extract_strided_slice %318 {offsets = [0, 96], sizes = [8, 32], strides = [1, 1]} : vector<8x128xf32> to vector<8x32xf32>
    %326 = math.tanh %325 : vector<8x32xf32>
    %327 = vector.extract_strided_slice %324 {offsets = [0, 32], sizes = [8, 32], strides = [1, 1]} : vector<8x96xf32> to vector<8x32xf32>
    %328 = arith.mulf %327, %307 : vector<8x32xf32>
    %329 = vector.extract_strided_slice %324 {offsets = [0, 0], sizes = [8, 32], strides = [1, 1]} : vector<8x96xf32> to vector<8x32xf32>
    %330 = arith.mulf %329, %326 : vector<8x32xf32>
    %331 = arith.addf %328, %330 : vector<8x32xf32>
    %332 = vector.extract_strided_slice %324 {offsets = [0, 64], sizes = [8, 32], strides = [1, 1]} : vector<8x96xf32> to vector<8x32xf32>
    %333 = math.tanh %331 : vector<8x32xf32>
    %334 = arith.mulf %332, %333 : vector<8x32xf32>
    %c384 = arith.constant 384 : index
    %c0_67 = arith.constant 0 : index
    %335 = vector.load %arg8[%c384, %c0_67] : memref<448x64xf32, #tpu.memory_space<vmem>>, vector<32x64xf32>
    %cst_68 = arith.constant dense<0.000000e+00> : vector<8x64xf32>
    %336 = tpu.matmul %334, %335, %cst_68 {dimension_numbers = #tpu.dot_dimension_numbers<[1], [0], [0], [1], [0, 0, 1, 1], [], []>} : vector<8x32xf32>, vector<32x64xf32>, vector<8x64xf32> -> vector<8x64xf32>
    %337 = arith.addf %313, %336 : vector<8x64xf32>
    %338 = vector.extract_strided_slice %20 {offsets = [104, 0], sizes = [8, 128], strides = [1, 1]} : vector<112x128xf32> to vector<8x128xf32>
    %339 = vector.extract_strided_slice %21 {offsets = [0, 0], sizes = [8, 128], strides = [1, 1]} : vector<112x128xf32> to vector<8x128xf32>
    %340 = arith.addf %338, %339 : vector<8x128xf32>
    %cst_69 = arith.constant dense<0.000000e+00> : vector<8x128xf32>
    %341 = tpu.matmul %334, %22, %cst_69 {dimension_numbers = #tpu.dot_dimension_numbers<[1], [0], [0], [1], [0, 0, 1, 1], [], []>} : vector<8x32xf32>, vector<32x128xf32>, vector<8x128xf32> -> vector<8x128xf32>
    %342 = arith.addf %341, %340 : vector<8x128xf32>
    %343 = vector.extract_strided_slice %342 {offsets = [0, 0], sizes = [8, 96], strides = [1, 1]} : vector<8x128xf32> to vector<8x96xf32>
    %344 = arith.negf %343 : vector<8x96xf32>
    %345 = math.exp %344 : vector<8x96xf32>
    %cst_70 = arith.constant 1.000000e+00 : f32
    %346 = vector.broadcast %cst_70 : f32 to vector<8x96xf32>
    %347 = arith.addf %346, %345 : vector<8x96xf32>
    %348 = arith.divf %346, %347 : vector<8x96xf32>
    %349 = vector.extract_strided_slice %342 {offsets = [0, 96], sizes = [8, 32], strides = [1, 1]} : vector<8x128xf32> to vector<8x32xf32>
    %350 = math.tanh %349 : vector<8x32xf32>
    %351 = vector.extract_strided_slice %348 {offsets = [0, 32], sizes = [8, 32], strides = [1, 1]} : vector<8x96xf32> to vector<8x32xf32>
    %352 = arith.mulf %351, %331 : vector<8x32xf32>
    %353 = vector.extract_strided_slice %348 {offsets = [0, 0], sizes = [8, 32], strides = [1, 1]} : vector<8x96xf32> to vector<8x32xf32>
    %354 = arith.mulf %353, %350 : vector<8x32xf32>
    %355 = arith.addf %352, %354 : vector<8x32xf32>
    %356 = vector.extract_strided_slice %348 {offsets = [0, 64], sizes = [8, 32], strides = [1, 1]} : vector<8x96xf32> to vector<8x32xf32>
    %357 = math.tanh %355 : vector<8x32xf32>
    %358 = arith.mulf %356, %357 : vector<8x32xf32>
    %c416 = arith.constant 416 : index
    %c0_71 = arith.constant 0 : index
    %359 = vector.load %arg8[%c416, %c0_71] : memref<448x64xf32, #tpu.memory_space<vmem>>, vector<32x64xf32>
    %cst_72 = arith.constant dense<0.000000e+00> : vector<8x64xf32>
    %360 = tpu.matmul %358, %359, %cst_72 {dimension_numbers = #tpu.dot_dimension_numbers<[1], [0], [0], [1], [0, 0, 1, 1], [], []>} : vector<8x32xf32>, vector<32x64xf32>, vector<8x64xf32> -> vector<8x64xf32>
    %361 = arith.addf %337, %360 : vector<8x64xf32>
    %c0_73 = arith.constant 0 : index
    %c0_74 = arith.constant 0 : index
    %362 = vector.load %arg9[%c0_73, %c0_74] : memref<1x64xf32, #tpu.memory_space<vmem>>, vector<1x64xf32>
    %363 = vector.broadcast %362 : vector<1x64xf32> to vector<8x64xf32>
    %364 = arith.addf %361, %363 : vector<8x64xf32>
    %cst_75 = arith.constant 0.000000e+00 : f32
    %365 = vector.broadcast %cst_75 : f32 to vector<8x64xf32>
    %366 = arith.maximumf %364, %365 : vector<8x64xf32>
    %c0_76 = arith.constant 0 : index
    %c0_77 = arith.constant 0 : index
    %367 = vector.load %arg11[%c0_76, %c0_77] : memref<8x8xf32, #tpu.memory_space<vmem>>, vector<8x8xf32>
    %c0_78 = arith.constant 0 : index
    %c0_79 = arith.constant 0 : index
    %368 = vector.load %arg10[%c0_78, %c0_79] : memref<8x16xf32, #tpu.memory_space<vmem>>, vector<8x16xf32>
    %c0_80 = arith.constant 0 : index
    %c0_81 = arith.constant 0 : index
    %369 = vector.load %arg12[%c0_80, %c0_81] : memref<16x32xf32, #tpu.memory_space<vmem>>, vector<16x32xf32>
    %cst_82 = arith.constant dense<0.000000e+00> : vector<8x32xf32>
    %370 = tpu.matmul %368, %369, %cst_82 {dimension_numbers = #tpu.dot_dimension_numbers<[1], [0], [0], [1], [0, 0, 1, 1], [], []>} : vector<8x16xf32>, vector<16x32xf32>, vector<8x32xf32> -> vector<8x32xf32>
    %cst_83 = arith.constant dense<0.000000e+00> : vector<8x32xf32>
    %371 = tpu.matmul %367, %370, %cst_83 {dimension_numbers = #tpu.dot_dimension_numbers<[1], [0], [0], [1], [0, 0, 1, 1], [], []>} : vector<8x8xf32>, vector<8x32xf32>, vector<8x32xf32> -> vector<8x32xf32>
    %c0_84 = arith.constant 0 : index
    %c0_85 = arith.constant 0 : index
    %372 = vector.load %arg13[%c0_84, %c0_85] : memref<1x32xf32, #tpu.memory_space<vmem>>, vector<1x32xf32>
    %373 = vector.broadcast %372 : vector<1x32xf32> to vector<8x32xf32>
    %374 = arith.addf %371, %373 : vector<8x32xf32>
    %cst_86 = arith.constant 0.000000e+00 : f32
    %375 = vector.broadcast %cst_86 : f32 to vector<8x32xf32>
    %376 = arith.maximumf %374, %375 : vector<8x32xf32>
    %c0_87 = arith.constant 0 : index
    %c0_88 = arith.constant 0 : index
    %377 = vector.load %arg14[%c0_87, %c0_88] : memref<32x32xf32, #tpu.memory_space<vmem>>, vector<32x32xf32>
    %cst_89 = arith.constant dense<0.000000e+00> : vector<8x32xf32>
    %378 = tpu.matmul %376, %377, %cst_89 {dimension_numbers = #tpu.dot_dimension_numbers<[1], [0], [0], [1], [0, 0, 1, 1], [], []>} : vector<8x32xf32>, vector<32x32xf32>, vector<8x32xf32> -> vector<8x32xf32>
    %cst_90 = arith.constant dense<0.000000e+00> : vector<8x32xf32>
    %379 = tpu.matmul %367, %378, %cst_90 {dimension_numbers = #tpu.dot_dimension_numbers<[1], [0], [0], [1], [0, 0, 1, 1], [], []>} : vector<8x8xf32>, vector<8x32xf32>, vector<8x32xf32> -> vector<8x32xf32>
    %c0_91 = arith.constant 0 : index
    %c0_92 = arith.constant 0 : index
    %380 = vector.load %arg15[%c0_91, %c0_92] : memref<1x32xf32, #tpu.memory_space<vmem>>, vector<1x32xf32>
    %381 = vector.broadcast %380 : vector<1x32xf32> to vector<8x32xf32>
    %382 = arith.addf %379, %381 : vector<8x32xf32>
    %cst_93 = arith.constant 0.000000e+00 : f32
    %383 = vector.broadcast %cst_93 : f32 to vector<8x32xf32>
    %384 = arith.maximumf %382, %383 : vector<8x32xf32>
    %385 = tpu.iota {dimensions = array<i32: 1>} : vector<1x8xi32>
    %c4_i32 = arith.constant 4 : i32
    %386 = arith.muli %arg0, %c4_i32 : i32
    %c0_i32 = arith.constant 0 : i32
    %387 = arith.addi %386, %c0_i32 : i32
    %388 = arith.index_cast %387 : i32 to index
    %389 = memref.load %arg1[%388] : memref<8xi32, #tpu.memory_space<smem>>
    %390 = vector.broadcast %389 : i32 to vector<1x8xi32>
    %391 = arith.cmpi eq, %385, %390 : vector<1x8xi32>
    %392 = arith.extui %391 : vector<1x8xi1> to vector<1x8xi32>
    %393 = arith.sitofp %392 : vector<1x8xi32> to vector<1x8xf32>
    %c4_i32_94 = arith.constant 4 : i32
    %394 = arith.muli %arg0, %c4_i32_94 : i32
    %c1_i32 = arith.constant 1 : i32
    %395 = arith.addi %394, %c1_i32 : i32
    %396 = arith.index_cast %395 : i32 to index
    %397 = memref.load %arg1[%396] : memref<8xi32, #tpu.memory_space<smem>>
    %398 = vector.broadcast %397 : i32 to vector<1x8xi32>
    %399 = arith.cmpi eq, %385, %398 : vector<1x8xi32>
    %400 = arith.extui %399 : vector<1x8xi1> to vector<1x8xi32>
    %401 = arith.sitofp %400 : vector<1x8xi32> to vector<1x8xf32>
    %c4_i32_95 = arith.constant 4 : i32
    %402 = arith.muli %arg0, %c4_i32_95 : i32
    %c2_i32 = arith.constant 2 : i32
    %403 = arith.addi %402, %c2_i32 : i32
    %404 = arith.index_cast %403 : i32 to index
    %405 = memref.load %arg1[%404] : memref<8xi32, #tpu.memory_space<smem>>
    %406 = vector.broadcast %405 : i32 to vector<1x8xi32>
    %407 = arith.cmpi eq, %385, %406 : vector<1x8xi32>
    %408 = arith.extui %407 : vector<1x8xi1> to vector<1x8xi32>
    %409 = arith.sitofp %408 : vector<1x8xi32> to vector<1x8xf32>
    %c4_i32_96 = arith.constant 4 : i32
    %410 = arith.muli %arg0, %c4_i32_96 : i32
    %c3_i32 = arith.constant 3 : i32
    %411 = arith.addi %410, %c3_i32 : i32
    %412 = arith.index_cast %411 : i32 to index
    %413 = memref.load %arg1[%412] : memref<8xi32, #tpu.memory_space<smem>>
    %414 = vector.broadcast %413 : i32 to vector<1x8xi32>
    %415 = arith.cmpi eq, %385, %414 : vector<1x8xi32>
    %416 = arith.extui %415 : vector<1x8xi1> to vector<1x8xi32>
    %417 = arith.sitofp %416 : vector<1x8xi32> to vector<1x8xf32>
    %418 = tpu.concatenate %393, %401, %409, %417 in 0 : vector<1x8xf32>, vector<1x8xf32>, vector<1x8xf32>, vector<1x8xf32> -> vector<4x8xf32>
    %cst_97 = arith.constant dense<0.000000e+00> : vector<4x32xf32>
    %419 = tpu.matmul %418, %384, %cst_97 {dimension_numbers = #tpu.dot_dimension_numbers<[1], [0], [0], [1], [0, 0, 1, 1], [], []>} : vector<4x8xf32>, vector<8x32xf32>, vector<4x32xf32> -> vector<4x32xf32>
    %c0_98 = arith.constant 0 : index
    %c0_99 = arith.constant 0 : index
    %420 = vector.load %arg17[%c0_98, %c0_99] : memref<32x32xf32, #tpu.memory_space<vmem>>, vector<32x32xf32>
    %cst_100 = arith.constant dense<0.000000e+00> : vector<4x32xf32>
    %421 = tpu.matmul %419, %420, %cst_100 {dimension_numbers = #tpu.dot_dimension_numbers<[1], [0], [0], [1], [0, 0, 1, 1], [], []>} : vector<4x32xf32>, vector<32x32xf32>, vector<4x32xf32> -> vector<4x32xf32>
    %c0_101 = arith.constant 0 : index
    %c0_102 = arith.constant 0 : index
    %422 = vector.load %arg16[%c0_101, %c0_102] : memref<64x32xf32, #tpu.memory_space<vmem>>, vector<64x32xf32>
    %cst_103 = arith.constant dense<0.000000e+00> : vector<8x32xf32>
    %423 = tpu.matmul %366, %422, %cst_103 {dimension_numbers = #tpu.dot_dimension_numbers<[1], [0], [0], [1], [0, 0, 1, 1], [], []>} : vector<8x64xf32>, vector<64x32xf32>, vector<8x32xf32> -> vector<8x32xf32>
    %c0_104 = arith.constant 0 : index
    %c0_105 = arith.constant 0 : index
    %424 = vector.load %arg18[%c0_104, %c0_105] : memref<1x32xf32, #tpu.memory_space<vmem>>, vector<1x32xf32>
    %425 = vector.broadcast %424 : vector<1x32xf32> to vector<8x32xf32>
    %426 = arith.addf %423, %425 : vector<8x32xf32>
    %427 = vector.extract_strided_slice %426 {offsets = [0, 0], sizes = [4, 32], strides = [1, 1]} : vector<8x32xf32> to vector<4x32xf32>
    %428 = arith.addf %427, %421 : vector<4x32xf32>
    %cst_106 = arith.constant 0.000000e+00 : f32
    %429 = vector.broadcast %cst_106 : f32 to vector<4x32xf32>
    %430 = arith.maximumf %428, %429 : vector<4x32xf32>
    %431 = vector.extract_strided_slice %426 {offsets = [4, 0], sizes = [4, 32], strides = [1, 1]} : vector<8x32xf32> to vector<4x32xf32>
    %432 = arith.addf %431, %421 : vector<4x32xf32>
    %cst_107 = arith.constant 0.000000e+00 : f32
    %433 = vector.broadcast %cst_107 : f32 to vector<4x32xf32>
    %434 = arith.maximumf %432, %433 : vector<4x32xf32>
    %435 = arith.subf %430, %434 : vector<4x32xf32>
    %c0_108 = arith.constant 0 : index
    %c0_109 = arith.constant 0 : index
    %436 = vector.load %arg19[%c0_108, %c0_109] : memref<32x32xf32, #tpu.memory_space<vmem>>, vector<32x32xf32>
    %cst_110 = arith.constant dense<0.000000e+00> : vector<4x32xf32>
    %437 = tpu.matmul %435, %436, %cst_110 {dimension_numbers = #tpu.dot_dimension_numbers<[1], [0], [0], [1], [0, 0, 1, 1], [], []>} : vector<4x32xf32>, vector<32x32xf32>, vector<4x32xf32> -> vector<4x32xf32>
    %c0_111 = arith.constant 0 : index
    %c0_112 = arith.constant 0 : index
    %438 = vector.load %arg20[%c0_111, %c0_112] : memref<1x32xf32, #tpu.memory_space<vmem>>, vector<1x32xf32>
    %439 = vector.broadcast %438 : vector<1x32xf32> to vector<4x32xf32>
    %440 = arith.addf %437, %439 : vector<4x32xf32>
    %cst_113 = arith.constant 0.000000e+00 : f32
    %441 = vector.broadcast %cst_113 : f32 to vector<4x32xf32>
    %442 = arith.maximumf %440, %441 : vector<4x32xf32>
    %c0_114 = arith.constant 0 : index
    %c0_115 = arith.constant 0 : index
    %443 = vector.load %arg21[%c0_114, %c0_115] : memref<32x1xf32, #tpu.memory_space<vmem>>, vector<32x1xf32>
    %cst_116 = arith.constant dense<0.000000e+00> : vector<4x1xf32>
    %444 = tpu.matmul %442, %443, %cst_116 {dimension_numbers = #tpu.dot_dimension_numbers<[1], [0], [0], [1], [0, 0, 1, 1], [], []>} : vector<4x32xf32>, vector<32x1xf32>, vector<4x1xf32> -> vector<4x1xf32>
    %c0_117 = arith.constant 0 : index
    %c0_118 = arith.constant 0 : index
    %445 = vector.load %arg22[%c0_117, %c0_118] : memref<1x1xf32, #tpu.memory_space<vmem>>, vector<1x1xf32>
    %446 = vector.broadcast %445 : vector<1x1xf32> to vector<4x1xf32>
    %447 = arith.addf %444, %446 : vector<4x1xf32>
    %448 = arith.negf %447 : vector<4x1xf32>
    %449 = math.exp %448 : vector<4x1xf32>
    %cst_119 = arith.constant 1.000000e+00 : f32
    %450 = vector.broadcast %cst_119 : f32 to vector<4x1xf32>
    %451 = arith.addf %450, %449 : vector<4x1xf32>
    %452 = arith.divf %450, %451 : vector<4x1xf32>
    %453 = vector.shape_cast %452 : vector<4x1xf32> to vector<1x4x1xf32>
    %c0_120 = arith.constant 0 : index
    %c0_121 = arith.constant 0 : index
    %c0_122 = arith.constant 0 : index
    %454 = vector.load %arg23[%c0_120, %c0_121, %c0_122] : memref<1x4x1xf32, #tpu.memory_space<vmem>>, vector<1x4x1xf32>
    tpu.vector_store %arg23[%c0_120, %c0_121, %c0_122], %453 {strides = array<i32>} : memref<1x4x1xf32, #tpu.memory_space<vmem>>, vector<1x4x1xf32>,
    return
  }
  func.func @transform_0(%arg0: i32, %arg1: memref<8xi32, #tpu.memory_space<smem>>) -> (i32, i32) {
    %c0_i32 = arith.constant 0 : i32
    %c0_i32_0 = arith.constant 0 : i32
    return %arg0, %c0_i32 : i32, i32
  }
  func.func @transform_1(%arg0: i32, %arg1: memref<8xi32, #tpu.memory_space<smem>>) -> (i32, i32) {
    %c0_i32 = arith.constant 0 : i32
    %c0_i32_0 = arith.constant 0 : i32
    %c0_i32_1 = arith.constant 0 : i32
    return %c0_i32, %c0_i32_0 : i32, i32
  }
  func.func @transform_2(%arg0: i32, %arg1: memref<8xi32, #tpu.memory_space<smem>>) -> (i32, i32) {
    %c0_i32 = arith.constant 0 : i32
    %c0_i32_0 = arith.constant 0 : i32
    %c0_i32_1 = arith.constant 0 : i32
    return %c0_i32, %c0_i32_0 : i32, i32
  }
  func.func @transform_3(%arg0: i32, %arg1: memref<8xi32, #tpu.memory_space<smem>>) -> (i32, i32) {
    %c0_i32 = arith.constant 0 : i32
    %c0_i32_0 = arith.constant 0 : i32
    %c0_i32_1 = arith.constant 0 : i32
    return %c0_i32, %c0_i32_0 : i32, i32
  }
  func.func @transform_4(%arg0: i32, %arg1: memref<8xi32, #tpu.memory_space<smem>>) -> (i32, i32) {
    %c0_i32 = arith.constant 0 : i32
    %c0_i32_0 = arith.constant 0 : i32
    %c0_i32_1 = arith.constant 0 : i32
    return %c0_i32, %c0_i32_0 : i32, i32
  }
  func.func @transform_5(%arg0: i32, %arg1: memref<8xi32, #tpu.memory_space<smem>>) -> (i32, i32) {
    %c0_i32 = arith.constant 0 : i32
    %c0_i32_0 = arith.constant 0 : i32
    %c0_i32_1 = arith.constant 0 : i32
    return %c0_i32, %c0_i32_0 : i32, i32
  }
  func.func @transform_6(%arg0: i32, %arg1: memref<8xi32, #tpu.memory_space<smem>>) -> (i32, i32) {
    %c0_i32 = arith.constant 0 : i32
    %c0_i32_0 = arith.constant 0 : i32
    %c0_i32_1 = arith.constant 0 : i32
    return %c0_i32, %c0_i32_0 : i32, i32
  }
  func.func @transform_7(%arg0: i32, %arg1: memref<8xi32, #tpu.memory_space<smem>>) -> (i32, i32) {
    %c0_i32 = arith.constant 0 : i32
    %c0_i32_0 = arith.constant 0 : i32
    %c0_i32_1 = arith.constant 0 : i32
    return %c0_i32, %c0_i32_0 : i32, i32
  }
  func.func @transform_8(%arg0: i32, %arg1: memref<8xi32, #tpu.memory_space<smem>>) -> (i32, i32) {
    %c0_i32 = arith.constant 0 : i32
    %c0_i32_0 = arith.constant 0 : i32
    %c0_i32_1 = arith.constant 0 : i32
    return %c0_i32, %c0_i32_0 : i32, i32
  }
  func.func @transform_9(%arg0: i32, %arg1: memref<8xi32, #tpu.memory_space<smem>>) -> (i32, i32) {
    %c0_i32 = arith.constant 0 : i32
    %c0_i32_0 = arith.constant 0 : i32
    %c0_i32_1 = arith.constant 0 : i32
    return %c0_i32, %c0_i32_0 : i32, i32
  }
  func.func @transform_10(%arg0: i32, %arg1: memref<8xi32, #tpu.memory_space<smem>>) -> (i32, i32) {
    %c0_i32 = arith.constant 0 : i32
    %c0_i32_0 = arith.constant 0 : i32
    %c0_i32_1 = arith.constant 0 : i32
    return %c0_i32, %c0_i32_0 : i32, i32
  }
  func.func @transform_11(%arg0: i32, %arg1: memref<8xi32, #tpu.memory_space<smem>>) -> (i32, i32) {
    %c0_i32 = arith.constant 0 : i32
    %c0_i32_0 = arith.constant 0 : i32
    %c0_i32_1 = arith.constant 0 : i32
    return %c0_i32, %c0_i32_0 : i32, i32
  }
  func.func @transform_12(%arg0: i32, %arg1: memref<8xi32, #tpu.memory_space<smem>>) -> (i32, i32) {
    %c0_i32 = arith.constant 0 : i32
    %c0_i32_0 = arith.constant 0 : i32
    %c0_i32_1 = arith.constant 0 : i32
    return %c0_i32, %c0_i32_0 : i32, i32
  }
  func.func @transform_13(%arg0: i32, %arg1: memref<8xi32, #tpu.memory_space<smem>>) -> (i32, i32) {
    %c0_i32 = arith.constant 0 : i32
    %c0_i32_0 = arith.constant 0 : i32
    %c0_i32_1 = arith.constant 0 : i32
    return %c0_i32, %c0_i32_0 : i32, i32
  }
  func.func @transform_14(%arg0: i32, %arg1: memref<8xi32, #tpu.memory_space<smem>>) -> (i32, i32) {
    %c0_i32 = arith.constant 0 : i32
    %c0_i32_0 = arith.constant 0 : i32
    %c0_i32_1 = arith.constant 0 : i32
    return %c0_i32, %c0_i32_0 : i32, i32
  }
  func.func @transform_15(%arg0: i32, %arg1: memref<8xi32, #tpu.memory_space<smem>>) -> (i32, i32) {
    %c0_i32 = arith.constant 0 : i32
    %c0_i32_0 = arith.constant 0 : i32
    %c0_i32_1 = arith.constant 0 : i32
    return %c0_i32, %c0_i32_0 : i32, i32
  }
  func.func @transform_16(%arg0: i32, %arg1: memref<8xi32, #tpu.memory_space<smem>>) -> (i32, i32) {
    %c0_i32 = arith.constant 0 : i32
    %c0_i32_0 = arith.constant 0 : i32
    %c0_i32_1 = arith.constant 0 : i32
    return %c0_i32, %c0_i32_0 : i32, i32
  }
  func.func @transform_17(%arg0: i32, %arg1: memref<8xi32, #tpu.memory_space<smem>>) -> (i32, i32) {
    %c0_i32 = arith.constant 0 : i32
    %c0_i32_0 = arith.constant 0 : i32
    %c0_i32_1 = arith.constant 0 : i32
    return %c0_i32, %c0_i32_0 : i32, i32
  }
  func.func @transform_18(%arg0: i32, %arg1: memref<8xi32, #tpu.memory_space<smem>>) -> (i32, i32) {
    %c0_i32 = arith.constant 0 : i32
    %c0_i32_0 = arith.constant 0 : i32
    %c0_i32_1 = arith.constant 0 : i32
    return %c0_i32, %c0_i32_0 : i32, i32
  }
  func.func @transform_19(%arg0: i32, %arg1: memref<8xi32, #tpu.memory_space<smem>>) -> (i32, i32) {
    %c0_i32 = arith.constant 0 : i32
    %c0_i32_0 = arith.constant 0 : i32
    %c0_i32_1 = arith.constant 0 : i32
    return %c0_i32, %c0_i32_0 : i32, i32
  }
  func.func @transform_20(%arg0: i32, %arg1: memref<8xi32, #tpu.memory_space<smem>>) -> (i32, i32) {
    %c0_i32 = arith.constant 0 : i32
    %c0_i32_0 = arith.constant 0 : i32
    %c0_i32_1 = arith.constant 0 : i32
    return %c0_i32, %c0_i32_0 : i32, i32
  }
  func.func @transform_21(%arg0: i32, %arg1: memref<8xi32, #tpu.memory_space<smem>>) -> (i32, i32, i32) {
    %c0_i32 = arith.constant 0 : i32
    %c0_i32_0 = arith.constant 0 : i32
    %c0_i32_1 = arith.constant 0 : i32
    return %arg0, %c0_i32, %c0_i32_0 : i32, i32, i32
  }
}

</mosaic_0001>

<llo_original>
// kernel: pathogenic_prediction_model.1
$region0: #{pathogenic_prediction_model.1}
  #allocation0 [shape = 'u32[]', space=smem, size = 0x4, offset = 0x4, fixed_abs, tag = 'smem constant byte address 0x4 - core index']
  #allocation1 [shape = 'u32[72,128]{1,0:T(1,128)}', space=vmem, size = 0x9000, scoped, tag = 'internal scratch']
  #allocation2 [shape = 's32[1]{0}', space=sflag, size = 0x4, scoped, tag = 'scoped memory for pathogenic_prediction_model.1']
  #allocation3 [shape = 'u8[512]{0}', space=smem, size = 0x200, scoped, tag = 'prefetched SMEM operand 0']
  #allocation4 [shape = 'f32[1,1]{1,0:T(1,128)S(1)}', space=vmem, size = 0x200, scoped, tag = 'scoped memory for pathogenic_prediction_model.1']
  %s0 = inlined_call_operand.vmem [shape: s32[8], index: 0, kind: input, shape index: {}]
  %s1 = inlined_call_operand.vmem [shape: f32[896,32], index: 1, kind: input, shape index: {}]
  %s2 = inlined_call_operand.vmem [shape: f32[32,32], index: 2, kind: input, shape index: {}]
  %s3 = inlined_call_operand.vmem [shape: f32[1,32], index: 3, kind: input, shape index: {}]
  %s4 = inlined_call_operand.vmem [shape: f32[32,256], index: 4, kind: input, shape index: {}]
  %s5 = inlined_call_operand.vmem [shape: f32[1,128], index: 5, kind: input, shape index: {}]
  %s6 = inlined_call_operand.vmem [shape: f32[32,128], index: 6, kind: input, shape index: {}]
  %s7 = inlined_call_operand.vmem [shape: f32[448,64], index: 7, kind: input, shape index: {}]
  %s8 = inlined_call_operand.vmem [shape: f32[1,64], index: 8, kind: input, shape index: {}]
  %s9 = inlined_call_operand.vmem [shape: f32[8,16], index: 9, kind: input, shape index: {}]
  %s10 = inlined_call_operand.vmem [shape: f32[8,8], index: 10, kind: input, shape index: {}]
  %s11 = inlined_call_operand.vmem [shape: f32[16,32], index: 11, kind: input, shape index: {}]
  %s12 = inlined_call_operand.vmem [shape: f32[1,32], index: 12, kind: input, shape index: {}]
  %s13 = inlined_call_operand.vmem [shape: f32[32,32], index: 13, kind: input, shape index: {}]
  %s14 = inlined_call_operand.vmem [shape: f32[1,32], index: 14, kind: input, shape index: {}]
  %s15 = inlined_call_operand.vmem [shape: f32[64,32], index: 15, kind: input, shape index: {}]
  %s16 = inlined_call_operand.vmem [shape: f32[32,32], index: 16, kind: input, shape index: {}]
  %s17 = inlined_call_operand.vmem [shape: f32[1,32], index: 17, kind: input, shape index: {}]
  %s18 = inlined_call_operand.vmem [shape: f32[32,32], index: 18, kind: input, shape index: {}]
  %s19 = inlined_call_operand.vmem [shape: f32[1,32], index: 19, kind: input, shape index: {}]
  %s20 = inlined_call_operand.vmem [shape: f32[32,1], index: 20, kind: input, shape index: {}]
  %s21 = inlined_call_operand.<no memory space> [shape: f32[1,1], index: 21, kind: input, shape index: {}]
  %s22 = inlined_call_operand.vmem [shape: f32[2,4,1], index: 22, kind: output, shape index: {}]
  %s23 = sld [smem:[#allocation0]]
  $region117: #{pathogenic_prediction_model.1} parent=0
    _
  %s25 = ssub.s32 1, %s23
  %s26 = scalar_select 0, %s25, %s23
  %s28 = sshll.u32 %s0, 4
  %s29 = int_to_ptr.vmem [resolvable:$true] %s28
  %31 = dma.vmem_to_smem %s29, 16, [#allocation3], [#allocation2]
  %v32 = vstv %s21
  %33 = vst [vmem:[#allocation4] sm:$0x1] %v32
  %35 = dma.done [#allocation2], 16
  %36 = sfence
  loop: start=0, step=1, limit=4
  $region2: #{pathogenic_prediction_model.1} parent=0 // loop_pre_header
    _
  $region3: #{pathogenic_prediction_model.1} parent=0 // loop_header
    %s38 = sphi 0, %s42
    %p39 = scmp.ge.s32.totalorder %s38, 4
    %s48 = sphi 0, %s50
    %s51 = sphi 0, %s48
    %s52 = sphi 0, %s51
    %s68 = sphi 0, %s52
    %s72 = sphi 0, %s72
    %s74 = sphi 0, %s72
    %s75 = sphi 0, %s74
    %s89 = sphi 0, %s75
    %s93 = sphi 0, %s93
    %s95 = sphi 0, %s93
    %s96 = sphi 0, %s95
    %s110 = sphi 0, %s96
    %s114 = sphi 0, %s114
    %s116 = sphi 0, %s114
    %s117 = sphi 0, %s116
    %s131 = sphi 0, %s117
    %s135 = sphi 0, %s135
    %s137 = sphi 0, %s135
    %s138 = sphi 0, %s137
    %s152 = sphi 0, %s138
    %s156 = sphi 0, %s156
    %s158 = sphi 0, %s156
    %s159 = sphi 0, %s158
    %s173 = sphi 0, %s159
    %s177 = sphi 0, %s177
    %s179 = sphi 0, %s177
    %s180 = sphi 0, %s179
    %s194 = sphi 0, %s180
    %s198 = sphi 0, %s198
    %s200 = sphi 0, %s198
    %s201 = sphi 0, %s200
    %s215 = sphi 0, %s201
    %s219 = sphi 0, %s219
    %s221 = sphi 0, %s219
    %s222 = sphi 0, %s221
    %s236 = sphi 0, %s222
    %s240 = sphi 0, %s240
    %s242 = sphi 0, %s240
    %s243 = sphi 0, %s242
    %s257 = sphi 0, %s243
    %s261 = sphi 0, %s261
    %s263 = sphi 0, %s261
    %s264 = sphi 0, %s263
    %s278 = sphi 0, %s264
    %s282 = sphi 0, %s282
    %s284 = sphi 0, %s282
    %s285 = sphi 0, %s284
    %s299 = sphi 0, %s285
    %s303 = sphi 0, %s303
    %s305 = sphi 0, %s303
    %s306 = sphi 0, %s305
    %s320 = sphi 0, %s306
    %s324 = sphi 0, %s324
    %s326 = sphi 0, %s324
    %s327 = sphi 0, %s326
    %s341 = sphi 0, %s327
    %s345 = sphi 0, %s345
    %s347 = sphi 0, %s345
    %s348 = sphi 0, %s347
    %s362 = sphi 0, %s348
    %s366 = sphi 0, %s366
    %s368 = sphi 0, %s366
    %s369 = sphi 0, %s368
    %s383 = sphi 0, %s369
    %s387 = sphi 0, %s387
    %s389 = sphi 0, %s387
    %s390 = sphi 0, %s389
    %s404 = sphi 0, %s390
    %s408 = sphi 0, %s408
    %s410 = sphi 0, %s408
    %s411 = sphi 0, %s410
    %s425 = sphi 0, %s411
    %s429 = sphi 0, %s429
    %s431 = sphi 0, %s429
    %s432 = sphi 0, %s431
    %s446 = sphi 0, %s432
    %s450 = sphi 0, %s450
    %s452 = sphi 0, %s450
    %s453 = sphi 0, %s452
    %s467 = sphi 0, %s453
    %s471 = sphi 0, %s471
    %s473 = sphi 0, %s471
    %s474 = sphi 0, %s473
    %s488 = sphi 0, %s474
    %s494 = sphi 0, %s496
    %s497 = sphi 0, %s494
    %s498 = sphi 0, %s497
    %s514 = sphi 0, %s498
  $region4: #{pathogenic_prediction_model.1} parent=0 // loop_header_branch
    %41 = sbr.rel (%p39) target = $region8
  $region5: #{pathogenic_prediction_model.1} parent=0 // loop_body
    %s43 = ssub.s32 %s38, 1
    %s44 = ssub.s32 %s38, 2
    %s45 = sadd.s32 %s38, 1
    %s46 = ssub.s32 %s38, %s45
    %p47 = scmp.eq.s32.totalorder %s46, 0
    %s49 = sadd.s32 %s48, 1
    %s50 = scalar_select %p47, %s48, %s49
    %p53 = pneg %p47
    %p54 = scmp.eq.s32.totalorder %s38, 1
    %p55 = por %p53, %p54
    %p56 = scmp.ne.s32.totalorder %s48, %s51
    %p57 = scmp.eq.s32.totalorder %s38, 0
    %p58 = por %p56, %p57
    %p59 = scmp.ne.s32.totalorder %s48, %s51
    %p60 = scmp.eq.s32.totalorder %s43, 1
    %p61 = por %p59, %p60
    %p62 = scmp.ne.s32.totalorder %s51, %s52
    %p63 = scmp.eq.s32.totalorder %s43, 0
    %p64 = por %p62, %p63
    %p65 = scmp.ne.s32.totalorder %s51, %s52
    %p66 = scmp.eq.s32.totalorder %s44, 1
    %p67 = por %p65, %p66
    %p69 = scmp.ne.s32.totalorder %s52, %s68
    %p70 = scmp.eq.s32.totalorder %s44, 0
    %p71 = por %p69, %p70
    %s73 = sadd.s32 %s72, 1
    %p76 = scmp.eq.s32.totalorder %s38, 1
    %p77 = scmp.ne.s32.totalorder %s72, %s74
    %p78 = scmp.eq.s32.totalorder %s38, 0
    %p79 = por %p77, %p78
    %p80 = scmp.ne.s32.totalorder %s72, %s74
    %p81 = scmp.eq.s32.totalorder %s43, 1
    %p82 = por %p80, %p81
    %p83 = scmp.ne.s32.totalorder %s74, %s75
    %p84 = scmp.eq.s32.totalorder %s43, 0
    %p85 = por %p83, %p84
    %p86 = scmp.ne.s32.totalorder %s74, %s75
    %p87 = scmp.eq.s32.totalorder %s44, 1
    %p88 = por %p86, %p87
    %p90 = scmp.ne.s32.totalorder %s75, %s89
    %p91 = scmp.eq.s32.totalorder %s44, 0
    %p92 = por %p90, %p91
    %s94 = sadd.s32 %s93, 1
    %p97 = scmp.eq.s32.totalorder %s38, 1
    %p98 = scmp.ne.s32.totalorder %s93, %s95
    %p99 = scmp.eq.s32.totalorder %s38, 0
    %p100 = por %p98, %p99
    %p101 = scmp.ne.s32.totalorder %s93, %s95
    %p102 = scmp.eq.s32.totalorder %s43, 1
    %p103 = por %p101, %p102
    %p104 = scmp.ne.s32.totalorder %s95, %s96
    %p105 = scmp.eq.s32.totalorder %s43, 0
    %p106 = por %p104, %p105
    %p107 = scmp.ne.s32.totalorder %s95, %s96
    %p108 = scmp.eq.s32.totalorder %s44, 1
    %p109 = por %p107, %p108
    %p111 = scmp.ne.s32.totalorder %s96, %s110
    %p112 = scmp.eq.s32.totalorder %s44, 0
    %p113 = por %p111, %p112
    %s115 = sadd.s32 %s114, 1
    %p118 = scmp.eq.s32.totalorder %s38, 1
    %p119 = scmp.ne.s32.totalorder %s114, %s116
    %p120 = scmp.eq.s32.totalorder %s38, 0
    %p121 = por %p119, %p120
    %p122 = scmp.ne.s32.totalorder %s114, %s116
    %p123 = scmp.eq.s32.totalorder %s43, 1
    %p124 = por %p122, %p123
    %p125 = scmp.ne.s32.totalorder %s116, %s117
    %p126 = scmp.eq.s32.totalorder %s43, 0
    %p127 = por %p125, %p126
    %p128 = scmp.ne.s32.totalorder %s116, %s117
    %p129 = scmp.eq.s32.totalorder %s44, 1
    %p130 = por %p128, %p129
    %p132 = scmp.ne.s32.totalorder %s117, %s131
    %p133 = scmp.eq.s32.totalorder %s44, 0
    %p134 = por %p132, %p133
    %s136 = sadd.s32 %s135, 1
    %p139 = scmp.eq.s32.totalorder %s38, 1
    %p140 = scmp.ne.s32.totalorder %s135, %s137
    %p141 = scmp.eq.s32.totalorder %s38, 0
    %p142 = por %p140, %p141
    %p143 = scmp.ne.s32.totalorder %s135, %s137
    %p144 = scmp.eq.s32.totalorder %s43, 1
    %p145 = por %p143, %p144
    %p146 = scmp.ne.s32.totalorder %s137, %s138
    %p147 = scmp.eq.s32.totalorder %s43, 0
    %p148 = por %p146, %p147
    %p149 = scmp.ne.s32.totalorder %s137, %s138
    %p150 = scmp.eq.s32.totalorder %s44, 1
    %p151 = por %p149, %p150
    %p153 = scmp.ne.s32.totalorder %s138, %s152
    %p154 = scmp.eq.s32.totalorder %s44, 0
    %p155 = por %p153, %p154
    %s157 = sadd.s32 %s156, 1
    %p160 = scmp.eq.s32.totalorder %s38, 1
    %p161 = scmp.ne.s32.totalorder %s156, %s158
    %p162 = scmp.eq.s32.totalorder %s38, 0
    %p163 = por %p161, %p162
    %p164 = scmp.ne.s32.totalorder %s156, %s158
    %p165 = scmp.eq.s32.totalorder %s43, 1
    %p166 = por %p164, %p165
    %p167 = scmp.ne.s32.totalorder %s158, %s159
    %p168 = scmp.eq.s32.totalorder %s43, 0
    %p169 = por %p167, %p168
    %p170 = scmp.ne.s32.totalorder %s158, %s159
    %p171 = scmp.eq.s32.totalorder %s44, 1
    %p172 = por %p170, %p171
    %p174 = scmp.ne.s32.totalorder %s159, %s173
    %p175 = scmp.eq.s32.totalorder %s44, 0
    %p176 = por %p174, %p175
    %s178 = sadd.s32 %s177, 1
    %p181 = scmp.eq.s32.totalorder %s38, 1
    %p182 = scmp.ne.s32.totalorder %s177, %s179
    %p183 = scmp.eq.s32.totalorder %s38, 0
    %p184 = por %p182, %p183
    %p185 = scmp.ne.s32.totalorder %s177, %s179
    %p186 = scmp.eq.s32.totalorder %s43, 1
    %p187 = por %p185, %p186
    %p188 = scmp.ne.s32.totalorder %s179, %s180
    %p189 = scmp.eq.s32.totalorder %s43, 0
    %p190 = por %p188, %p189
    %p191 = scmp.ne.s32.totalorder %s179, %s180
    %p192 = scmp.eq.s32.totalorder %s44, 1
    %p193 = por %p191, %p192
    %p195 = scmp.ne.s32.totalorder %s180, %s194
    %p196 = scmp.eq.s32.totalorder %s44, 0
    %p197 = por %p195, %p196
    %s199 = sadd.s32 %s198, 1
    %p202 = scmp.eq.s32.totalorder %s38, 1
    %p203 = scmp.ne.s32.totalorder %s198, %s200
    %p204 = scmp.eq.s32.totalorder %s38, 0
    %p205 = por %p203, %p204
    %p206 = scmp.ne.s32.totalorder %s198, %s200
    %p207 = scmp.eq.s32.totalorder %s43, 1
    %p208 = por %p206, %p207
    %p209 = scmp.ne.s32.totalorder %s200, %s201
    %p210 = scmp.eq.s32.totalorder %s43, 0
    %p211 = por %p209, %p210
    %p212 = scmp.ne.s32.totalorder %s200, %s201
    %p213 = scmp.eq.s32.totalorder %s44, 1
    %p214 = por %p212, %p213
    %p216 = scmp.ne.s32.totalorder %s201, %s215
    %p217 = scmp.eq.s32.totalorder %s44, 0
    %p218 = por %p216, %p217
    %s220 = sadd.s32 %s219, 1
    %p223 = scmp.eq.s32.totalorder %s38, 1
    %p224 = scmp.ne.s32.totalorder %s219, %s221
    %p225 = scmp.eq.s32.totalorder %s38, 0
    %p226 = por %p224, %p225
    %p227 = scmp.ne.s32.totalorder %s219, %s221
    %p228 = scmp.eq.s32.totalorder %s43, 1
    %p229 = por %p227, %p228
    %p230 = scmp.ne.s32.totalorder %s221, %s222
    %p231 = scmp.eq.s32.totalorder %s43, 0
    %p232 = por %p230, %p231
    %p233 = scmp.ne.s32.totalorder %s221, %s222
    %p234 = scmp.eq.s32.totalorder %s44, 1
    %p235 = por %p233, %p234
    %p237 = scmp.ne.s32.totalorder %s222, %s236
    %p238 = scmp.eq.s32.totalorder %s44, 0
    %p239 = por %p237, %p238
    %s241 = sadd.s32 %s240, 1
    %p244 = scmp.eq.s32.totalorder %s38, 1
    %p245 = scmp.ne.s32.totalorder %s240, %s242
    %p246 = scmp.eq.s32.totalorder %s38, 0
    %p247 = por %p245, %p246
    %p248 = scmp.ne.s32.totalorder %s240, %s242
    %p249 = scmp.eq.s32.totalorder %s43, 1
    %p250 = por %p248, %p249
    %p251 = scmp.ne.s32.totalorder %s242, %s243
    %p252 = scmp.eq.s32.totalorder %s43, 0
    %p253 = por %p251, %p252
    %p254 = scmp.ne.s32.totalorder %s242, %s243
    %p255 = scmp.eq.s32.totalorder %s44, 1
    %p256 = por %p254, %p255
    %p258 = scmp.ne.s32.totalorder %s243, %s257
    %p259 = scmp.eq.s32.totalorder %s44, 0
    %p260 = por %p258, %p259
    %s262 = sadd.s32 %s261, 1
    %p265 = scmp.eq.s32.totalorder %s38, 1
    %p266 = scmp.ne.s32.totalorder %s261, %s263
    %p267 = scmp.eq.s32.totalorder %s38, 0
    %p268 = por %p266, %p267
    %p269 = scmp.ne.s32.totalorder %s261, %s263
    %p270 = scmp.eq.s32.totalorder %s43, 1
    %p271 = por %p269, %p270
    %p272 = scmp.ne.s32.totalorder %s263, %s264
    %p273 = scmp.eq.s32.totalorder %s43, 0
    %p274 = por %p272, %p273
    %p275 = scmp.ne.s32.totalorder %s263, %s264
    %p276 = scmp.eq.s32.totalorder %s44, 1
    %p277 = por %p275, %p276
    %p279 = scmp.ne.s32.totalorder %s264, %s278
    %p280 = scmp.eq.s32.totalorder %s44, 0
    %p281 = por %p279, %p280
    %s283 = sadd.s32 %s282, 1
    %p286 = scmp.eq.s32.totalorder %s38, 1
    %p287 = scmp.ne.s32.totalorder %s282, %s284
    %p288 = scmp.eq.s32.totalorder %s38, 0
    %p289 = por %p287, %p288
    %p290 = scmp.ne.s32.totalorder %s282, %s284
    %p291 = scmp.eq.s32.totalorder %s43, 1
    %p292 = por %p290, %p291
    %p293 = scmp.ne.s32.totalorder %s284, %s285
    %p294 = scmp.eq.s32.totalorder %s43, 0
    %p295 = por %p293, %p294
    %p296 = scmp.ne.s32.totalorder %s284, %s285
    %p297 = scmp.eq.s32.totalorder %s44, 1
    %p298 = por %p296, %p297
    %p300 = scmp.ne.s32.totalorder %s285, %s299
    %p301 = scmp.eq.s32.totalorder %s44, 0
    %p302 = por %p300, %p301
    %s304 = sadd.s32 %s303, 1
    %p307 = scmp.eq.s32.totalorder %s38, 1
    %p308 = scmp.ne.s32.totalorder %s303, %s305
    %p309 = scmp.eq.s32.totalorder %s38, 0
    %p310 = por %p308, %p309
    %p311 = scmp.ne.s32.totalorder %s303, %s305
    %p312 = scmp.eq.s32.totalorder %s43, 1
    %p313 = por %p311, %p312
    %p314 = scmp.ne.s32.totalorder %s305, %s306
    %p315 = scmp.eq.s32.totalorder %s43, 0
    %p316 = por %p314, %p315
    %p317 = scmp.ne.s32.totalorder %s305, %s306
    %p318 = scmp.eq.s32.totalorder %s44, 1
    %p319 = por %p317, %p318
    %p321 = scmp.ne.s32.totalorder %s306, %s320
    %p322 = scmp.eq.s32.totalorder %s44, 0
    %p323 = por %p321, %p322
    %s325 = sadd.s32 %s324, 1
    %p328 = scmp.eq.s32.totalorder %s38, 1
    %p329 = scmp.ne.s32.totalorder %s324, %s326
    %p330 = scmp.eq.s32.totalorder %s38, 0
    %p331 = por %p329, %p330
    %p332 = scmp.ne.s32.totalorder %s324, %s326
    %p333 = scmp.eq.s32.totalorder %s43, 1
    %p334 = por %p332, %p333
    %p335 = scmp.ne.s32.totalorder %s326, %s327
    %p336 = scmp.eq.s32.totalorder %s43, 0
    %p337 = por %p335, %p336
    %p338 = scmp.ne.s32.totalorder %s326, %s327
    %p339 = scmp.eq.s32.totalorder %s44, 1
    %p340 = por %p338, %p339
    %p342 = scmp.ne.s32.totalorder %s327, %s341
    %p343 = scmp.eq.s32.totalorder %s44, 0
    %p344 = por %p342, %p343
    %s346 = sadd.s32 %s345, 1
    %p349 = scmp.eq.s32.totalorder %s38, 1
    %p350 = scmp.ne.s32.totalorder %s345, %s347
    %p351 = scmp.eq.s32.totalorder %s38, 0
    %p352 = por %p350, %p351
    %p353 = scmp.ne.s32.totalorder %s345, %s347
    %p354 = scmp.eq.s32.totalorder %s43, 1
    %p355 = por %p353, %p354
    %p356 = scmp.ne.s32.totalorder %s347, %s348
    %p357 = scmp.eq.s32.totalorder %s43, 0
    %p358 = por %p356, %p357
    %p359 = scmp.ne.s32.totalorder %s347, %s348
    %p360 = scmp.eq.s32.totalorder %s44, 1
    %p361 = por %p359, %p360
    %p363 = scmp.ne.s32.totalorder %s348, %s362
    %p364 = scmp.eq.s32.totalorder %s44, 0
    %p365 = por %p363, %p364
    %s367 = sadd.s32 %s366, 1
    %p370 = scmp.eq.s32.totalorder %s38, 1
    %p371 = scmp.ne.s32.totalorder %s366, %s368
    %p372 = scmp.eq.s32.totalorder %s38, 0
    %p373 = por %p371, %p372
    %p374 = scmp.ne.s32.totalorder %s366, %s368
    %p375 = scmp.eq.s32.totalorder %s43, 1
    %p376 = por %p374, %p375
    %p377 = scmp.ne.s32.totalorder %s368, %s369
    %p378 = scmp.eq.s32.totalorder %s43, 0
    %p379 = por %p377, %p378
    %p380 = scmp.ne.s32.totalorder %s368, %s369
    %p381 = scmp.eq.s32.totalorder %s44, 1
    %p382 = por %p380, %p381
    %p384 = scmp.ne.s32.totalorder %s369, %s383
    %p385 = scmp.eq.s32.totalorder %s44, 0
    %p386 = por %p384, %p385
    %s388 = sadd.s32 %s387, 1
    %p391 = scmp.eq.s32.totalorder %s38, 1
    %p392 = scmp.ne.s32.totalorder %s387, %s389
    %p393 = scmp.eq.s32.totalorder %s38, 0
    %p394 = por %p392, %p393
    %p395 = scmp.ne.s32.totalorder %s387, %s389
    %p396 = scmp.eq.s32.totalorder %s43, 1
    %p397 = por %p395, %p396
    %p398 = scmp.ne.s32.totalorder %s389, %s390
    %p399 = scmp.eq.s32.totalorder %s43, 0
    %p400 = por %p398, %p399
    %p401 = scmp.ne.s32.totalorder %s389, %s390
    %p402 = scmp.eq.s32.totalorder %s44, 1
    %p403 = por %p401, %p402
    %p405 = scmp.ne.s32.totalorder %s390, %s404
    %p406 = scmp.eq.s32.totalorder %s44, 0
    %p407 = por %p405, %p406
    %s409 = sadd.s32 %s408, 1
    %p412 = scmp.eq.s32.totalorder %s38, 1
    %p413 = scmp.ne.s32.totalorder %s408, %s410
    %p414 = scmp.eq.s32.totalorder %s38, 0
    %p415 = por %p413, %p414
    %p416 = scmp.ne.s32.totalorder %s408, %s410
    %p417 = scmp.eq.s32.totalorder %s43, 1
    %p418 = por %p416, %p417
    %p419 = scmp.ne.s32.totalorder %s410, %s411
    %p420 = scmp.eq.s32.totalorder %s43, 0
    %p421 = por %p419, %p420
    %p422 = scmp.ne.s32.totalorder %s410, %s411
    %p423 = scmp.eq.s32.totalorder %s44, 1
    %p424 = por %p422, %p423
    %p426 = scmp.ne.s32.totalorder %s411, %s425
    %p427 = scmp.eq.s32.totalorder %s44, 0
    %p428 = por %p426, %p427
    %s430 = sadd.s32 %s429, 1
    %p433 = scmp.eq.s32.totalorder %s38, 1
    %p434 = scmp.ne.s32.totalorder %s429, %s431
    %p435 = scmp.eq.s32.totalorder %s38, 0
    %p436 = por %p434, %p435
    %p437 = scmp.ne.s32.totalorder %s429, %s431
    %p438 = scmp.eq.s32.totalorder %s43, 1
    %p439 = por %p437, %p438
    %p440 = scmp.ne.s32.totalorder %s431, %s432
    %p441 = scmp.eq.s32.totalorder %s43, 0
    %p442 = por %p440, %p441
    %p443 = scmp.ne.s32.totalorder %s431, %s432
    %p444 = scmp.eq.s32.totalorder %s44, 1
    %p445 = por %p443, %p444
    %p447 = scmp.ne.s32.totalorder %s432, %s446
    %p448 = scmp.eq.s32.totalorder %s44, 0
    %p449 = por %p447, %p448
    %s451 = sadd.s32 %s450, 1
    %p454 = scmp.eq.s32.totalorder %s38, 1
    %p455 = scmp.ne.s32.totalorder %s450, %s452
    %p456 = scmp.eq.s32.totalorder %s38, 0
    %p457 = por %p455, %p456
    %p458 = scmp.ne.s32.totalorder %s450, %s452
    %p459 = scmp.eq.s32.totalorder %s43, 1
    %p460 = por %p458, %p459
    %p461 = scmp.ne.s32.totalorder %s452, %s453
    %p462 = scmp.eq.s32.totalorder %s43, 0
    %p463 = por %p461, %p462
    %p464 = scmp.ne.s32.totalorder %s452, %s453
    %p465 = scmp.eq.s32.totalorder %s44, 1
    %p466 = por %p464, %p465
    %p468 = scmp.ne.s32.totalorder %s453, %s467
    %p469 = scmp.eq.s32.totalorder %s44, 0
    %p470 = por %p468, %p469
    %s472 = sadd.s32 %s471, 1
    %p475 = scmp.eq.s32.totalorder %s38, 1
    %p476 = scmp.ne.s32.totalorder %s471, %s473
    %p477 = scmp.eq.s32.totalorder %s38, 0
    %p478 = por %p476, %p477
    %p479 = scmp.ne.s32.totalorder %s471, %s473
    %p480 = scmp.eq.s32.totalorder %s43, 1
    %p481 = por %p479, %p480
    %p482 = scmp.ne.s32.totalorder %s473, %s474
    %p483 = scmp.eq.s32.totalorder %s43, 0
    %p484 = por %p482, %p483
    %p485 = scmp.ne.s32.totalorder %s473, %s474
    %p486 = scmp.eq.s32.totalorder %s44, 1
    %p487 = por %p485, %p486
    %p489 = scmp.ne.s32.totalorder %s474, %s488
    %p490 = scmp.eq.s32.totalorder %s44, 0
    %p491 = por %p489, %p490
    %s492 = ssub.s32 %s38, %s45
    %p493 = scmp.eq.s32.totalorder %s492, 0
    %s495 = sadd.s32 %s494, 1
    %s496 = scalar_select %p493, %s494, %s495
    %p499 = pneg %p493
    %p500 = scmp.eq.s32.totalorder %s38, 1
    %p501 = por %p499, %p500
    %p502 = scmp.ne.s32.totalorder %s494, %s497
    %p503 = scmp.eq.s32.totalorder %s38, 0
    %p504 = por %p502, %p503
    %p505 = scmp.ne.s32.totalorder %s494, %s497
    %p506 = scmp.eq.s32.totalorder %s43, 1
    %p507 = por %p505, %p506
    %p508 = scmp.ne.s32.totalorder %s497, %s498
    %p509 = scmp.eq.s32.totalorder %s43, 0
    %p510 = por %p508, %p509
    %p511 = scmp.ne.s32.totalorder %s497, %s498
    %p512 = scmp.eq.s32.totalorder %s44, 1
    %p513 = por %p511, %p512
    %p515 = scmp.ne.s32.totalorder %s498, %s514
    %p516 = scmp.eq.s32.totalorder %s44, 0
    %p517 = por %p515, %p516
    %p518 = scmp.le.s32.totalorder 1, %s38
    %p519 = scmp.lt.s32.totalorder %s38, 3
    %p520 = pnand %p518, %p519
    %p521 = pneg %p520
    // Predicated region
    $region9: #{pathogenic_prediction_model.1} parent=5 // pred_check
      _
    $region10: #{pathogenic_prediction_model.1} parent=5 // pred_check_branch
      %523 = sbr.rel (%p520) target = $region12
    $region11: #{pathogenic_prediction_model.1} parent=5 // pred_region
      %s524 = ssub.s32 %s38, 1
      // Predicated region
      $region13: #{pathogenic_prediction_model.1} parent=11 // pred_check
        %p525 = pneg %p85
      $region14: #{pathogenic_prediction_model.1} parent=11 // pred_check_branch
        %527 = sbr.rel (%p525) target = $region16
      $region15: #{pathogenic_prediction_model.1} parent=11 // pred_region
        _
      $region16: #{pathogenic_prediction_model.1} parent=11 // pred_fallthru
        _
      // Predicated region
      $region17: #{pathogenic_prediction_model.1} parent=11 // pred_check
        %p528 = pneg %p106
      $region18: #{pathogenic_prediction_model.1} parent=11 // pred_check_branch
        %530 = sbr.rel (%p528) target = $region20
      $region19: #{pathogenic_prediction_model.1} parent=11 // pred_region
        _
      $region20: #{pathogenic_prediction_model.1} parent=11 // pred_fallthru
        _
      // Predicated region
      $region21: #{pathogenic_prediction_model.1} parent=11 // pred_check
        %p531 = pneg %p127
      $region22: #{pathogenic_prediction_model.1} parent=11 // pred_check_branch
        %533 = sbr.rel (%p531) target = $region24
      $region23: #{pathogenic_prediction_model.1} parent=11 // pred_region
        _
      $region24: #{pathogenic_prediction_model.1} parent=11 // pred_fallthru
        _
      // Predicated region
      $region25: #{pathogenic_prediction_model.1} parent=11 // pred_check
        %p534 = pneg %p148
      $region26: #{pathogenic_prediction_model.1} parent=11 // pred_check_branch
        %536 = sbr.rel (%p534) target = $region28
      $region27: #{pathogenic_prediction_model.1} parent=11 // pred_region
        _
      $region28: #{pathogenic_prediction_model.1} parent=11 // pred_fallthru
        _
      // Predicated region
      $region29: #{pathogenic_prediction_model.1} parent=11 // pred_check
        %p537 = pneg %p169
      $region30: #{pathogenic_prediction_model.1} parent=11 // pred_check_branch
        %539 = sbr.rel (%p537) target = $region32
      $region31: #{pathogenic_prediction_model.1} parent=11 // pred_region
        _
      $region32: #{pathogenic_prediction_model.1} parent=11 // pred_fallthru
        _
      // Predicated region
      $region33: #{pathogenic_prediction_model.1} parent=11 // pred_check
        %p540 = pneg %p190
      $region34: #{pathogenic_prediction_model.1} parent=11 // pred_check_branch
        %542 = sbr.rel (%p540) target = $region36
      $region35: #{pathogenic_prediction_model.1} parent=11 // pred_region
        _
      $region36: #{pathogenic_prediction_model.1} parent=11 // pred_fallthru
        _
      // Predicated region
      $region37: #{pathogenic_prediction_model.1} parent=11 // pred_check
        %p543 = pneg %p211
      $region38: #{pathogenic_prediction_model.1} parent=11 // pred_check_branch
        %545 = sbr.rel (%p543) target = $region40
      $region39: #{pathogenic_prediction_model.1} parent=11 // pred_region
        _
      $region40: #{pathogenic_prediction_model.1} parent=11 // pred_fallthru
        _
      // Predicated region
      $region41: #{pathogenic_prediction_model.1} parent=11 // pred_check
        %p546 = pneg %p232
      $region42: #{pathogenic_prediction_model.1} parent=11 // pred_check_branch
        %548 = sbr.rel (%p546) target = $region44
      $region43: #{pathogenic_prediction_model.1} parent=11 // pred_region
        _
      $region44: #{pathogenic_prediction_model.1} parent=11 // pred_fallthru
        _
      // Predicated region
      $region45: #{pathogenic_prediction_model.1} parent=11 // pred_check
        %p549 = pneg %p253
      $region46: #{pathogenic_prediction_model.1} parent=11 // pred_check_branch
        %551 = sbr.rel (%p549) target = $region48
      $region47: #{pathogenic_prediction_model.1} parent=11 // pred_region
        _
      $region48: #{pathogenic_prediction_model.1} parent=11 // pred_fallthru
        _
      // Predicated region
      $region49: #{pathogenic_prediction_model.1} parent=11 // pred_check
        %p552 = pneg %p274
      $region50: #{pathogenic_prediction_model.1} parent=11 // pred_check_branch
        %554 = sbr.rel (%p552) target = $region52
      $region51: #{pathogenic_prediction_model.1} parent=11 // pred_region
        _
      $region52: #{pathogenic_prediction_model.1} parent=11 // pred_fallthru
        _
      // Predicated region
      $region53: #{pathogenic_prediction_model.1} parent=11 // pred_check
        %p555 = pneg %p295
      $region54: #{pathogenic_prediction_model.1} parent=11 // pred_check_branch
        %557 = sbr.rel (%p555) target = $region56
      $region55: #{pathogenic_prediction_model.1} parent=11 // pred_region
        _
      $region56: #{pathogenic_prediction_model.1} parent=11 // pred_fallthru
        _
      // Predicated region
      $region57: #{pathogenic_prediction_model.1} parent=11 // pred_check
        %p558 = pneg %p316
      $region58: #{pathogenic_prediction_model.1} parent=11 // pred_check_branch
        %560 = sbr.rel (%p558) target = $region60
      $region59: #{pathogenic_prediction_model.1} parent=11 // pred_region
        _
      $region60: #{pathogenic_prediction_model.1} parent=11 // pred_fallthru
        _
      // Predicated region
      $region61: #{pathogenic_prediction_model.1} parent=11 // pred_check
        %p561 = pneg %p337
      $region62: #{pathogenic_prediction_model.1} parent=11 // pred_check_branch
        %563 = sbr.rel (%p561) target = $region64
      $region63: #{pathogenic_prediction_model.1} parent=11 // pred_region
        _
      $region64: #{pathogenic_prediction_model.1} parent=11 // pred_fallthru
        _
      // Predicated region
      $region65: #{pathogenic_prediction_model.1} parent=11 // pred_check
        %p564 = pneg %p358
      $region66: #{pathogenic_prediction_model.1} parent=11 // pred_check_branch
        %566 = sbr.rel (%p564) target = $region68
      $region67: #{pathogenic_prediction_model.1} parent=11 // pred_region
        _
      $region68: #{pathogenic_prediction_model.1} parent=11 // pred_fallthru
        _
      // Predicated region
      $region69: #{pathogenic_prediction_model.1} parent=11 // pred_check
        %p567 = pneg %p379
      $region70: #{pathogenic_prediction_model.1} parent=11 // pred_check_branch
        %569 = sbr.rel (%p567) target = $region72
      $region71: #{pathogenic_prediction_model.1} parent=11 // pred_region
        _
      $region72: #{pathogenic_prediction_model.1} parent=11 // pred_fallthru
        _
      // Predicated region
      $region73: #{pathogenic_prediction_model.1} parent=11 // pred_check
        %p570 = pneg %p400
      $region74: #{pathogenic_prediction_model.1} parent=11 // pred_check_branch
        %572 = sbr.rel (%p570) target = $region76
      $region75: #{pathogenic_prediction_model.1} parent=11 // pred_region
        _
      $region76: #{pathogenic_prediction_model.1} parent=11 // pred_fallthru
        _
      // Predicated region
      $region77: #{pathogenic_prediction_model.1} parent=11 // pred_check
        %p573 = pneg %p421
      $region78: #{pathogenic_prediction_model.1} parent=11 // pred_check_branch
        %575 = sbr.rel (%p573) target = $region80
      $region79: #{pathogenic_prediction_model.1} parent=11 // pred_region
        _
      $region80: #{pathogenic_prediction_model.1} parent=11 // pred_fallthru
        _
      // Predicated region
      $region81: #{pathogenic_prediction_model.1} parent=11 // pred_check
        %p576 = pneg %p442
      $region82: #{pathogenic_prediction_model.1} parent=11 // pred_check_branch
        %578 = sbr.rel (%p576) target = $region84
      $region83: #{pathogenic_prediction_model.1} parent=11 // pred_region
        _
      $region84: #{pathogenic_prediction_model.1} parent=11 // pred_fallthru
        _
      // Predicated region
      $region85: #{pathogenic_prediction_model.1} parent=11 // pred_check
        %p579 = pneg %p463
      $region86: #{pathogenic_prediction_model.1} parent=11 // pred_check_branch
        %581 = sbr.rel (%p579) target = $region88
      $region87: #{pathogenic_prediction_model.1} parent=11 // pred_region
        _
      $region88: #{pathogenic_prediction_model.1} parent=11 // pred_fallthru
        _
      // Predicated region
      $region89: #{pathogenic_prediction_model.1} parent=11 // pred_check
        %p582 = pneg %p484
      $region90: #{pathogenic_prediction_model.1} parent=11 // pred_check_branch
        %584 = sbr.rel (%p582) target = $region92
      $region91: #{pathogenic_prediction_model.1} parent=11 // pred_region
        _
      $region92: #{pathogenic_prediction_model.1} parent=11 // pred_fallthru
        _
    $region12: #{pathogenic_prediction_model.1} parent=5 // pred_fallthru
      _
    %p585 = scmp.lt.s32.totalorder %s38, 2
    // Predicated region
    $region93: #{pathogenic_prediction_model.1} parent=5 // pred_check
      %p586 = pneg %p585
    $region94: #{pathogenic_prediction_model.1} parent=5 // pred_check_branch
      %588 = sbr.rel (%p586) target = $region96
    $region95: #{pathogenic_prediction_model.1} parent=5 // pred_region
      // Predicated region
      $region97: #{pathogenic_prediction_model.1} parent=95 // pred_check
        %p589 = pneg %p58
      $region98: #{pathogenic_prediction_model.1} parent=95 // pred_check_branch
        %591 = sbr.rel (%p589) target = $region100
      $region99: #{pathogenic_prediction_model.1} parent=95 // pred_region
        %s592 = smul.u32 56, %s38
        %p593 = scmp.lt.s32.totalorder %s592, 111
        %s594 = scalar_select %p593, %s592, 111
        %s595 = smul.addr %s594, 8
        %s596 = scalar_lea.vmem %s1, %s595
        %s597 = smul.u32 56, %s38
      $region100: #{pathogenic_prediction_model.1} parent=95 // pred_fallthru
        _
    $region96: #{pathogenic_prediction_model.1} parent=5 // pred_fallthru
      _
    %p598 = scmp.le.s32.totalorder 1, %s38
    %p599 = scmp.lt.s32.totalorder %s38, 3
    %p600 = pnand %p598, %p599
    %p601 = pneg %p600
    // Predicated region
    $region101: #{pathogenic_prediction_model.1} parent=5 // pred_check
      _
    $region102: #{pathogenic_prediction_model.1} parent=5 // pred_check_branch
      %603 = sbr.rel (%p600) target = $region104
    $region103: #{pathogenic_prediction_model.1} parent=5 // pred_region
      %s604 = ssub.s32 %s38, 1
      %s605 = smul.u32 56, %s43
      %p606 = scmp.lt.s32.totalorder %s605, 111
      %s607 = scalar_select %p606, %s605, 111
      %s608 = smul.addr %s607, 8
      %s609 = scalar_lea.vmem %s1, %s608
      %p610 = pneg %p64
      %p611 = pneg %p61
      %p612 = pneg %p85
      %p613 = pneg %p82
      %p614 = pneg %p106
      %p615 = pneg %p103
      %p616 = pneg %p127
      %p617 = pneg %p124
      %p618 = pneg %p148
      %p619 = pneg %p145
      %p620 = pneg %p169
      %p621 = pneg %p166
      %p622 = pneg %p190
      %p623 = pneg %p187
      %p624 = pneg %p211
      %p625 = pneg %p208
      %p626 = pneg %p232
      %p627 = pneg %p229
      %p628 = pneg %p253
      %p629 = pneg %p250
      %p630 = pneg %p274
      %p631 = pneg %p271
      %p632 = pneg %p295
      %p633 = pneg %p292
      %p634 = pneg %p316
      %p635 = pneg %p313
      %p636 = pneg %p337
      %p637 = pneg %p334
      %p638 = pneg %p358
      %p639 = pneg %p355
      %p640 = pneg %p379
      %p641 = pneg %p376
      %p642 = pneg %p400
      %p643 = pneg %p397
      %p644 = pneg %p421
      %p645 = pneg %p418
      %p646 = pneg %p442
      %p647 = pneg %p439
      %p648 = pneg %p463
      %p649 = pneg %p460
      %p650 = pneg %p484
      %p651 = pneg %p481
      %p652 = pneg %p510
      %p653 = pneg %p507
      %p654 = scmp.lt.s32.totalorder %s43, 1
      %s655 = scalar_select %p654, %s43, 1
      %s656 = smul.addr %s655, 4
      %s657 = scalar_lea.vmem %s22, %s656
      %s658 = smul.u32 56, %s43
      %p659 = scmp.lt.s32.totalorder %s658, 111
      %s660 = scalar_select %p659, %s658, 111
      %s661 = smul.addr %s660, 8
      %s662 = scalar_lea.vmem %s1, %s661
      %s663 = smul.u32 56, %s43
      %p664 = scmp.lt.s32.totalorder %s43, 1
      %s665 = scalar_select %p664, %s43, 1
      %s666 = smul.addr %s665, 4
      %s667 = scalar_lea.vmem %s22, %s666
      %v668 = vld [vmem:[%s662] sm:$0xff]
      %v669 = vld [vmem:[%s662 + $0x8] sm:$0xff]
      %v670 = vld [vmem:[%s662 + $0x10] sm:$0xff]
      %v671 = vld [vmem:[%s662 + $0x18] sm:$0xff]
      %v672 = vld [vmem:[%s662 + $0x20] sm:$0xff]
      %v673 = vld [vmem:[%s662 + $0x28] sm:$0xff]
      %v674 = vld [vmem:[%s662 + $0x30] sm:$0xff]
      %v675 = vld [vmem:[%s662 + $0x38] sm:$0xff]
      %v676 = vld [vmem:[%s662 + $0x40] sm:$0xff]
      %v677 = vld [vmem:[%s662 + $0x48] sm:$0xff]
      %v678 = vld [vmem:[%s662 + $0x50] sm:$0xff]
      %v679 = vld [vmem:[%s662 + $0x58] sm:$0xff]
      %v680 = vld [vmem:[%s662 + $0x60] sm:$0xff]
      %v681 = vld [vmem:[%s662 + $0x68] sm:$0xff]
      %v682 = vld [vmem:[%s662 + $0x70] sm:$0xff]
      %v683 = vld [vmem:[%s662 + $0x78] sm:$0xff]
      %v684 = vld [vmem:[%s662 + $0x80] sm:$0xff]
      %v685 = vld [vmem:[%s662 + $0x88] sm:$0xff]
      %v686 = vld [vmem:[%s662 + $0x90] sm:$0xff]
      %v687 = vld [vmem:[%s662 + $0x98] sm:$0xff]
      %v688 = vld [vmem:[%s662 + $0xa0] sm:$0xff]
      %v689 = vld [vmem:[%s662 + $0xa8] sm:$0xff]
      %v690 = vld [vmem:[%s662 + $0xb0] sm:$0xff]
      %v691 = vld [vmem:[%s662 + $0xb8] sm:$0xff]
      %v692 = vld [vmem:[%s662 + $0xc0] sm:$0xff]
      %v693 = vld [vmem:[%s662 + $0xc8] sm:$0xff]
      %v694 = vld [vmem:[%s662 + $0xd0] sm:$0xff]
      %v695 = vld [vmem:[%s662 + $0xd8] sm:$0xff]
      %v696 = vld [vmem:[%s662 + $0xe0] sm:$0xff]
      %v697 = vld [vmem:[%s662 + $0xe8] sm:$0xff]
      %v698 = vld [vmem:[%s662 + $0xf0] sm:$0xff]
      %v699 = vld [vmem:[%s662 + $0xf8] sm:$0xff]
      %v700 = vld [vmem:[%s662 + $0x100] sm:$0xff]
      %v701 = vld [vmem:[%s662 + $0x108] sm:$0xff]
      %v702 = vld [vmem:[%s662 + $0x110] sm:$0xff]
      %v703 = vld [vmem:[%s662 + $0x118] sm:$0xff]
      %v704 = vld [vmem:[%s662 + $0x120] sm:$0xff]
      %v705 = vld [vmem:[%s662 + $0x128] sm:$0xff]
      %v706 = vld [vmem:[%s662 + $0x130] sm:$0xff]
      %v707 = vld [vmem:[%s662 + $0x138] sm:$0xff]
      %v708 = vld [vmem:[%s662 + $0x140] sm:$0xff]
      %v709 = vld [vmem:[%s662 + $0x148] sm:$0xff]
      %v710 = vld [vmem:[%s662 + $0x150] sm:$0xff]
      %v711 = vld [vmem:[%s662 + $0x158] sm:$0xff]
      %v712 = vld [vmem:[%s662 + $0x160] sm:$0xff]
      %v713 = vld [vmem:[%s662 + $0x168] sm:$0xff]
      %v714 = vld [vmem:[%s662 + $0x170] sm:$0xff]
      %v715 = vld [vmem:[%s662 + $0x178] sm:$0xff]
      %v716 = vld [vmem:[%s662 + $0x180] sm:$0xff]
      %v717 = vld [vmem:[%s662 + $0x188] sm:$0xff]
      %v718 = vld [vmem:[%s662 + $0x190] sm:$0xff]
      %v719 = vld [vmem:[%s662 + $0x198] sm:$0xff]
      %v720 = vld [vmem:[%s662 + $0x1a0] sm:$0xff]
      %v721 = vld [vmem:[%s662 + $0x1a8] sm:$0xff]
      %v722 = vld [vmem:[%s662 + $0x1b0] sm:$0xff]
      %v723 = vld [vmem:[%s662 + $0x1b8] sm:$0xff]
      %v724 = vld [vmem:[%s2] sm:$0xff]
      %v725 = vld [vmem:[%s2 + $0x8] sm:$0xff]
      %v726 = vld [vmem:[%s2 + $0x10] sm:$0xff]
      %v727 = vld [vmem:[%s2 + $0x18] sm:$0xff]
      %v728 = vld [vmem:[%s3] sm:$0x1]
      %v730 = vperm.slane %v728, 0
      %vm732 = vcmask 261120
      %v734 = vsel %vm732, %v668, 0
      %v737 = vsel %vm732, %v669, 0
      %v740 = vsel %vm732, %v670, 0
      %v743 = vsel %vm732, %v671, 0
      %v746 = vsel %vm732, %v672, 0
      %v749 = vsel %vm732, %v673, 0
      %v752 = vsel %vm732, %v674, 0
      %v755 = vsel %vm732, %v675, 0
      %v758 = vsel %vm732, %v676, 0
      %v761 = vsel %vm732, %v677, 0
      %v764 = vsel %vm732, %v678, 0
      %v767 = vsel %vm732, %v679, 0
      %v770 = vsel %vm732, %v680, 0
      %v773 = vsel %vm732, %v681, 0
      %v776 = vsel %vm732, %v682, 0
      %v779 = vsel %vm732, %v683, 0
      %v782 = vsel %vm732, %v684, 0
      %v785 = vsel %vm732, %v685, 0
      %v788 = vsel %vm732, %v686, 0
      %v791 = vsel %vm732, %v687, 0
      %v794 = vsel %vm732, %v688, 0
      %v797 = vsel %vm732, %v689, 0
      %v800 = vsel %vm732, %v690, 0
      %v803 = vsel %vm732, %v691, 0
      %v806 = vsel %vm732, %v692, 0
      %v809 = vsel %vm732, %v693, 0
      %v812 = vsel %vm732, %v694, 0
      %v815 = vsel %vm732, %v695, 0
      %v818 = vsel %vm732, %v696, 0
      %v821 = vsel %vm732, %v697, 0
      %v824 = vsel %vm732, %v698, 0
      %v827 = vsel %vm732, %v699, 0
      %v830 = vsel %vm732, %v700, 0
      %v833 = vsel %vm732, %v701, 0
      %v836 = vsel %vm732, %v702, 0
      %v839 = vsel %vm732, %v703, 0
      %v842 = vsel %vm732, %v704, 0
      %v845 = vsel %vm732, %v705, 0
      %v848 = vsel %vm732, %v706, 0
      %v851 = vsel %vm732, %v707, 0
      %v854 = vsel %vm732, %v708, 0
      %v857 = vsel %vm732, %v709, 0
      %v860 = vsel %vm732, %v710, 0
      %v863 = vsel %vm732, %v711, 0
      %v866 = vsel %vm732, %v712, 0
      %v869 = vsel %vm732, %v713, 0
      %v872 = vsel %vm732, %v714, 0
      %v875 = vsel %vm732, %v715, 0
      %v878 = vsel %vm732, %v716, 0
      %v881 = vsel %vm732, %v717, 0
      %v884 = vsel %vm732, %v718, 0
      %v887 = vsel %vm732, %v719, 0
      %v890 = vsel %vm732, %v720, 0
      %v893 = vsel %vm732, %v721, 0
      %v896 = vsel %vm732, %v722, 0
      %v899 = vsel %vm732, %v723, 0
      %901 = vmatpush.msra.mxu0 0.0
      %902 = vmatpush.msra.mxu0 0.0
      %903 = vmatpush.msra.mxu0 0.0
      %904 = vmatpush.msra.mxu0 0.0
      %905 = vmatpush.msra.mxu0 0.0
      %906 = vmatpush.msra.mxu0 0.0
      %907 = vmatpush.msra.mxu0 0.0
      %908 = vmatpush.msra.mxu0 0.0
      %909 = vmatpush.msra.mxu0 0.0
      %910 = vmatpush.msra.mxu0 0.0
      %911 = vmatpush.msra.mxu0 0.0
      %912 = vmatpush.msra.mxu0 0.0
      %913 = vmatpush.msra.mxu0 %v727
      %914 = vmatpush.msra.mxu0 %v726
      %915 = vmatpush.msra.mxu0 %v725
      %916 = vmatpush.msra.mxu0 %v724
      %917 = vmatmul.f32.gmra.mxu0 %v734
      %v918 = vpop.f32.mrf.mxu0
      %v919 = vadd.f32 %v730, %v918
      %920 = vmatmul.f32.gmra.mxu0 %v737
      %v921 = vpop.f32.mrf.mxu0
      %v922 = vadd.f32 %v730, %v921
      %923 = vmatmul.f32.gmra.mxu0 %v740
      %v924 = vpop.f32.mrf.mxu0
      %v925 = vadd.f32 %v730, %v924
      %926 = vmatmul.f32.gmra.mxu0 %v743
      %v927 = vpop.f32.mrf.mxu0
      %v928 = vadd.f32 %v730, %v927
      %929 = vmatmul.f32.gmra.mxu0 %v746
      %v930 = vpop.f32.mrf.mxu0
      %v931 = vadd.f32 %v730, %v930
      %932 = vmatmul.f32.gmra.mxu0 %v749
      %v933 = vpop.f32.mrf.mxu0
      %v934 = vadd.f32 %v730, %v933
      %935 = vmatmul.f32.gmra.mxu0 %v752
      %v936 = vpop.f32.mrf.mxu0
      %v937 = vadd.f32 %v730, %v936
      %938 = vmatmul.f32.gmra.mxu0 %v755
      %v939 = vpop.f32.mrf.mxu0
      %v940 = vadd.f32 %v730, %v939
      %941 = vmatmul.f32.gmra.mxu0 %v758
      %v942 = vpop.f32.mrf.mxu0
      %v943 = vadd.f32 %v730, %v942
      %944 = vmatmul.f32.gmra.mxu0 %v761
      %v945 = vpop.f32.mrf.mxu0
      %v946 = vadd.f32 %v730, %v945
      %947 = vmatmul.f32.gmra.mxu0 %v764
      %v948 = vpop.f32.mrf.mxu0
      %v949 = vadd.f32 %v730, %v948
      %950 = vmatmul.f32.gmra.mxu0 %v767
      %v951 = vpop.f32.mrf.mxu0
      %v952 = vadd.f32 %v730, %v951
      %953 = vmatmul.f32.gmra.mxu0 %v770
      %v954 = vpop.f32.mrf.mxu0
      %v955 = vadd.f32 %v730, %v954
      %956 = vmatmul.f32.gmra.mxu0 %v773
      %v957 = vpop.f32.mrf.mxu0
      %v958 = vadd.f32 %v730, %v957
      %959 = vmatmul.f32.gmra.mxu0 %v776
      %v960 = vpop.f32.mrf.mxu0
      %v961 = vadd.f32 %v730, %v960
      %962 = vmatmul.f32.gmra.mxu0 %v779
      %v963 = vpop.f32.mrf.mxu0
      %v964 = vadd.f32 %v730, %v963
      %965 = vmatmul.f32.gmra.mxu0 %v782
      %v966 = vpop.f32.mrf.mxu0
      %v967 = vadd.f32 %v730, %v966
      %968 = vmatmul.f32.gmra.mxu0 %v785
      %v969 = vpop.f32.mrf.mxu0
      %v970 = vadd.f32 %v730, %v969
      %971 = vmatmul.f32.gmra.mxu0 %v788
      %v972 = vpop.f32.mrf.mxu0
      %v973 = vadd.f32 %v730, %v972
      %974 = vmatmul.f32.gmra.mxu0 %v791
      %v975 = vpop.f32.mrf.mxu0
      %v976 = vadd.f32 %v730, %v975
      %977 = vmatmul.f32.gmra.mxu0 %v794
      %v978 = vpop.f32.mrf.mxu0
      %v979 = vadd.f32 %v730, %v978
      %980 = vmatmul.f32.gmra.mxu0 %v797
      %v981 = vpop.f32.mrf.mxu0
      %v982 = vadd.f32 %v730, %v981
      %983 = vmatmul.f32.gmra.mxu0 %v800
      %v984 = vpop.f32.mrf.mxu0
      %v985 = vadd.f32 %v730, %v984
      %986 = vmatmul.f32.gmra.mxu0 %v803
      %v987 = vpop.f32.mrf.mxu0
      %v988 = vadd.f32 %v730, %v987
      %989 = vmatmul.f32.gmra.mxu0 %v806
      %v990 = vpop.f32.mrf.mxu0
      %v991 = vadd.f32 %v730, %v990
      %992 = vmatmul.f32.gmra.mxu0 %v809
      %v993 = vpop.f32.mrf.mxu0
      %v994 = vadd.f32 %v730, %v993
      %995 = vmatmul.f32.gmra.mxu0 %v812
      %v996 = vpop.f32.mrf.mxu0
      %v997 = vadd.f32 %v730, %v996
      %998 = vmatmul.f32.gmra.mxu0 %v815
      %v999 = vpop.f32.mrf.mxu0
      %v1000 = vadd.f32 %v730, %v999
      %1001 = vmatmul.f32.gmra.mxu0 %v818
      %v1002 = vpop.f32.mrf.mxu0
      %v1003 = vadd.f32 %v730, %v1002
      %1004 = vmatmul.f32.gmra.mxu0 %v821
      %v1005 = vpop.f32.mrf.mxu0
      %v1006 = vadd.f32 %v730, %v1005
      %1007 = vmatmul.f32.gmra.mxu0 %v824
      %v1008 = vpop.f32.mrf.mxu0
      %v1009 = vadd.f32 %v730, %v1008
      %1010 = vmatmul.f32.gmra.mxu0 %v827
      %v1011 = vpop.f32.mrf.mxu0
      %v1012 = vadd.f32 %v730, %v1011
      %1013 = vmatmul.f32.gmra.mxu0 %v830
      %v1014 = vpop.f32.mrf.mxu0
      %v1015 = vadd.f32 %v730, %v1014
      %1016 = vmatmul.f32.gmra.mxu0 %v833
      %v1017 = vpop.f32.mrf.mxu0
      %v1018 = vadd.f32 %v730, %v1017
      %1019 = vmatmul.f32.gmra.mxu0 %v836
      %v1020 = vpop.f32.mrf.mxu0
      %v1021 = vadd.f32 %v730, %v1020
      %1022 = vmatmul.f32.gmra.mxu0 %v839
      %v1023 = vpop.f32.mrf.mxu0
      %v1024 = vadd.f32 %v730, %v1023
      %1025 = vmatmul.f32.gmra.mxu0 %v842
      %v1026 = vpop.f32.mrf.mxu0
      %v1027 = vadd.f32 %v730, %v1026
      %1028 = vmatmul.f32.gmra.mxu0 %v845
      %v1029 = vpop.f32.mrf.mxu0
      %v1030 = vadd.f32 %v730, %v1029
      %1031 = vmatmul.f32.gmra.mxu0 %v848
      %v1032 = vpop.f32.mrf.mxu0
      %v1033 = vadd.f32 %v730, %v1032
      %1034 = vmatmul.f32.gmra.mxu0 %v851
      %v1035 = vpop.f32.mrf.mxu0
      %v1036 = vadd.f32 %v730, %v1035
      %1037 = vmatmul.f32.gmra.mxu0 %v854
      %v1038 = vpop.f32.mrf.mxu0
      %v1039 = vadd.f32 %v730, %v1038
      %1040 = vmatmul.f32.gmra.mxu0 %v857
      %v1041 = vpop.f32.mrf.mxu0
      %v1042 = vadd.f32 %v730, %v1041
      %1043 = vmatmul.f32.gmra.mxu0 %v860
      %v1044 = vpop.f32.mrf.mxu0
      %v1045 = vadd.f32 %v730, %v1044
      %1046 = vmatmul.f32.gmra.mxu0 %v863
      %v1047 = vpop.f32.mrf.mxu0
      %v1048 = vadd.f32 %v730, %v1047
      %1049 = vmatmul.f32.gmra.mxu0 %v866
      %v1050 = vpop.f32.mrf.mxu0
      %v1051 = vadd.f32 %v730, %v1050
      %1052 = vmatmul.f32.gmra.mxu0 %v869
      %v1053 = vpop.f32.mrf.mxu0
      %v1054 = vadd.f32 %v730, %v1053
      %1055 = vmatmul.f32.gmra.mxu0 %v872
      %v1056 = vpop.f32.mrf.mxu0
      %v1057 = vadd.f32 %v730, %v1056
      %1058 = vmatmul.f32.gmra.mxu0 %v875
      %v1059 = vpop.f32.mrf.mxu0
      %v1060 = vadd.f32 %v730, %v1059
      %1061 = vmatmul.f32.gmra.mxu0 %v878
      %v1062 = vpop.f32.mrf.mxu0
      %v1063 = vadd.f32 %v730, %v1062
      %1064 = vmatmul.f32.gmra.mxu0 %v881
      %v1065 = vpop.f32.mrf.mxu0
      %v1066 = vadd.f32 %v730, %v1065
      %1067 = vmatmul.f32.gmra.mxu0 %v884
      %v1068 = vpop.f32.mrf.mxu0
      %v1069 = vadd.f32 %v730, %v1068
      %1070 = vmatmul.f32.gmra.mxu0 %v887
      %v1071 = vpop.f32.mrf.mxu0
      %v1072 = vadd.f32 %v730, %v1071
      %1073 = vmatmul.f32.gmra.mxu0 %v890
      %v1074 = vpop.f32.mrf.mxu0
      %v1075 = vadd.f32 %v730, %v1074
      %1076 = vmatmul.f32.gmra.mxu0 %v893
      %v1077 = vpop.f32.mrf.mxu0
      %v1078 = vadd.f32 %v730, %v1077
      %1079 = vmatmul.f32.gmra.mxu0 %v896
      %v1080 = vpop.f32.mrf.mxu0
      %v1081 = vadd.f32 %v730, %v1080
      %1082 = vmatmul.f32.gmra.mxu0 %v899
      %v1083 = vpop.f32.mrf.mxu0
      %v1084 = vadd.f32 %v730, %v1083
      %1085 = vdwg.mxu0
      %v1086 = vmax.f32 %v919, 0.0
      %v1087 = vmax.f32 %v922, 0.0
      %v1088 = vmax.f32 %v925, 0.0
      %v1089 = vmax.f32 %v928, 0.0
      %v1090 = vmax.f32 %v931, 0.0
      %v1091 = vmax.f32 %v934, 0.0
      %v1092 = vmax.f32 %v937, 0.0
      %v1093 = vmax.f32 %v940, 0.0
      %v1094 = vmax.f32 %v943, 0.0
      %v1095 = vmax.f32 %v946, 0.0
      %v1096 = vmax.f32 %v949, 0.0
      %v1097 = vmax.f32 %v952, 0.0
      %v1098 = vmax.f32 %v955, 0.0
      %v1099 = vmax.f32 %v958, 0.0
      %v1100 = vmax.f32 %v961, 0.0
      %v1101 = vmax.f32 %v964, 0.0
      %v1102 = vmax.f32 %v967, 0.0
      %v1103 = vmax.f32 %v970, 0.0
      %v1104 = vmax.f32 %v973, 0.0
      %v1105 = vmax.f32 %v976, 0.0
      %v1106 = vmax.f32 %v979, 0.0
      %v1107 = vmax.f32 %v982, 0.0
      %v1108 = vmax.f32 %v985, 0.0
      %v1109 = vmax.f32 %v988, 0.0
      %v1110 = vmax.f32 %v991, 0.0
      %v1111 = vmax.f32 %v994, 0.0
      %v1112 = vmax.f32 %v997, 0.0
      %v1113 = vmax.f32 %v1000, 0.0
      %v1114 = vmax.f32 %v1003, 0.0
      %v1115 = vmax.f32 %v1006, 0.0
      %v1116 = vmax.f32 %v1009, 0.0
      %v1117 = vmax.f32 %v1012, 0.0
      %v1118 = vmax.f32 %v1015, 0.0
      %v1119 = vmax.f32 %v1018, 0.0
      %v1120 = vmax.f32 %v1021, 0.0
      %v1121 = vmax.f32 %v1024, 0.0
      %v1122 = vmax.f32 %v1027, 0.0
      %v1123 = vmax.f32 %v1030, 0.0
      %v1124 = vmax.f32 %v1033, 0.0
      %v1125 = vmax.f32 %v1036, 0.0
      %v1126 = vmax.f32 %v1039, 0.0
      %v1127 = vmax.f32 %v1042, 0.0
      %v1128 = vmax.f32 %v1045, 0.0
      %v1129 = vmax.f32 %v1048, 0.0
      %v1130 = vmax.f32 %v1051, 0.0
      %v1131 = vmax.f32 %v1054, 0.0
      %v1132 = vmax.f32 %v1057, 0.0
      %v1133 = vmax.f32 %v1060, 0.0
      %v1134 = vmax.f32 %v1063, 0.0
      %v1135 = vmax.f32 %v1066, 0.0
      %v1136 = vmax.f32 %v1069, 0.0
      %v1137 = vmax.f32 %v1072, 0.0
      %v1138 = vmax.f32 %v1075, 0.0
      %v1139 = vmax.f32 %v1078, 0.0
      %v1140 = vmax.f32 %v1081, 0.0
      %v1141 = vmax.f32 %v1084, 0.0
      %v1142 = vmax.f32 %v1086, %v1100
      %v1143 = vmax.f32 %v1087, %v1101
      %v1144 = vmax.f32 %v1088, %v1102
      %v1145 = vmax.f32 %v1089, %v1103
      %v1146 = vmax.f32 %v1090, %v1104
      %v1147 = vmax.f32 %v1091, %v1105
      %v1148 = vmax.f32 %v1092, %v1106
      %v1149 = vmax.f32 %v1093, %v1107
      %v1150 = vmax.f32 %v1094, %v1108
      %v1151 = vmax.f32 %v1095, %v1109
      %v1152 = vmax.f32 %v1096, %v1110
      %v1153 = vmax.f32 %v1097, %v1111
      %v1154 = vmax.f32 %v1098, %v1112
      %v1155 = vmax.f32 %v1099, %v1113
      %v1156 = vmax.f32 %v1142, %v1114
      %v1157 = vmax.f32 %v1143, %v1115
      %v1158 = vmax.f32 %v1144, %v1116
      %v1159 = vmax.f32 %v1145, %v1117
      %v1160 = vmax.f32 %v1146, %v1118
      %v1161 = vmax.f32 %v1147, %v1119
      %v1162 = vmax.f32 %v1148, %v1120
      %v1163 = vmax.f32 %v1149, %v1121
      %v1164 = vmax.f32 %v1150, %v1122
      %v1165 = vmax.f32 %v1151, %v1123
      %v1166 = vmax.f32 %v1152, %v1124
      %v1167 = vmax.f32 %v1153, %v1125
      %v1168 = vmax.f32 %v1154, %v1126
      %v1169 = vmax.f32 %v1155, %v1127
      %v1170 = vmax.f32 %v1156, %v1128
      %v1171 = vmax.f32 %v1157, %v1129
      %v1172 = vmax.f32 %v1158, %v1130
      %v1173 = vmax.f32 %v1159, %v1131
      %v1174 = vmax.f32 %v1160, %v1132
      %v1175 = vmax.f32 %v1161, %v1133
      %v1176 = vmax.f32 %v1162, %v1134
      %v1177 = vmax.f32 %v1163, %v1135
      %v1178 = vmax.f32 %v1164, %v1136
      %v1179 = vmax.f32 %v1165, %v1137
      %v1180 = vmax.f32 %v1166, %v1138
      %v1181 = vmax.f32 %v1167, %v1139
      %v1182 = vmax.f32 %v1168, %v1140
      %v1183 = vmax.f32 %v1169, %v1141
      %v1184 = vld [vmem:[%s4] sm:$0xff]
      %v1185 = vld [vmem:[%s4 + $0x8] sm:$0xff]
      %v1186 = vld [vmem:[%s4 + $0x10] sm:$0xff]
      %v1187 = vld [vmem:[%s4 + $0x18] sm:$0xff]
      %v1188 = vld [vmem:[%s4 + $0x20] sm:$0xff]
      %v1189 = vld [vmem:[%s4 + $0x28] sm:$0xff]
      %v1190 = vld [vmem:[%s4 + $0x30] sm:$0xff]
      %v1191 = vld [vmem:[%s4 + $0x38] sm:$0xff]
      %v1193 = vsel %vm732, %v1170, 0
      %v1196 = vsel %vm732, %v1171, 0
      %v1199 = vsel %vm732, %v1172, 0
      %v1202 = vsel %vm732, %v1173, 0
      %v1205 = vsel %vm732, %v1174, 0
      %v1208 = vsel %vm732, %v1175, 0
      %v1211 = vsel %vm732, %v1176, 0
      %v1214 = vsel %vm732, %v1177, 0
      %v1217 = vsel %vm732, %v1178, 0
      %v1220 = vsel %vm732, %v1179, 0
      %v1223 = vsel %vm732, %v1180, 0
      %v1226 = vsel %vm732, %v1181, 0
      %v1229 = vsel %vm732, %v1182, 0
      %v1232 = vsel %vm732, %v1183, 0
      %1234 = vmatpush.msra.mxu0 0.0
      %1235 = vmatpush.msra.mxu0 0.0
      %1236 = vmatpush.msra.mxu0 0.0
      %1237 = vmatpush.msra.mxu0 0.0
      %1238 = vmatpush.msra.mxu0 0.0
      %1239 = vmatpush.msra.mxu0 0.0
      %1240 = vmatpush.msra.mxu0 0.0
      %1241 = vmatpush.msra.mxu0 0.0
      %1242 = vmatpush.msra.mxu0 0.0
      %1243 = vmatpush.msra.mxu0 0.0
      %1244 = vmatpush.msra.mxu0 0.0
      %1245 = vmatpush.msra.mxu0 0.0
      %1246 = vmatpush.msra.mxu0 %v1190
      %1247 = vmatpush.msra.mxu0 %v1188
      %1248 = vmatpush.msra.mxu0 %v1186
      %1249 = vmatpush.msra.mxu0 %v1184
      %1250 = vmatmul.f32.gmra.mxu0 %v1193
      %v1251 = vpop.f32.mrf.mxu0
      %v1252 = vadd.f32 0.0, %v1251
      %1253 = vmatmul.f32.gmra.mxu0 %v1196
      %v1254 = vpop.f32.mrf.mxu0
      %v1255 = vadd.f32 0.0, %v1254
      %1256 = vmatmul.f32.gmra.mxu0 %v1199
      %v1257 = vpop.f32.mrf.mxu0
      %v1258 = vadd.f32 0.0, %v1257
      %1259 = vmatmul.f32.gmra.mxu0 %v1202
      %v1260 = vpop.f32.mrf.mxu0
      %v1261 = vadd.f32 0.0, %v1260
      %1262 = vmatmul.f32.gmra.mxu0 %v1205
      %v1263 = vpop.f32.mrf.mxu0
      %v1264 = vadd.f32 0.0, %v1263
      %1265 = vmatmul.f32.gmra.mxu0 %v1208
      %v1266 = vpop.f32.mrf.mxu0
      %v1267 = vadd.f32 0.0, %v1266
      %1268 = vmatmul.f32.gmra.mxu0 %v1211
      %v1269 = vpop.f32.mrf.mxu0
      %v1270 = vadd.f32 0.0, %v1269
      %1271 = vmatmul.f32.gmra.mxu0 %v1214
      %v1272 = vpop.f32.mrf.mxu0
      %v1273 = vadd.f32 0.0, %v1272
      %1274 = vmatmul.f32.gmra.mxu0 %v1217
      %v1275 = vpop.f32.mrf.mxu0
      %v1276 = vadd.f32 0.0, %v1275
      %1277 = vmatmul.f32.gmra.mxu0 %v1220
      %v1278 = vpop.f32.mrf.mxu0
      %v1279 = vadd.f32 0.0, %v1278
      %1280 = vmatmul.f32.gmra.mxu0 %v1223
      %v1281 = vpop.f32.mrf.mxu0
      %v1282 = vadd.f32 0.0, %v1281
      %1283 = vmatmul.f32.gmra.mxu0 %v1226
      %v1284 = vpop.f32.mrf.mxu0
      %v1285 = vadd.f32 0.0, %v1284
      %1286 = vmatmul.f32.gmra.mxu0 %v1229
      %v1287 = vpop.f32.mrf.mxu0
      %v1288 = vadd.f32 0.0, %v1287
      %1289 = vmatmul.f32.gmra.mxu0 %v1232
      %v1290 = vpop.f32.mrf.mxu0
      %v1291 = vadd.f32 0.0, %v1290
      %1292 = vdwg.mxu0
      %1293 = vmatpush.msra.mxu0 0.0
      %1294 = vmatpush.msra.mxu0 0.0
      %1295 = vmatpush.msra.mxu0 0.0
      %1296 = vmatpush.msra.mxu0 0.0
      %1297 = vmatpush.msra.mxu0 0.0
      %1298 = vmatpush.msra.mxu0 0.0
      %1299 = vmatpush.msra.mxu0 0.0
      %1300 = vmatpush.msra.mxu0 0.0
      %1301 = vmatpush.msra.mxu0 0.0
      %1302 = vmatpush.msra.mxu0 0.0
      %1303 = vmatpush.msra.mxu0 0.0
      %1304 = vmatpush.msra.mxu0 0.0
      %1305 = vmatpush.msra.mxu0 %v1191
      %1306 = vmatpush.msra.mxu0 %v1189
      %1307 = vmatpush.msra.mxu0 %v1187
      %1308 = vmatpush.msra.mxu0 %v1185
      %1309 = vmatmul.f32.gmra.mxu0 %v1193
      %v1310 = vpop.f32.mrf.mxu0
      %v1311 = vadd.f32 0.0, %v1310
      %1312 = vmatmul.f32.gmra.mxu0 %v1196
      %v1313 = vpop.f32.mrf.mxu0
      %v1314 = vadd.f32 0.0, %v1313
      %1315 = vmatmul.f32.gmra.mxu0 %v1199
      %v1316 = vpop.f32.mrf.mxu0
      %v1317 = vadd.f32 0.0, %v1316
      %1318 = vmatmul.f32.gmra.mxu0 %v1202
      %v1319 = vpop.f32.mrf.mxu0
      %v1320 = vadd.f32 0.0, %v1319
      %1321 = vmatmul.f32.gmra.mxu0 %v1205
      %v1322 = vpop.f32.mrf.mxu0
      %v1323 = vadd.f32 0.0, %v1322
      %1324 = vmatmul.f32.gmra.mxu0 %v1208
      %v1325 = vpop.f32.mrf.mxu0
      %v1326 = vadd.f32 0.0, %v1325
      %1327 = vmatmul.f32.gmra.mxu0 %v1211
      %v1328 = vpop.f32.mrf.mxu0
      %v1329 = vadd.f32 0.0, %v1328
      %1330 = vmatmul.f32.gmra.mxu0 %v1214
      %v1331 = vpop.f32.mrf.mxu0
      %v1332 = vadd.f32 0.0, %v1331
      %1333 = vmatmul.f32.gmra.mxu0 %v1217
      %v1334 = vpop.f32.mrf.mxu0
      %v1335 = vadd.f32 0.0, %v1334
      %1336 = vmatmul.f32.gmra.mxu0 %v1220
      %v1337 = vpop.f32.mrf.mxu0
      %v1338 = vadd.f32 0.0, %v1337
      %1339 = vmatmul.f32.gmra.mxu0 %v1223
      %v1340 = vpop.f32.mrf.mxu0
      %v1341 = vadd.f32 0.0, %v1340
      %1342 = vmatmul.f32.gmra.mxu0 %v1226
      %v1343 = vpop.f32.mrf.mxu0
      %v1344 = vadd.f32 0.0, %v1343
      %1345 = vmatmul.f32.gmra.mxu0 %v1229
      %v1346 = vpop.f32.mrf.mxu0
      %v1347 = vadd.f32 0.0, %v1346
      %1348 = vmatmul.f32.gmra.mxu0 %v1232
      %v1349 = vpop.f32.mrf.mxu0
      %v1350 = vadd.f32 0.0, %v1349
      %1351 = vdwg.mxu0
      %v1352 = vld [vmem:[%s5] sm:$0x1]
      %v1354 = vperm.slane %v1352, 0
      %v1356 = vadd.f32 %v1252, %v1354
      %v1357 = vadd.f32 %v1255, %v1354
      %v1358 = vadd.f32 %v1258, %v1354
      %v1359 = vadd.f32 %v1261, %v1354
      %v1360 = vadd.f32 %v1264, %v1354
      %v1361 = vadd.f32 %v1267, %v1354
      %v1362 = vadd.f32 %v1270, %v1354
      %v1363 = vadd.f32 %v1273, %v1354
      %v1364 = vadd.f32 %v1276, %v1354
      %v1365 = vadd.f32 %v1279, %v1354
      %v1366 = vadd.f32 %v1282, %v1354
      %v1367 = vadd.f32 %v1285, %v1354
      %v1368 = vadd.f32 %v1288, %v1354
      %v1369 = vadd.f32 %v1291, %v1354
      %v1370 = vld [vmem:[%s6] sm:$0xff]
      %v1371 = vld [vmem:[%s6 + $0x8] sm:$0xff]
      %v1372 = vld [vmem:[%s6 + $0x10] sm:$0xff]
      %v1373 = vld [vmem:[%s6 + $0x18] sm:$0xff]
      %v1374 = vadd.f32 %v1356, %v1350
      %v1376 = vsel %vm732, 0.0, 0
      %1378 = vmatpush.msra.mxu0 0.0
      %1379 = vmatpush.msra.mxu0 0.0
      %1380 = vmatpush.msra.mxu0 0.0
      %1381 = vmatpush.msra.mxu0 0.0
      %1382 = vmatpush.msra.mxu0 0.0
      %1383 = vmatpush.msra.mxu0 0.0
      %1384 = vmatpush.msra.mxu0 0.0
      %1385 = vmatpush.msra.mxu0 0.0
      %1386 = vmatpush.msra.mxu0 0.0
      %1387 = vmatpush.msra.mxu0 0.0
      %1388 = vmatpush.msra.mxu0 0.0
      %1389 = vmatpush.msra.mxu0 0.0
      %1390 = vmatpush.msra.mxu0 %v1373
      %1391 = vmatpush.msra.mxu0 %v1372
      %1392 = vmatpush.msra.mxu0 %v1371
      %1393 = vmatpush.msra.mxu0 %v1370
      %1394 = vmatmul.f32.gmra.mxu0 %v1376
      %v1395 = vpop.f32.mrf.mxu0
      %v1396 = vadd.f32 %v1374, %v1395
      %1397 = vdwg.mxu0
      %v1398 = vxor.u32 %v1396, 2147483648
      %v1399 = vmul.f32 %v1398, 1.442695
      %v1400 = vpow.pop %v1399
      %v1401 = vadd.f32 %v1400, 1.0
      %v1402 = vrcp.pop %v1401
      %v1403 = vmul.f32 %v1401, %v1402
      %v1404 = vsub.f32 1.0, %v1403
      %v1405 = vmul.f32 %v1402, %v1404
      %v1406 = vadd.f32 %v1402, %v1405
      %vm1407 = vweird.f32 %v1401
      %vm1408 = vweird.f32 %v1402
      %vm1409 = vmor %vm1407, %vm1408
      %v1410 = vsel %vm1409, %v1402, %v1406
      %v1411 = vand.u32 2147483647, %v1401
      %vm1412 = vcmp.eq.f32.partialorder %v1411, 8.507059e+37
      %v1413 = vand.u32 %v1401, 2147483648
      %v1414 = vor.u32 1.1754944e-38, %v1413
      %v1415 = vsel %vm1412, %v1414, %v1410
      %v1416 = vmul.f32 1.0, %v1415
      %v1417 = vtanh.pop %v1396
      %v1418 = vmul.f32 %v1416, 0.0
      %1420 = vrot.lane.b32.xlu0 %v1417, 32
      %v1421 = vpop.permute.xlu0 %1420
      %v1423 = vmul.f32 %v1416, %v1421
      %1425 = vrot.lane.b32.xlu0 %v1423, 32
      %v1426 = vpop.permute.xlu0 %1425
      %v1428 = vadd.f32 %v1418, %v1426
      %v1429 = vtanh.pop %v1428
      %1431 = vrot.lane.b32.xlu0 %v1429, 32
      %v1432 = vpop.permute.xlu0 %1431
      %v1434 = vmul.f32 %v1416, %v1432
      %v1435 = vld [vmem:[%s7] sm:$0xff]
      %v1436 = vld [vmem:[%s7 + $0x8] sm:$0xff]
      %v1437 = vld [vmem:[%s7 + $0x10] sm:$0xff]
      %v1438 = vld [vmem:[%s7 + $0x18] sm:$0xff]
      %v1439 = vadd.f32 %v1357, %v1347
      %1441 = vrot.lane.b32.xlu0 %v1434, 64
      %v1442 = vpop.permute.xlu0 %1441
      %v1443 = vsel %vm732, %v1442, 0
      %1445 = vmatpush.msra.mxu0 0.0
      %1446 = vmatpush.msra.mxu0 0.0
      %1447 = vmatpush.msra.mxu0 0.0
      %1448 = vmatpush.msra.mxu0 0.0
      %1449 = vmatpush.msra.mxu0 0.0
      %1450 = vmatpush.msra.mxu0 0.0
      %1451 = vmatpush.msra.mxu0 0.0
      %1452 = vmatpush.msra.mxu0 0.0
      %1453 = vmatpush.msra.mxu0 0.0
      %1454 = vmatpush.msra.mxu0 0.0
      %1455 = vmatpush.msra.mxu0 0.0
      %1456 = vmatpush.msra.mxu0 0.0
      %1457 = vmatpush.msra.mxu0 %v1373
      %1458 = vmatpush.msra.mxu0 %v1372
      %1459 = vmatpush.msra.mxu0 %v1371
      %1460 = vmatpush.msra.mxu0 %v1370
      %1461 = vmatmul.f32.gmra.mxu0 %v1443
      %v1462 = vpop.f32.mrf.mxu0
      %v1463 = vadd.f32 %v1439, %v1462
      %1464 = vdwg.mxu0
      %v1465 = vxor.u32 %v1463, 2147483648
      %v1466 = vmul.f32 %v1465, 1.442695
      %v1467 = vpow.pop %v1466
      %v1468 = vadd.f32 %v1467, 1.0
      %v1469 = vrcp.pop %v1468
      %v1470 = vmul.f32 %v1468, %v1469
      %v1471 = vsub.f32 1.0, %v1470
      %v1472 = vmul.f32 %v1469, %v1471
      %v1473 = vadd.f32 %v1469, %v1472
      %vm1474 = vweird.f32 %v1468
      %vm1475 = vweird.f32 %v1469
      %vm1476 = vmor %vm1474, %vm1475
      %v1477 = vsel %vm1476, %v1469, %v1473
      %v1478 = vand.u32 2147483647, %v1468
      %vm1479 = vcmp.eq.f32.partialorder %v1478, 8.507059e+37
      %v1480 = vand.u32 %v1468, 2147483648
      %v1481 = vor.u32 1.1754944e-38, %v1480
      %v1482 = vsel %vm1479, %v1481, %v1477
      %v1483 = vmul.f32 1.0, %v1482
      %v1484 = vtanh.pop %v1463
      %v1485 = vmul.f32 %v1483, %v1428
      %1487 = vrot.lane.b32.xlu0 %v1484, 32
      %v1488 = vpop.permute.xlu0 %1487
      %v1490 = vmul.f32 %v1483, %v1488
      %1492 = vrot.lane.b32.xlu0 %v1490, 32
      %v1493 = vpop.permute.xlu0 %1492
      %v1495 = vadd.f32 %v1485, %v1493
      %v1496 = vtanh.pop %v1495
      %1498 = vrot.lane.b32.xlu0 %v1496, 32
      %v1499 = vpop.permute.xlu0 %1498
      %v1501 = vmul.f32 %v1483, %v1499
      %v1502 = vld [vmem:[%s7 + $0x20] sm:$0xff]
      %v1503 = vld [vmem:[%s7 + $0x28] sm:$0xff]
      %v1504 = vld [vmem:[%s7 + $0x30] sm:$0xff]
      %v1505 = vld [vmem:[%s7 + $0x38] sm:$0xff]
      %1507 = vrot.lane.b32.xlu0 %v1501, 64
      %v1508 = vpop.permute.xlu0 %1507
      %v1509 = vsel %vm732, %v1508, 0
      %1511 = vmatpush.msra.mxu0 0.0
      %1512 = vmatpush.msra.mxu0 0.0
      %1513 = vmatpush.msra.mxu0 0.0
      %1514 = vmatpush.msra.mxu0 0.0
      %1515 = vmatpush.msra.mxu0 0.0
      %1516 = vmatpush.msra.mxu0 0.0
      %1517 = vmatpush.msra.mxu0 0.0
      %1518 = vmatpush.msra.mxu0 0.0
      %1519 = vmatpush.msra.mxu0 0.0
      %1520 = vmatpush.msra.mxu0 0.0
      %1521 = vmatpush.msra.mxu0 0.0
      %1522 = vmatpush.msra.mxu0 0.0
      %1523 = vmatpush.msra.mxu0 %v1505
      %1524 = vmatpush.msra.mxu0 %v1504
      %1525 = vmatpush.msra.mxu0 %v1503
      %1526 = vmatpush.msra.mxu0 %v1502
      %1527 = vmatmul.f32.gmra.mxu0 %v1509
      %v1528 = vpop.f32.mrf.mxu0
      %v1529 = vadd.f32 0.0, %v1528
      %1530 = vdwg.mxu0
      %1531 = vmatpush.msra.mxu0 0.0
      %1532 = vmatpush.msra.mxu0 0.0
      %1533 = vmatpush.msra.mxu0 0.0
      %1534 = vmatpush.msra.mxu0 0.0
      %1535 = vmatpush.msra.mxu0 0.0
      %1536 = vmatpush.msra.mxu0 0.0
      %1537 = vmatpush.msra.mxu0 0.0
      %1538 = vmatpush.msra.mxu0 0.0
      %1539 = vmatpush.msra.mxu0 0.0
      %1540 = vmatpush.msra.mxu0 0.0
      %1541 = vmatpush.msra.mxu0 0.0
      %1542 = vmatpush.msra.mxu0 0.0
      %1543 = vmatpush.msra.mxu0 %v1438
      %1544 = vmatpush.msra.mxu0 %v1437
      %1545 = vmatpush.msra.mxu0 %v1436
      %1546 = vmatpush.msra.mxu0 %v1435
      %1547 = vmatmul.f32.gmra.mxu0 %v1443
      %v1548 = vpop.f32.mrf.mxu0
      %v1549 = vadd.f32 %v1529, %v1548
      %1550 = vdwg.mxu0
      %v1551 = vadd.f32 %v1358, %v1344
      %1552 = vmatpush.msra.mxu0 0.0
      %1553 = vmatpush.msra.mxu0 0.0
      %1554 = vmatpush.msra.mxu0 0.0
      %1555 = vmatpush.msra.mxu0 0.0
      %1556 = vmatpush.msra.mxu0 0.0
      %1557 = vmatpush.msra.mxu0 0.0
      %1558 = vmatpush.msra.mxu0 0.0
      %1559 = vmatpush.msra.mxu0 0.0
      %1560 = vmatpush.msra.mxu0 0.0
      %1561 = vmatpush.msra.mxu0 0.0
      %1562 = vmatpush.msra.mxu0 0.0
      %1563 = vmatpush.msra.mxu0 0.0
      %1564 = vmatpush.msra.mxu0 %v1373
      %1565 = vmatpush.msra.mxu0 %v1372
      %1566 = vmatpush.msra.mxu0 %v1371
      %1567 = vmatpush.msra.mxu0 %v1370
      %1568 = vmatmul.f32.gmra.mxu0 %v1509
      %v1569 = vpop.f32.mrf.mxu0
      %v1570 = vadd.f32 %v1551, %v1569
      %1571 = vdwg.mxu0
      %v1572 = vxor.u32 %v1570, 2147483648
      %v1573 = vmul.f32 %v1572, 1.442695
      %v1574 = vpow.pop %v1573
      %v1575 = vadd.f32 %v1574, 1.0
      %v1576 = vrcp.pop %v1575
      %v1577 = vmul.f32 %v1575, %v1576
      %v1578 = vsub.f32 1.0, %v1577
      %v1579 = vmul.f32 %v1576, %v1578
      %v1580 = vadd.f32 %v1576, %v1579
      %vm1581 = vweird.f32 %v1575
      %vm1582 = vweird.f32 %v1576
      %vm1583 = vmor %vm1581, %vm1582
      %v1584 = vsel %vm1583, %v1576, %v1580
      %v1585 = vand.u32 2147483647, %v1575
      %vm1586 = vcmp.eq.f32.partialorder %v1585, 8.507059e+37
      %v1587 = vand.u32 %v1575, 2147483648
      %v1588 = vor.u32 1.1754944e-38, %v1587
      %v1589 = vsel %vm1586, %v1588, %v1584
      %v1590 = vmul.f32 1.0, %v1589
      %v1591 = vtanh.pop %v1570
      %v1592 = vmul.f32 %v1590, %v1495
      %1594 = vrot.lane.b32.xlu0 %v1591, 32
      %v1595 = vpop.permute.xlu0 %1594
      %v1597 = vmul.f32 %v1590, %v1595
      %1599 = vrot.lane.b32.xlu0 %v1597, 32
      %v1600 = vpop.permute.xlu0 %1599
      %v1602 = vadd.f32 %v1592, %v1600
      %v1603 = vtanh.pop %v1602
      %1605 = vrot.lane.b32.xlu0 %v1603, 32
      %v1606 = vpop.permute.xlu0 %1605
      %v1608 = vmul.f32 %v1590, %v1606
      %v1609 = vld [vmem:[%s7 + $0x40] sm:$0xff]
      %v1610 = vld [vmem:[%s7 + $0x48] sm:$0xff]
      %v1611 = vld [vmem:[%s7 + $0x50] sm:$0xff]
      %v1612 = vld [vmem:[%s7 + $0x58] sm:$0xff]
      %1614 = vrot.lane.b32.xlu0 %v1608, 64
      %v1615 = vpop.permute.xlu0 %1614
      %v1616 = vsel %vm732, %v1615, 0
      %1618 = vmatpush.msra.mxu0 0.0
      %1619 = vmatpush.msra.mxu0 0.0
      %1620 = vmatpush.msra.mxu0 0.0
      %1621 = vmatpush.msra.mxu0 0.0
      %1622 = vmatpush.msra.mxu0 0.0
      %1623 = vmatpush.msra.mxu0 0.0
      %1624 = vmatpush.msra.mxu0 0.0
      %1625 = vmatpush.msra.mxu0 0.0
      %1626 = vmatpush.msra.mxu0 0.0
      %1627 = vmatpush.msra.mxu0 0.0
      %1628 = vmatpush.msra.mxu0 0.0
      %1629 = vmatpush.msra.mxu0 0.0
      %1630 = vmatpush.msra.mxu0 %v1612
      %1631 = vmatpush.msra.mxu0 %v1611
      %1632 = vmatpush.msra.mxu0 %v1610
      %1633 = vmatpush.msra.mxu0 %v1609
      %1634 = vmatmul.f32.gmra.mxu0 %v1616
      %v1635 = vpop.f32.mrf.mxu0
      %v1636 = vadd.f32 0.0, %v1635
      %1637 = vdwg.mxu0
      %v1638 = vadd.f32 %v1549, %v1636
      %v1639 = vadd.f32 %v1359, %v1341
      %1640 = vmatpush.msra.mxu0 0.0
      %1641 = vmatpush.msra.mxu0 0.0
      %1642 = vmatpush.msra.mxu0 0.0
      %1643 = vmatpush.msra.mxu0 0.0
      %1644 = vmatpush.msra.mxu0 0.0
      %1645 = vmatpush.msra.mxu0 0.0
      %1646 = vmatpush.msra.mxu0 0.0
      %1647 = vmatpush.msra.mxu0 0.0
      %1648 = vmatpush.msra.mxu0 0.0
      %1649 = vmatpush.msra.mxu0 0.0
      %1650 = vmatpush.msra.mxu0 0.0
      %1651 = vmatpush.msra.mxu0 0.0
      %1652 = vmatpush.msra.mxu0 %v1373
      %1653 = vmatpush.msra.mxu0 %v1372
      %1654 = vmatpush.msra.mxu0 %v1371
      %1655 = vmatpush.msra.mxu0 %v1370
      %1656 = vmatmul.f32.gmra.mxu0 %v1616
      %v1657 = vpop.f32.mrf.mxu0
      %v1658 = vadd.f32 %v1639, %v1657
      %1659 = vdwg.mxu0
      %v1660 = vxor.u32 %v1658, 2147483648
      %v1661 = vmul.f32 %v1660, 1.442695
      %v1662 = vpow.pop %v1661
      %v1663 = vadd.f32 %v1662, 1.0
      %v1664 = vrcp.pop %v1663
      %v1665 = vmul.f32 %v1663, %v1664
      %v1666 = vsub.f32 1.0, %v1665
      %v1667 = vmul.f32 %v1664, %v1666
      %v1668 = vadd.f32 %v1664, %v1667
      %vm1669 = vweird.f32 %v1663
      %vm1670 = vweird.f32 %v1664
      %vm1671 = vmor %vm1669, %vm1670
      %v1672 = vsel %vm1671, %v1664, %v1668
      %v1673 = vand.u32 2147483647, %v1663
      %vm1674 = vcmp.eq.f32.partialorder %v1673, 8.507059e+37
      %v1675 = vand.u32 %v1663, 2147483648
      %v1676 = vor.u32 1.1754944e-38, %v1675
      %v1677 = vsel %vm1674, %v1676, %v1672
      %v1678 = vmul.f32 1.0, %v1677
      %v1679 = vtanh.pop %v1658
      %v1680 = vmul.f32 %v1678, %v1602
      %1682 = vrot.lane.b32.xlu0 %v1679, 32
      %v1683 = vpop.permute.xlu0 %1682
      %v1685 = vmul.f32 %v1678, %v1683
      %1687 = vrot.lane.b32.xlu0 %v1685, 32
      %v1688 = vpop.permute.xlu0 %1687
      %v1690 = vadd.f32 %v1680, %v1688
      %v1691 = vtanh.pop %v1690
      %1693 = vrot.lane.b32.xlu0 %v1691, 32
      %v1694 = vpop.permute.xlu0 %1693
      %v1696 = vmul.f32 %v1678, %v1694
      %v1697 = vld [vmem:[%s7 + $0x60] sm:$0xff]
      %v1698 = vld [vmem:[%s7 + $0x68] sm:$0xff]
      %v1699 = vld [vmem:[%s7 + $0x70] sm:$0xff]
      %v1700 = vld [vmem:[%s7 + $0x78] sm:$0xff]
      %1702 = vrot.lane.b32.xlu0 %v1696, 64
      %v1703 = vpop.permute.xlu0 %1702
      %v1704 = vsel %vm732, %v1703, 0
      %1706 = vmatpush.msra.mxu0 0.0
      %1707 = vmatpush.msra.mxu0 0.0
      %1708 = vmatpush.msra.mxu0 0.0
      %1709 = vmatpush.msra.mxu0 0.0
      %1710 = vmatpush.msra.mxu0 0.0
      %1711 = vmatpush.msra.mxu0 0.0
      %1712 = vmatpush.msra.mxu0 0.0
      %1713 = vmatpush.msra.mxu0 0.0
      %1714 = vmatpush.msra.mxu0 0.0
      %1715 = vmatpush.msra.mxu0 0.0
      %1716 = vmatpush.msra.mxu0 0.0
      %1717 = vmatpush.msra.mxu0 0.0
      %1718 = vmatpush.msra.mxu0 %v1700
      %1719 = vmatpush.msra.mxu0 %v1699
      %1720 = vmatpush.msra.mxu0 %v1698
      %1721 = vmatpush.msra.mxu0 %v1697
      %1722 = vmatmul.f32.gmra.mxu0 %v1704
      %v1723 = vpop.f32.mrf.mxu0
      %v1724 = vadd.f32 0.0, %v1723
      %1725 = vdwg.mxu0
      %v1726 = vadd.f32 %v1638, %v1724
      %v1727 = vadd.f32 %v1360, %v1338
      %1728 = vmatpush.msra.mxu0 0.0
      %1729 = vmatpush.msra.mxu0 0.0
      %1730 = vmatpush.msra.mxu0 0.0
      %1731 = vmatpush.msra.mxu0 0.0
      %1732 = vmatpush.msra.mxu0 0.0
      %1733 = vmatpush.msra.mxu0 0.0
      %1734 = vmatpush.msra.mxu0 0.0
      %1735 = vmatpush.msra.mxu0 0.0
      %1736 = vmatpush.msra.mxu0 0.0
      %1737 = vmatpush.msra.mxu0 0.0
      %1738 = vmatpush.msra.mxu0 0.0
      %1739 = vmatpush.msra.mxu0 0.0
      %1740 = vmatpush.msra.mxu0 %v1373
      %1741 = vmatpush.msra.mxu0 %v1372
      %1742 = vmatpush.msra.mxu0 %v1371
      %1743 = vmatpush.msra.mxu0 %v1370
      %1744 = vmatmul.f32.gmra.mxu0 %v1704
      %v1745 = vpop.f32.mrf.mxu0
      %v1746 = vadd.f32 %v1727, %v1745
      %1747 = vdwg.mxu0
      %v1748 = vxor.u32 %v1746, 2147483648
      %v1749 = vmul.f32 %v1748, 1.442695
      %v1750 = vpow.pop %v1749
      %v1751 = vadd.f32 %v1750, 1.0
      %v1752 = vrcp.pop %v1751
      %v1753 = vmul.f32 %v1751, %v1752
      %v1754 = vsub.f32 1.0, %v1753
      %v1755 = vmul.f32 %v1752, %v1754
      %v1756 = vadd.f32 %v1752, %v1755
      %vm1757 = vweird.f32 %v1751
      %vm1758 = vweird.f32 %v1752
      %vm1759 = vmor %vm1757, %vm1758
      %v1760 = vsel %vm1759, %v1752, %v1756
      %v1761 = vand.u32 2147483647, %v1751
      %vm1762 = vcmp.eq.f32.partialorder %v1761, 8.507059e+37
      %v1763 = vand.u32 %v1751, 2147483648
      %v1764 = vor.u32 1.1754944e-38, %v1763
      %v1765 = vsel %vm1762, %v1764, %v1760
      %v1766 = vmul.f32 1.0, %v1765
      %v1767 = vtanh.pop %v1746
      %v1768 = vmul.f32 %v1766, %v1690
      %1770 = vrot.lane.b32.xlu0 %v1767, 32
      %v1771 = vpop.permute.xlu0 %1770
      %v1773 = vmul.f32 %v1766, %v1771
      %1775 = vrot.lane.b32.xlu0 %v1773, 32
      %v1776 = vpop.permute.xlu0 %1775
      %v1778 = vadd.f32 %v1768, %v1776
      %v1779 = vtanh.pop %v1778
      %1781 = vrot.lane.b32.xlu0 %v1779, 32
      %v1782 = vpop.permute.xlu0 %1781
      %v1784 = vmul.f32 %v1766, %v1782
      %v1785 = vld [vmem:[%s7 + $0x80] sm:$0xff]
      %v1786 = vld [vmem:[%s7 + $0x88] sm:$0xff]
      %v1787 = vld [vmem:[%s7 + $0x90] sm:$0xff]
      %v1788 = vld [vmem:[%s7 + $0x98] sm:$0xff]
      %1790 = vrot.lane.b32.xlu0 %v1784, 64
      %v1791 = vpop.permute.xlu0 %1790
      %v1792 = vsel %vm732, %v1791, 0
      %1794 = vmatpush.msra.mxu0 0.0
      %1795 = vmatpush.msra.mxu0 0.0
      %1796 = vmatpush.msra.mxu0 0.0
      %1797 = vmatpush.msra.mxu0 0.0
      %1798 = vmatpush.msra.mxu0 0.0
      %1799 = vmatpush.msra.mxu0 0.0
      %1800 = vmatpush.msra.mxu0 0.0
      %1801 = vmatpush.msra.mxu0 0.0
      %1802 = vmatpush.msra.mxu0 0.0
      %1803 = vmatpush.msra.mxu0 0.0
      %1804 = vmatpush.msra.mxu0 0.0
      %1805 = vmatpush.msra.mxu0 0.0
      %1806 = vmatpush.msra.mxu0 %v1788
      %1807 = vmatpush.msra.mxu0 %v1787
      %1808 = vmatpush.msra.mxu0 %v1786
      %1809 = vmatpush.msra.mxu0 %v1785
      %1810 = vmatmul.f32.gmra.mxu0 %v1792
      %v1811 = vpop.f32.mrf.mxu0
      %v1812 = vadd.f32 0.0, %v1811
      %1813 = vdwg.mxu0
      %v1814 = vadd.f32 %v1726, %v1812
      %v1815 = vadd.f32 %v1361, %v1335
      %1816 = vmatpush.msra.mxu0 0.0
      %1817 = vmatpush.msra.mxu0 0.0
      %1818 = vmatpush.msra.mxu0 0.0
      %1819 = vmatpush.msra.mxu0 0.0
      %1820 = vmatpush.msra.mxu0 0.0
      %1821 = vmatpush.msra.mxu0 0.0
      %1822 = vmatpush.msra.mxu0 0.0
      %1823 = vmatpush.msra.mxu0 0.0
      %1824 = vmatpush.msra.mxu0 0.0
      %1825 = vmatpush.msra.mxu0 0.0
      %1826 = vmatpush.msra.mxu0 0.0
      %1827 = vmatpush.msra.mxu0 0.0
      %1828 = vmatpush.msra.mxu0 %v1373
      %1829 = vmatpush.msra.mxu0 %v1372
      %1830 = vmatpush.msra.mxu0 %v1371
      %1831 = vmatpush.msra.mxu0 %v1370
      %1832 = vmatmul.f32.gmra.mxu0 %v1792
      %v1833 = vpop.f32.mrf.mxu0
      %v1834 = vadd.f32 %v1815, %v1833
      %1835 = vdwg.mxu0
      %v1836 = vxor.u32 %v1834, 2147483648
      %v1837 = vmul.f32 %v1836, 1.442695
      %v1838 = vpow.pop %v1837
      %v1839 = vadd.f32 %v1838, 1.0
      %v1840 = vrcp.pop %v1839
      %v1841 = vmul.f32 %v1839, %v1840
      %v1842 = vsub.f32 1.0, %v1841
      %v1843 = vmul.f32 %v1840, %v1842
      %v1844 = vadd.f32 %v1840, %v1843
      %vm1845 = vweird.f32 %v1839
      %vm1846 = vweird.f32 %v1840
      %vm1847 = vmor %vm1845, %vm1846
      %v1848 = vsel %vm1847, %v1840, %v1844
      %v1849 = vand.u32 2147483647, %v1839
      %vm1850 = vcmp.eq.f32.partialorder %v1849, 8.507059e+37
      %v1851 = vand.u32 %v1839, 2147483648
      %v1852 = vor.u32 1.1754944e-38, %v1851
      %v1853 = vsel %vm1850, %v1852, %v1848
      %v1854 = vmul.f32 1.0, %v1853
      %v1855 = vtanh.pop %v1834
      %v1856 = vmul.f32 %v1854, %v1778
      %1858 = vrot.lane.b32.xlu0 %v1855, 32
      %v1859 = vpop.permute.xlu0 %1858
      %v1861 = vmul.f32 %v1854, %v1859
      %1863 = vrot.lane.b32.xlu0 %v1861, 32
      %v1864 = vpop.permute.xlu0 %1863
      %v1866 = vadd.f32 %v1856, %v1864
      %v1867 = vtanh.pop %v1866
      %1869 = vrot.lane.b32.xlu0 %v1867, 32
      %v1870 = vpop.permute.xlu0 %1869
      %v1872 = vmul.f32 %v1854, %v1870
      %v1873 = vld [vmem:[%s7 + $0xa0] sm:$0xff]
      %v1874 = vld [vmem:[%s7 + $0xa8] sm:$0xff]
      %v1875 = vld [vmem:[%s7 + $0xb0] sm:$0xff]
      %v1876 = vld [vmem:[%s7 + $0xb8] sm:$0xff]
      %1878 = vrot.lane.b32.xlu0 %v1872, 64
      %v1879 = vpop.permute.xlu0 %1878
      %v1880 = vsel %vm732, %v1879, 0
      %1882 = vmatpush.msra.mxu0 0.0
      %1883 = vmatpush.msra.mxu0 0.0
      %1884 = vmatpush.msra.mxu0 0.0
      %1885 = vmatpush.msra.mxu0 0.0
      %1886 = vmatpush.msra.mxu0 0.0
      %1887 = vmatpush.msra.mxu0 0.0
      %1888 = vmatpush.msra.mxu0 0.0
      %1889 = vmatpush.msra.mxu0 0.0
      %1890 = vmatpush.msra.mxu0 0.0
      %1891 = vmatpush.msra.mxu0 0.0
      %1892 = vmatpush.msra.mxu0 0.0
      %1893 = vmatpush.msra.mxu0 0.0
      %1894 = vmatpush.msra.mxu0 %v1876
      %1895 = vmatpush.msra.mxu0 %v1875
      %1896 = vmatpush.msra.mxu0 %v1874
      %1897 = vmatpush.msra.mxu0 %v1873
      %1898 = vmatmul.f32.gmra.mxu0 %v1880
      %v1899 = vpop.f32.mrf.mxu0
      %v1900 = vadd.f32 0.0, %v1899
      %1901 = vdwg.mxu0
      %v1902 = vadd.f32 %v1814, %v1900
      %v1903 = vadd.f32 %v1362, %v1332
      %1904 = vmatpush.msra.mxu0 0.0
      %1905 = vmatpush.msra.mxu0 0.0
      %1906 = vmatpush.msra.mxu0 0.0
      %1907 = vmatpush.msra.mxu0 0.0
      %1908 = vmatpush.msra.mxu0 0.0
      %1909 = vmatpush.msra.mxu0 0.0
      %1910 = vmatpush.msra.mxu0 0.0
      %1911 = vmatpush.msra.mxu0 0.0
      %1912 = vmatpush.msra.mxu0 0.0
      %1913 = vmatpush.msra.mxu0 0.0
      %1914 = vmatpush.msra.mxu0 0.0
      %1915 = vmatpush.msra.mxu0 0.0
      %1916 = vmatpush.msra.mxu0 %v1373
      %1917 = vmatpush.msra.mxu0 %v1372
      %1918 = vmatpush.msra.mxu0 %v1371
      %1919 = vmatpush.msra.mxu0 %v1370
      %1920 = vmatmul.f32.gmra.mxu0 %v1880
      %v1921 = vpop.f32.mrf.mxu0
      %v1922 = vadd.f32 %v1903, %v1921
      %1923 = vdwg.mxu0
      %v1924 = vxor.u32 %v1922, 2147483648
      %v1925 = vmul.f32 %v1924, 1.442695
      %v1926 = vpow.pop %v1925
      %v1927 = vadd.f32 %v1926, 1.0
      %v1928 = vrcp.pop %v1927
      %v1929 = vmul.f32 %v1927, %v1928
      %v1930 = vsub.f32 1.0, %v1929
      %v1931 = vmul.f32 %v1928, %v1930
      %v1932 = vadd.f32 %v1928, %v1931
      %vm1933 = vweird.f32 %v1927
      %vm1934 = vweird.f32 %v1928
      %vm1935 = vmor %vm1933, %vm1934
      %v1936 = vsel %vm1935, %v1928, %v1932
      %v1937 = vand.u32 2147483647, %v1927
      %vm1938 = vcmp.eq.f32.partialorder %v1937, 8.507059e+37
      %v1939 = vand.u32 %v1927, 2147483648
      %v1940 = vor.u32 1.1754944e-38, %v1939
      %v1941 = vsel %vm1938, %v1940, %v1936
      %v1942 = vmul.f32 1.0, %v1941
      %v1943 = vtanh.pop %v1922
      %v1944 = vmul.f32 %v1942, %v1866
      %1946 = vrot.lane.b32.xlu0 %v1943, 32
      %v1947 = vpop.permute.xlu0 %1946
      %v1949 = vmul.f32 %v1942, %v1947
      %1951 = vrot.lane.b32.xlu0 %v1949, 32
      %v1952 = vpop.permute.xlu0 %1951
      %v1954 = vadd.f32 %v1944, %v1952
      %v1955 = vtanh.pop %v1954
      %1957 = vrot.lane.b32.xlu0 %v1955, 32
      %v1958 = vpop.permute.xlu0 %1957
      %v1960 = vmul.f32 %v1942, %v1958
      %v1961 = vld [vmem:[%s7 + $0xc0] sm:$0xff]
      %v1962 = vld [vmem:[%s7 + $0xc8] sm:$0xff]
      %v1963 = vld [vmem:[%s7 + $0xd0] sm:$0xff]
      %v1964 = vld [vmem:[%s7 + $0xd8] sm:$0xff]
      %1966 = vrot.lane.b32.xlu0 %v1960, 64
      %v1967 = vpop.permute.xlu0 %1966
      %v1968 = vsel %vm732, %v1967, 0
      %1970 = vmatpush.msra.mxu0 0.0
      %1971 = vmatpush.msra.mxu0 0.0
      %1972 = vmatpush.msra.mxu0 0.0
      %1973 = vmatpush.msra.mxu0 0.0
      %1974 = vmatpush.msra.mxu0 0.0
      %1975 = vmatpush.msra.mxu0 0.0
      %1976 = vmatpush.msra.mxu0 0.0
      %1977 = vmatpush.msra.mxu0 0.0
      %1978 = vmatpush.msra.mxu0 0.0
      %1979 = vmatpush.msra.mxu0 0.0
      %1980 = vmatpush.msra.mxu0 0.0
      %1981 = vmatpush.msra.mxu0 0.0
      %1982 = vmatpush.msra.mxu0 %v1964
      %1983 = vmatpush.msra.mxu0 %v1963
      %1984 = vmatpush.msra.mxu0 %v1962
      %1985 = vmatpush.msra.mxu0 %v1961
      %1986 = vmatmul.f32.gmra.mxu0 %v1968
      %v1987 = vpop.f32.mrf.mxu0
      %v1988 = vadd.f32 0.0, %v1987
      %1989 = vdwg.mxu0
      %v1990 = vadd.f32 %v1902, %v1988
      %v1991 = vadd.f32 %v1363, %v1329
      %1992 = vmatpush.msra.mxu0 0.0
      %1993 = vmatpush.msra.mxu0 0.0
      %1994 = vmatpush.msra.mxu0 0.0
      %1995 = vmatpush.msra.mxu0 0.0
      %1996 = vmatpush.msra.mxu0 0.0
      %1997 = vmatpush.msra.mxu0 0.0
      %1998 = vmatpush.msra.mxu0 0.0
      %1999 = vmatpush.msra.mxu0 0.0
      %2000 = vmatpush.msra.mxu0 0.0
      %2001 = vmatpush.msra.mxu0 0.0
      %2002 = vmatpush.msra.mxu0 0.0
      %2003 = vmatpush.msra.mxu0 0.0
      %2004 = vmatpush.msra.mxu0 %v1373
      %2005 = vmatpush.msra.mxu0 %v1372
      %2006 = vmatpush.msra.mxu0 %v1371
      %2007 = vmatpush.msra.mxu0 %v1370
      %2008 = vmatmul.f32.gmra.mxu0 %v1968
      %v2009 = vpop.f32.mrf.mxu0
      %v2010 = vadd.f32 %v1991, %v2009
      %2011 = vdwg.mxu0
      %v2012 = vxor.u32 %v2010, 2147483648
      %v2013 = vmul.f32 %v2012, 1.442695
      %v2014 = vpow.pop %v2013
      %v2015 = vadd.f32 %v2014, 1.0
      %v2016 = vrcp.pop %v2015
      %v2017 = vmul.f32 %v2015, %v2016
      %v2018 = vsub.f32 1.0, %v2017
      %v2019 = vmul.f32 %v2016, %v2018
      %v2020 = vadd.f32 %v2016, %v2019
      %vm2021 = vweird.f32 %v2015
      %vm2022 = vweird.f32 %v2016
      %vm2023 = vmor %vm2021, %vm2022
      %v2024 = vsel %vm2023, %v2016, %v2020
      %v2025 = vand.u32 2147483647, %v2015
      %vm2026 = vcmp.eq.f32.partialorder %v2025, 8.507059e+37
      %v2027 = vand.u32 %v2015, 2147483648
      %v2028 = vor.u32 1.1754944e-38, %v2027
      %v2029 = vsel %vm2026, %v2028, %v2024
      %v2030 = vmul.f32 1.0, %v2029
      %v2031 = vtanh.pop %v2010
      %v2032 = vmul.f32 %v2030, %v1954
      %2034 = vrot.lane.b32.xlu0 %v2031, 32
      %v2035 = vpop.permute.xlu0 %2034
      %v2037 = vmul.f32 %v2030, %v2035
      %2039 = vrot.lane.b32.xlu0 %v2037, 32
      %v2040 = vpop.permute.xlu0 %2039
      %v2042 = vadd.f32 %v2032, %v2040
      %v2043 = vtanh.pop %v2042
      %2045 = vrot.lane.b32.xlu0 %v2043, 32
      %v2046 = vpop.permute.xlu0 %2045
      %v2048 = vmul.f32 %v2030, %v2046
      %v2049 = vld [vmem:[%s7 + $0xe0] sm:$0xff]
      %v2050 = vld [vmem:[%s7 + $0xe8] sm:$0xff]
      %v2051 = vld [vmem:[%s7 + $0xf0] sm:$0xff]
      %v2052 = vld [vmem:[%s7 + $0xf8] sm:$0xff]
      %2054 = vrot.lane.b32.xlu0 %v2048, 64
      %v2055 = vpop.permute.xlu0 %2054
      %v2056 = vsel %vm732, %v2055, 0
      %2058 = vmatpush.msra.mxu0 0.0
      %2059 = vmatpush.msra.mxu0 0.0
      %2060 = vmatpush.msra.mxu0 0.0
      %2061 = vmatpush.msra.mxu0 0.0
      %2062 = vmatpush.msra.mxu0 0.0
      %2063 = vmatpush.msra.mxu0 0.0
      %2064 = vmatpush.msra.mxu0 0.0
      %2065 = vmatpush.msra.mxu0 0.0
      %2066 = vmatpush.msra.mxu0 0.0
      %2067 = vmatpush.msra.mxu0 0.0
      %2068 = vmatpush.msra.mxu0 0.0
      %2069 = vmatpush.msra.mxu0 0.0
      %2070 = vmatpush.msra.mxu0 %v2052
      %2071 = vmatpush.msra.mxu0 %v2051
      %2072 = vmatpush.msra.mxu0 %v2050
      %2073 = vmatpush.msra.mxu0 %v2049
      %2074 = vmatmul.f32.gmra.mxu0 %v2056
      %v2075 = vpop.f32.mrf.mxu0
      %v2076 = vadd.f32 0.0, %v2075
      %2077 = vdwg.mxu0
      %v2078 = vadd.f32 %v1990, %v2076
      %v2079 = vadd.f32 %v1364, %v1326
      %2080 = vmatpush.msra.mxu0 0.0
      %2081 = vmatpush.msra.mxu0 0.0
      %2082 = vmatpush.msra.mxu0 0.0
      %2083 = vmatpush.msra.mxu0 0.0
      %2084 = vmatpush.msra.mxu0 0.0
      %2085 = vmatpush.msra.mxu0 0.0
      %2086 = vmatpush.msra.mxu0 0.0
      %2087 = vmatpush.msra.mxu0 0.0
      %2088 = vmatpush.msra.mxu0 0.0
      %2089 = vmatpush.msra.mxu0 0.0
      %2090 = vmatpush.msra.mxu0 0.0
      %2091 = vmatpush.msra.mxu0 0.0
      %2092 = vmatpush.msra.mxu0 %v1373
      %2093 = vmatpush.msra.mxu0 %v1372
      %2094 = vmatpush.msra.mxu0 %v1371
      %2095 = vmatpush.msra.mxu0 %v1370
      %2096 = vmatmul.f32.gmra.mxu0 %v2056
      %v2097 = vpop.f32.mrf.mxu0
      %v2098 = vadd.f32 %v2079, %v2097
      %2099 = vdwg.mxu0
      %v2100 = vxor.u32 %v2098, 2147483648
      %v2101 = vmul.f32 %v2100, 1.442695
      %v2102 = vpow.pop %v2101
      %v2103 = vadd.f32 %v2102, 1.0
      %v2104 = vrcp.pop %v2103
      %v2105 = vmul.f32 %v2103, %v2104
      %v2106 = vsub.f32 1.0, %v2105
      %v2107 = vmul.f32 %v2104, %v2106
      %v2108 = vadd.f32 %v2104, %v2107
      %vm2109 = vweird.f32 %v2103
      %vm2110 = vweird.f32 %v2104
      %vm2111 = vmor %vm2109, %vm2110
      %v2112 = vsel %vm2111, %v2104, %v2108
      %v2113 = vand.u32 2147483647, %v2103
      %vm2114 = vcmp.eq.f32.partialorder %v2113, 8.507059e+37
      %v2115 = vand.u32 %v2103, 2147483648
      %v2116 = vor.u32 1.1754944e-38, %v2115
      %v2117 = vsel %vm2114, %v2116, %v2112
      %v2118 = vmul.f32 1.0, %v2117
      %v2119 = vtanh.pop %v2098
      %v2120 = vmul.f32 %v2118, %v2042
      %2122 = vrot.lane.b32.xlu0 %v2119, 32
      %v2123 = vpop.permute.xlu0 %2122
      %v2125 = vmul.f32 %v2118, %v2123
      %2127 = vrot.lane.b32.xlu0 %v2125, 32
      %v2128 = vpop.permute.xlu0 %2127
      %v2130 = vadd.f32 %v2120, %v2128
      %v2131 = vtanh.pop %v2130
      %2133 = vrot.lane.b32.xlu0 %v2131, 32
      %v2134 = vpop.permute.xlu0 %2133
      %v2136 = vmul.f32 %v2118, %v2134
      %v2137 = vld [vmem:[%s7 + $0x100] sm:$0xff]
      %v2138 = vld [vmem:[%s7 + $0x108] sm:$0xff]
      %v2139 = vld [vmem:[%s7 + $0x110] sm:$0xff]
      %v2140 = vld [vmem:[%s7 + $0x118] sm:$0xff]
      %2142 = vrot.lane.b32.xlu0 %v2136, 64
      %v2143 = vpop.permute.xlu0 %2142
      %v2144 = vsel %vm732, %v2143, 0
      %2146 = vmatpush.msra.mxu0 0.0
      %2147 = vmatpush.msra.mxu0 0.0
      %2148 = vmatpush.msra.mxu0 0.0
      %2149 = vmatpush.msra.mxu0 0.0
      %2150 = vmatpush.msra.mxu0 0.0
      %2151 = vmatpush.msra.mxu0 0.0
      %2152 = vmatpush.msra.mxu0 0.0
      %2153 = vmatpush.msra.mxu0 0.0
      %2154 = vmatpush.msra.mxu0 0.0
      %2155 = vmatpush.msra.mxu0 0.0
      %2156 = vmatpush.msra.mxu0 0.0
      %2157 = vmatpush.msra.mxu0 0.0
      %2158 = vmatpush.msra.mxu0 %v2140
      %2159 = vmatpush.msra.mxu0 %v2139
      %2160 = vmatpush.msra.mxu0 %v2138
      %2161 = vmatpush.msra.mxu0 %v2137
      %2162 = vmatmul.f32.gmra.mxu0 %v2144
      %v2163 = vpop.f32.mrf.mxu0
      %v2164 = vadd.f32 0.0, %v2163
      %2165 = vdwg.mxu0
      %v2166 = vadd.f32 %v2078, %v2164
      %v2167 = vadd.f32 %v1365, %v1323
      %2168 = vmatpush.msra.mxu0 0.0
      %2169 = vmatpush.msra.mxu0 0.0
      %2170 = vmatpush.msra.mxu0 0.0
      %2171 = vmatpush.msra.mxu0 0.0
      %2172 = vmatpush.msra.mxu0 0.0
      %2173 = vmatpush.msra.mxu0 0.0
      %2174 = vmatpush.msra.mxu0 0.0
      %2175 = vmatpush.msra.mxu0 0.0
      %2176 = vmatpush.msra.mxu0 0.0
      %2177 = vmatpush.msra.mxu0 0.0
      %2178 = vmatpush.msra.mxu0 0.0
      %2179 = vmatpush.msra.mxu0 0.0
      %2180 = vmatpush.msra.mxu0 %v1373
      %2181 = vmatpush.msra.mxu0 %v1372
      %2182 = vmatpush.msra.mxu0 %v1371
      %2183 = vmatpush.msra.mxu0 %v1370
      %2184 = vmatmul.f32.gmra.mxu0 %v2144
      %v2185 = vpop.f32.mrf.mxu0
      %v2186 = vadd.f32 %v2167, %v2185
      %2187 = vdwg.mxu0
      %v2188 = vxor.u32 %v2186, 2147483648
      %v2189 = vmul.f32 %v2188, 1.442695
      %v2190 = vpow.pop %v2189
      %v2191 = vadd.f32 %v2190, 1.0
      %v2192 = vrcp.pop %v2191
      %v2193 = vmul.f32 %v2191, %v2192
      %v2194 = vsub.f32 1.0, %v2193
      %v2195 = vmul.f32 %v2192, %v2194
      %v2196 = vadd.f32 %v2192, %v2195
      %vm2197 = vweird.f32 %v2191
      %vm2198 = vweird.f32 %v2192
      %vm2199 = vmor %vm2197, %vm2198
      %v2200 = vsel %vm2199, %v2192, %v2196
      %v2201 = vand.u32 2147483647, %v2191
      %vm2202 = vcmp.eq.f32.partialorder %v2201, 8.507059e+37
      %v2203 = vand.u32 %v2191, 2147483648
      %v2204 = vor.u32 1.1754944e-38, %v2203
      %v2205 = vsel %vm2202, %v2204, %v2200
      %v2206 = vmul.f32 1.0, %v2205
      %v2207 = vtanh.pop %v2186
      %v2208 = vmul.f32 %v2206, %v2130
      %2210 = vrot.lane.b32.xlu0 %v2207, 32
      %v2211 = vpop.permute.xlu0 %2210
      %v2213 = vmul.f32 %v2206, %v2211
      %2215 = vrot.lane.b32.xlu0 %v2213, 32
      %v2216 = vpop.permute.xlu0 %2215
      %v2218 = vadd.f32 %v2208, %v2216
      %v2219 = vtanh.pop %v2218
      %2221 = vrot.lane.b32.xlu0 %v2219, 32
      %v2222 = vpop.permute.xlu0 %2221
      %v2224 = vmul.f32 %v2206, %v2222
      %v2225 = vld [vmem:[%s7 + $0x120] sm:$0xff]
      %v2226 = vld [vmem:[%s7 + $0x128] sm:$0xff]
      %v2227 = vld [vmem:[%s7 + $0x130] sm:$0xff]
      %v2228 = vld [vmem:[%s7 + $0x138] sm:$0xff]
      %2230 = vrot.lane.b32.xlu0 %v2224, 64
      %v2231 = vpop.permute.xlu0 %2230
      %v2232 = vsel %vm732, %v2231, 0
      %2234 = vmatpush.msra.mxu0 0.0
      %2235 = vmatpush.msra.mxu0 0.0
      %2236 = vmatpush.msra.mxu0 0.0
      %2237 = vmatpush.msra.mxu0 0.0
      %2238 = vmatpush.msra.mxu0 0.0
      %2239 = vmatpush.msra.mxu0 0.0
      %2240 = vmatpush.msra.mxu0 0.0
      %2241 = vmatpush.msra.mxu0 0.0
      %2242 = vmatpush.msra.mxu0 0.0
      %2243 = vmatpush.msra.mxu0 0.0
      %2244 = vmatpush.msra.mxu0 0.0
      %2245 = vmatpush.msra.mxu0 0.0
      %2246 = vmatpush.msra.mxu0 %v2228
      %2247 = vmatpush.msra.mxu0 %v2227
      %2248 = vmatpush.msra.mxu0 %v2226
      %2249 = vmatpush.msra.mxu0 %v2225
      %2250 = vmatmul.f32.gmra.mxu0 %v2232
      %v2251 = vpop.f32.mrf.mxu0
      %v2252 = vadd.f32 0.0, %v2251
      %2253 = vdwg.mxu0
      %v2254 = vadd.f32 %v2166, %v2252
      %v2255 = vadd.f32 %v1366, %v1320
      %2256 = vmatpush.msra.mxu0 0.0
      %2257 = vmatpush.msra.mxu0 0.0
      %2258 = vmatpush.msra.mxu0 0.0
      %2259 = vmatpush.msra.mxu0 0.0
      %2260 = vmatpush.msra.mxu0 0.0
      %2261 = vmatpush.msra.mxu0 0.0
      %2262 = vmatpush.msra.mxu0 0.0
      %2263 = vmatpush.msra.mxu0 0.0
      %2264 = vmatpush.msra.mxu0 0.0
      %2265 = vmatpush.msra.mxu0 0.0
      %2266 = vmatpush.msra.mxu0 0.0
      %2267 = vmatpush.msra.mxu0 0.0
      %2268 = vmatpush.msra.mxu0 %v1373
      %2269 = vmatpush.msra.mxu0 %v1372
      %2270 = vmatpush.msra.mxu0 %v1371
      %2271 = vmatpush.msra.mxu0 %v1370
      %2272 = vmatmul.f32.gmra.mxu0 %v2232
      %v2273 = vpop.f32.mrf.mxu0
      %v2274 = vadd.f32 %v2255, %v2273
      %2275 = vdwg.mxu0
      %v2276 = vxor.u32 %v2274, 2147483648
      %v2277 = vmul.f32 %v2276, 1.442695
      %v2278 = vpow.pop %v2277
      %v2279 = vadd.f32 %v2278, 1.0
      %v2280 = vrcp.pop %v2279
      %v2281 = vmul.f32 %v2279, %v2280
      %v2282 = vsub.f32 1.0, %v2281
      %v2283 = vmul.f32 %v2280, %v2282
      %v2284 = vadd.f32 %v2280, %v2283
      %vm2285 = vweird.f32 %v2279
      %vm2286 = vweird.f32 %v2280
      %vm2287 = vmor %vm2285, %vm2286
      %v2288 = vsel %vm2287, %v2280, %v2284
      %v2289 = vand.u32 2147483647, %v2279
      %vm2290 = vcmp.eq.f32.partialorder %v2289, 8.507059e+37
      %v2291 = vand.u32 %v2279, 2147483648
      %v2292 = vor.u32 1.1754944e-38, %v2291
      %v2293 = vsel %vm2290, %v2292, %v2288
      %v2294 = vmul.f32 1.0, %v2293
      %v2295 = vtanh.pop %v2274
      %v2296 = vmul.f32 %v2294, %v2218
      %2298 = vrot.lane.b32.xlu0 %v2295, 32
      %v2299 = vpop.permute.xlu0 %2298
      %v2301 = vmul.f32 %v2294, %v2299
      %2303 = vrot.lane.b32.xlu0 %v2301, 32
      %v2304 = vpop.permute.xlu0 %2303
      %v2306 = vadd.f32 %v2296, %v2304
      %v2307 = vtanh.pop %v2306
      %2309 = vrot.lane.b32.xlu0 %v2307, 32
      %v2310 = vpop.permute.xlu0 %2309
      %v2312 = vmul.f32 %v2294, %v2310
      %v2313 = vld [vmem:[%s7 + $0x140] sm:$0xff]
      %v2314 = vld [vmem:[%s7 + $0x148] sm:$0xff]
      %v2315 = vld [vmem:[%s7 + $0x150] sm:$0xff]
      %v2316 = vld [vmem:[%s7 + $0x158] sm:$0xff]
      %2318 = vrot.lane.b32.xlu0 %v2312, 64
      %v2319 = vpop.permute.xlu0 %2318
      %v2320 = vsel %vm732, %v2319, 0
      %2322 = vmatpush.msra.mxu0 0.0
      %2323 = vmatpush.msra.mxu0 0.0
      %2324 = vmatpush.msra.mxu0 0.0
      %2325 = vmatpush.msra.mxu0 0.0
      %2326 = vmatpush.msra.mxu0 0.0
      %2327 = vmatpush.msra.mxu0 0.0
      %2328 = vmatpush.msra.mxu0 0.0
      %2329 = vmatpush.msra.mxu0 0.0
      %2330 = vmatpush.msra.mxu0 0.0
      %2331 = vmatpush.msra.mxu0 0.0
      %2332 = vmatpush.msra.mxu0 0.0
      %2333 = vmatpush.msra.mxu0 0.0
      %2334 = vmatpush.msra.mxu0 %v2316
      %2335 = vmatpush.msra.mxu0 %v2315
      %2336 = vmatpush.msra.mxu0 %v2314
      %2337 = vmatpush.msra.mxu0 %v2313
      %2338 = vmatmul.f32.gmra.mxu0 %v2320
      %v2339 = vpop.f32.mrf.mxu0
      %v2340 = vadd.f32 0.0, %v2339
      %2341 = vdwg.mxu0
      %v2342 = vadd.f32 %v2254, %v2340
      %v2343 = vadd.f32 %v1367, %v1317
      %2344 = vmatpush.msra.mxu0 0.0
      %2345 = vmatpush.msra.mxu0 0.0
      %2346 = vmatpush.msra.mxu0 0.0
      %2347 = vmatpush.msra.mxu0 0.0
      %2348 = vmatpush.msra.mxu0 0.0
      %2349 = vmatpush.msra.mxu0 0.0
      %2350 = vmatpush.msra.mxu0 0.0
      %2351 = vmatpush.msra.mxu0 0.0
      %2352 = vmatpush.msra.mxu0 0.0
      %2353 = vmatpush.msra.mxu0 0.0
      %2354 = vmatpush.msra.mxu0 0.0
      %2355 = vmatpush.msra.mxu0 0.0
      %2356 = vmatpush.msra.mxu0 %v1373
      %2357 = vmatpush.msra.mxu0 %v1372
      %2358 = vmatpush.msra.mxu0 %v1371
      %2359 = vmatpush.msra.mxu0 %v1370
      %2360 = vmatmul.f32.gmra.mxu0 %v2320
      %v2361 = vpop.f32.mrf.mxu0
      %v2362 = vadd.f32 %v2343, %v2361
      %2363 = vdwg.mxu0
      %v2364 = vxor.u32 %v2362, 2147483648
      %v2365 = vmul.f32 %v2364, 1.442695
      %v2366 = vpow.pop %v2365
      %v2367 = vadd.f32 %v2366, 1.0
      %v2368 = vrcp.pop %v2367
      %v2369 = vmul.f32 %v2367, %v2368
      %v2370 = vsub.f32 1.0, %v2369
      %v2371 = vmul.f32 %v2368, %v2370
      %v2372 = vadd.f32 %v2368, %v2371
      %vm2373 = vweird.f32 %v2367
      %vm2374 = vweird.f32 %v2368
      %vm2375 = vmor %vm2373, %vm2374
      %v2376 = vsel %vm2375, %v2368, %v2372
      %v2377 = vand.u32 2147483647, %v2367
      %vm2378 = vcmp.eq.f32.partialorder %v2377, 8.507059e+37
      %v2379 = vand.u32 %v2367, 2147483648
      %v2380 = vor.u32 1.1754944e-38, %v2379
      %v2381 = vsel %vm2378, %v2380, %v2376
      %v2382 = vmul.f32 1.0, %v2381
      %v2383 = vtanh.pop %v2362
      %v2384 = vmul.f32 %v2382, %v2306
      %2386 = vrot.lane.b32.xlu0 %v2383, 32
      %v2387 = vpop.permute.xlu0 %2386
      %v2389 = vmul.f32 %v2382, %v2387
      %2391 = vrot.lane.b32.xlu0 %v2389, 32
      %v2392 = vpop.permute.xlu0 %2391
      %v2394 = vadd.f32 %v2384, %v2392
      %v2395 = vtanh.pop %v2394
      %2397 = vrot.lane.b32.xlu0 %v2395, 32
      %v2398 = vpop.permute.xlu0 %2397
      %v2400 = vmul.f32 %v2382, %v2398
      %v2401 = vld [vmem:[%s7 + $0x160] sm:$0xff]
      %v2402 = vld [vmem:[%s7 + $0x168] sm:$0xff]
      %v2403 = vld [vmem:[%s7 + $0x170] sm:$0xff]
      %v2404 = vld [vmem:[%s7 + $0x178] sm:$0xff]
      %2406 = vrot.lane.b32.xlu0 %v2400, 64
      %v2407 = vpop.permute.xlu0 %2406
      %v2408 = vsel %vm732, %v2407, 0
      %2410 = vmatpush.msra.mxu0 0.0
      %2411 = vmatpush.msra.mxu0 0.0
      %2412 = vmatpush.msra.mxu0 0.0
      %2413 = vmatpush.msra.mxu0 0.0
      %2414 = vmatpush.msra.mxu0 0.0
      %2415 = vmatpush.msra.mxu0 0.0
      %2416 = vmatpush.msra.mxu0 0.0
      %2417 = vmatpush.msra.mxu0 0.0
      %2418 = vmatpush.msra.mxu0 0.0
      %2419 = vmatpush.msra.mxu0 0.0
      %2420 = vmatpush.msra.mxu0 0.0
      %2421 = vmatpush.msra.mxu0 0.0
      %2422 = vmatpush.msra.mxu0 %v2404
      %2423 = vmatpush.msra.mxu0 %v2403
      %2424 = vmatpush.msra.mxu0 %v2402
      %2425 = vmatpush.msra.mxu0 %v2401
      %2426 = vmatmul.f32.gmra.mxu0 %v2408
      %v2427 = vpop.f32.mrf.mxu0
      %v2428 = vadd.f32 0.0, %v2427
      %2429 = vdwg.mxu0
      %v2430 = vadd.f32 %v2342, %v2428
      %v2431 = vadd.f32 %v1368, %v1314
      %2432 = vmatpush.msra.mxu0 0.0
      %2433 = vmatpush.msra.mxu0 0.0
      %2434 = vmatpush.msra.mxu0 0.0
      %2435 = vmatpush.msra.mxu0 0.0
      %2436 = vmatpush.msra.mxu0 0.0
      %2437 = vmatpush.msra.mxu0 0.0
      %2438 = vmatpush.msra.mxu0 0.0
      %2439 = vmatpush.msra.mxu0 0.0
      %2440 = vmatpush.msra.mxu0 0.0
      %2441 = vmatpush.msra.mxu0 0.0
      %2442 = vmatpush.msra.mxu0 0.0
      %2443 = vmatpush.msra.mxu0 0.0
      %2444 = vmatpush.msra.mxu0 %v1373
      %2445 = vmatpush.msra.mxu0 %v1372
      %2446 = vmatpush.msra.mxu0 %v1371
      %2447 = vmatpush.msra.mxu0 %v1370
      %2448 = vmatmul.f32.gmra.mxu0 %v2408
      %v2449 = vpop.f32.mrf.mxu0
      %v2450 = vadd.f32 %v2431, %v2449
      %2451 = vdwg.mxu0
      %v2452 = vxor.u32 %v2450, 2147483648
      %v2453 = vmul.f32 %v2452, 1.442695
      %v2454 = vpow.pop %v2453
      %v2455 = vadd.f32 %v2454, 1.0
      %v2456 = vrcp.pop %v2455
      %v2457 = vmul.f32 %v2455, %v2456
      %v2458 = vsub.f32 1.0, %v2457
      %v2459 = vmul.f32 %v2456, %v2458
      %v2460 = vadd.f32 %v2456, %v2459
      %vm2461 = vweird.f32 %v2455
      %vm2462 = vweird.f32 %v2456
      %vm2463 = vmor %vm2461, %vm2462
      %v2464 = vsel %vm2463, %v2456, %v2460
      %v2465 = vand.u32 2147483647, %v2455
      %vm2466 = vcmp.eq.f32.partialorder %v2465, 8.507059e+37
      %v2467 = vand.u32 %v2455, 2147483648
      %v2468 = vor.u32 1.1754944e-38, %v2467
      %v2469 = vsel %vm2466, %v2468, %v2464
      %v2470 = vmul.f32 1.0, %v2469
      %v2471 = vtanh.pop %v2450
      %v2472 = vmul.f32 %v2470, %v2394
      %2474 = vrot.lane.b32.xlu0 %v2471, 32
      %v2475 = vpop.permute.xlu0 %2474
      %v2477 = vmul.f32 %v2470, %v2475
      %2479 = vrot.lane.b32.xlu0 %v2477, 32
      %v2480 = vpop.permute.xlu0 %2479
      %v2482 = vadd.f32 %v2472, %v2480
      %v2483 = vtanh.pop %v2482
      %2485 = vrot.lane.b32.xlu0 %v2483, 32
      %v2486 = vpop.permute.xlu0 %2485
      %v2488 = vmul.f32 %v2470, %v2486
      %v2489 = vld [vmem:[%s7 + $0x180] sm:$0xff]
      %v2490 = vld [vmem:[%s7 + $0x188] sm:$0xff]
      %v2491 = vld [vmem:[%s7 + $0x190] sm:$0xff]
      %v2492 = vld [vmem:[%s7 + $0x198] sm:$0xff]
      %2494 = vrot.lane.b32.xlu0 %v2488, 64
      %v2495 = vpop.permute.xlu0 %2494
      %v2496 = vsel %vm732, %v2495, 0
      %2498 = vmatpush.msra.mxu0 0.0
      %2499 = vmatpush.msra.mxu0 0.0
      %2500 = vmatpush.msra.mxu0 0.0
      %2501 = vmatpush.msra.mxu0 0.0
      %2502 = vmatpush.msra.mxu0 0.0
      %2503 = vmatpush.msra.mxu0 0.0
      %2504 = vmatpush.msra.mxu0 0.0
      %2505 = vmatpush.msra.mxu0 0.0
      %2506 = vmatpush.msra.mxu0 0.0
      %2507 = vmatpush.msra.mxu0 0.0
      %2508 = vmatpush.msra.mxu0 0.0
      %2509 = vmatpush.msra.mxu0 0.0
      %2510 = vmatpush.msra.mxu0 %v2492
      %2511 = vmatpush.msra.mxu0 %v2491
      %2512 = vmatpush.msra.mxu0 %v2490
      %2513 = vmatpush.msra.mxu0 %v2489
      %2514 = vmatmul.f32.gmra.mxu0 %v2496
      %v2515 = vpop.f32.mrf.mxu0
      %v2516 = vadd.f32 0.0, %v2515
      %2517 = vdwg.mxu0
      %v2518 = vadd.f32 %v2430, %v2516
      %v2519 = vadd.f32 %v1369, %v1311
      %2520 = vmatpush.msra.mxu0 0.0
      %2521 = vmatpush.msra.mxu0 0.0
      %2522 = vmatpush.msra.mxu0 0.0
      %2523 = vmatpush.msra.mxu0 0.0
      %2524 = vmatpush.msra.mxu0 0.0
      %2525 = vmatpush.msra.mxu0 0.0
      %2526 = vmatpush.msra.mxu0 0.0
      %2527 = vmatpush.msra.mxu0 0.0
      %2528 = vmatpush.msra.mxu0 0.0
      %2529 = vmatpush.msra.mxu0 0.0
      %2530 = vmatpush.msra.mxu0 0.0
      %2531 = vmatpush.msra.mxu0 0.0
      %2532 = vmatpush.msra.mxu0 %v1373
      %2533 = vmatpush.msra.mxu0 %v1372
      %2534 = vmatpush.msra.mxu0 %v1371
      %2535 = vmatpush.msra.mxu0 %v1370
      %2536 = vmatmul.f32.gmra.mxu0 %v2496
      %v2537 = vpop.f32.mrf.mxu0
      %v2538 = vadd.f32 %v2519, %v2537
      %2539 = vdwg.mxu0
      %v2540 = vxor.u32 %v2538, 2147483648
      %v2541 = vmul.f32 %v2540, 1.442695
      %v2542 = vpow.pop %v2541
      %v2543 = vadd.f32 %v2542, 1.0
      %v2544 = vrcp.pop %v2543
      %v2545 = vmul.f32 %v2543, %v2544
      %v2546 = vsub.f32 1.0, %v2545
      %v2547 = vmul.f32 %v2544, %v2546
      %v2548 = vadd.f32 %v2544, %v2547
      %vm2549 = vweird.f32 %v2543
      %vm2550 = vweird.f32 %v2544
      %vm2551 = vmor %vm2549, %vm2550
      %v2552 = vsel %vm2551, %v2544, %v2548
      %v2553 = vand.u32 2147483647, %v2543
      %vm2554 = vcmp.eq.f32.partialorder %v2553, 8.507059e+37
      %v2555 = vand.u32 %v2543, 2147483648
      %v2556 = vor.u32 1.1754944e-38, %v2555
      %v2557 = vsel %vm2554, %v2556, %v2552
      %v2558 = vmul.f32 1.0, %v2557
      %v2559 = vtanh.pop %v2538
      %v2560 = vmul.f32 %v2558, %v2482
      %2562 = vrot.lane.b32.xlu0 %v2559, 32
      %v2563 = vpop.permute.xlu0 %2562
      %v2565 = vmul.f32 %v2558, %v2563
      %2567 = vrot.lane.b32.xlu0 %v2565, 32
      %v2568 = vpop.permute.xlu0 %2567
      %v2570 = vadd.f32 %v2560, %v2568
      %v2571 = vtanh.pop %v2570
      %2573 = vrot.lane.b32.xlu0 %v2571, 32
      %v2574 = vpop.permute.xlu0 %2573
      %v2576 = vmul.f32 %v2558, %v2574
      %v2577 = vld [vmem:[%s7 + $0x1a0] sm:$0xff]
      %v2578 = vld [vmem:[%s7 + $0x1a8] sm:$0xff]
      %v2579 = vld [vmem:[%s7 + $0x1b0] sm:$0xff]
      %v2580 = vld [vmem:[%s7 + $0x1b8] sm:$0xff]
      %2582 = vrot.lane.b32.xlu0 %v2576, 64
      %v2583 = vpop.permute.xlu0 %2582
      %v2584 = vsel %vm732, %v2583, 0
      %2586 = vmatpush.msra.mxu0 0.0
      %2587 = vmatpush.msra.mxu0 0.0
      %2588 = vmatpush.msra.mxu0 0.0
      %2589 = vmatpush.msra.mxu0 0.0
      %2590 = vmatpush.msra.mxu0 0.0
      %2591 = vmatpush.msra.mxu0 0.0
      %2592 = vmatpush.msra.mxu0 0.0
      %2593 = vmatpush.msra.mxu0 0.0
      %2594 = vmatpush.msra.mxu0 0.0
      %2595 = vmatpush.msra.mxu0 0.0
      %2596 = vmatpush.msra.mxu0 0.0
      %2597 = vmatpush.msra.mxu0 0.0
      %2598 = vmatpush.msra.mxu0 %v2580
      %2599 = vmatpush.msra.mxu0 %v2579
      %2600 = vmatpush.msra.mxu0 %v2578
      %2601 = vmatpush.msra.mxu0 %v2577
      %2602 = vmatmul.f32.gmra.mxu0 %v2584
      %v2603 = vpop.f32.mrf.mxu0
      %v2604 = vadd.f32 0.0, %v2603
      %2605 = vdwg.mxu0
      %v2606 = vadd.f32 %v2518, %v2604
      %v2607 = vld [vmem:[%s8] sm:$0x1]
      %v2609 = vperm.slane %v2607, 0
      %v2611 = vadd.f32 %v2606, %v2609
      %v2612 = vmax.f32 %v2611, 0.0
      %v2613 = vld [vmem:[%s10] sm:$0xff]
      %v2614 = vld [vmem:[%s9] sm:$0xff]
      %v2615 = vld [vmem:[%s11] sm:$0xff]
      %v2616 = vld [vmem:[%s11 + $0x8] sm:$0xff]
      %vm2617 = vcmask 130048
      %v2619 = vsel %vm2617, %v2614, 0
      %2621 = vmatpush.msra.mxu0 0.0
      %2622 = vmatpush.msra.mxu0 0.0
      %2623 = vmatpush.msra.mxu0 0.0
      %2624 = vmatpush.msra.mxu0 0.0
      %2625 = vmatpush.msra.mxu0 0.0
      %2626 = vmatpush.msra.mxu0 0.0
      %2627 = vmatpush.msra.mxu0 0.0
      %2628 = vmatpush.msra.mxu0 0.0
      %2629 = vmatpush.msra.mxu0 0.0
      %2630 = vmatpush.msra.mxu0 0.0
      %2631 = vmatpush.msra.mxu0 0.0
      %2632 = vmatpush.msra.mxu0 0.0
      %2633 = vmatpush.msra.mxu0 0.0
      %2634 = vmatpush.msra.mxu0 0.0
      %2635 = vmatpush.msra.mxu0 %v2616
      %2636 = vmatpush.msra.mxu0 %v2615
      %2637 = vmatmul.f32.gmra.mxu0 %v2619
      %v2638 = vpop.f32.mrf.mxu0
      %v2639 = vadd.f32 0.0, %v2638
      %2640 = vdwg.mxu0
      %v2641 = vld [vmem:[%s12] sm:$0x1]
      %v2643 = vperm.slane %v2641, 0
      %vm2645 = vcmask 64512
      %v2647 = vsel %vm2645, %v2613, 0
      %2649 = vmatpush.msra.mxu0 0.0
      %2650 = vmatpush.msra.mxu0 0.0
      %2651 = vmatpush.msra.mxu0 0.0
      %2652 = vmatpush.msra.mxu0 0.0
      %2653 = vmatpush.msra.mxu0 0.0
      %2654 = vmatpush.msra.mxu0 0.0
      %2655 = vmatpush.msra.mxu0 0.0
      %2656 = vmatpush.msra.mxu0 0.0
      %2657 = vmatpush.msra.mxu0 0.0
      %2658 = vmatpush.msra.mxu0 0.0
      %2659 = vmatpush.msra.mxu0 0.0
      %2660 = vmatpush.msra.mxu0 0.0
      %2661 = vmatpush.msra.mxu0 0.0
      %2662 = vmatpush.msra.mxu0 0.0
      %2663 = vmatpush.msra.mxu0 0.0
      %2664 = vmatpush.msra.mxu0 %v2639
      %2665 = vmatmul.f32.gmra.mxu0 %v2647
      %v2666 = vpop.f32.mrf.mxu0
      %v2667 = vadd.f32 %v2643, %v2666
      %2668 = vdwg.mxu0
      %v2669 = vmax.f32 %v2667, 0.0
      %v2670 = vld [vmem:[%s13] sm:$0xff]
      %v2671 = vld [vmem:[%s13 + $0x8] sm:$0xff]
      %v2672 = vld [vmem:[%s13 + $0x10] sm:$0xff]
      %v2673 = vld [vmem:[%s13 + $0x18] sm:$0xff]
      %v2675 = vsel %vm732, %v2669, 0
      %2677 = vmatpush.msra.mxu0 0.0
      %2678 = vmatpush.msra.mxu0 0.0
      %2679 = vmatpush.msra.mxu0 0.0
      %2680 = vmatpush.msra.mxu0 0.0
      %2681 = vmatpush.msra.mxu0 0.0
      %2682 = vmatpush.msra.mxu0 0.0
      %2683 = vmatpush.msra.mxu0 0.0
      %2684 = vmatpush.msra.mxu0 0.0
      %2685 = vmatpush.msra.mxu0 0.0
      %2686 = vmatpush.msra.mxu0 0.0
      %2687 = vmatpush.msra.mxu0 0.0
      %2688 = vmatpush.msra.mxu0 0.0
      %2689 = vmatpush.msra.mxu0 %v2673
      %2690 = vmatpush.msra.mxu0 %v2672
      %2691 = vmatpush.msra.mxu0 %v2671
      %2692 = vmatpush.msra.mxu0 %v2670
      %2693 = vmatmul.f32.gmra.mxu0 %v2675
      %v2694 = vpop.f32.mrf.mxu0
      %v2695 = vadd.f32 0.0, %v2694
      %2696 = vdwg.mxu0
      %v2697 = vld [vmem:[%s14] sm:$0x1]
      %v2699 = vperm.slane %v2697, 0
      %2701 = vmatpush.msra.mxu0 0.0
      %2702 = vmatpush.msra.mxu0 0.0
      %2703 = vmatpush.msra.mxu0 0.0
      %2704 = vmatpush.msra.mxu0 0.0
      %2705 = vmatpush.msra.mxu0 0.0
      %2706 = vmatpush.msra.mxu0 0.0
      %2707 = vmatpush.msra.mxu0 0.0
      %2708 = vmatpush.msra.mxu0 0.0
      %2709 = vmatpush.msra.mxu0 0.0
      %2710 = vmatpush.msra.mxu0 0.0
      %2711 = vmatpush.msra.mxu0 0.0
      %2712 = vmatpush.msra.mxu0 0.0
      %2713 = vmatpush.msra.mxu0 0.0
      %2714 = vmatpush.msra.mxu0 0.0
      %2715 = vmatpush.msra.mxu0 0.0
      %2716 = vmatpush.msra.mxu0 %v2695
      %2717 = vmatmul.f32.gmra.mxu0 %v2647
      %v2718 = vpop.f32.mrf.mxu0
      %v2719 = vadd.f32 %v2699, %v2718
      %2720 = vdwg.mxu0
      %v2721 = vmax.f32 %v2719, 0.0
      %v2722 = vlaneseq
      %v2723 = vand.u32 %v2722, 127
      %s2724 = smul.u32 %s43, 4
      %s2725 = sld [smem:[#allocation3 + %s2724]]
      %v2726 = vstv %s2725
      %vm2727 = vcmp.eq.s32.totalorder %v2723, %v2726
      %v2728 = vsel %vm2727, 1, 0
      %v2729 = vcvt.s32.f32 %v2728
      %s2730 = sadd.s32 %s2724, 1
      %s2731 = sld [smem:[#allocation3 + %s2730]]
      %v2732 = vstv %s2731
      %vm2733 = vcmp.eq.s32.totalorder %v2723, %v2732
      %v2734 = vsel %vm2733, 1, 0
      %v2735 = vcvt.s32.f32 %v2734
      %s2736 = sadd.s32 %s2724, 2
      %s2737 = sld [smem:[#allocation3 + %s2736]]
      %v2738 = vstv %s2737
      %vm2739 = vcmp.eq.s32.totalorder %v2723, %v2738
      %v2740 = vsel %vm2739, 1, 0
      %v2741 = vcvt.s32.f32 %v2740
      %s2742 = sadd.s32 %s2724, 3
      %s2743 = sld [smem:[#allocation3 + %s2742]]
      %v2744 = vstv %s2743
      %vm2745 = vcmp.eq.s32.totalorder %v2723, %v2744
      %v2746 = vsel %vm2745, 1, 0
      %v2747 = vcvt.s32.f32 %v2746
      %vm2748 = vcmask 1040384
      %v2749 = vsel %vm2748, %v2729, %v2735
      %vm2750 = vcmask 1041408
      %v2751 = vsel %vm2750, %v2749, %v2741
      %vm2752 = vcmask 1042432
      %v2753 = vsel %vm2752, %v2751, %v2747
      %v2755 = vsel %vm2645, %v2753, 0
      %2757 = vmatpush.msra.mxu0 0.0
      %2758 = vmatpush.msra.mxu0 0.0
      %2759 = vmatpush.msra.mxu0 0.0
      %2760 = vmatpush.msra.mxu0 0.0
      %2761 = vmatpush.msra.mxu0 0.0
      %2762 = vmatpush.msra.mxu0 0.0
      %2763 = vmatpush.msra.mxu0 0.0
      %2764 = vmatpush.msra.mxu0 0.0
      %2765 = vmatpush.msra.mxu0 0.0
      %2766 = vmatpush.msra.mxu0 0.0
      %2767 = vmatpush.msra.mxu0 0.0
      %2768 = vmatpush.msra.mxu0 0.0
      %2769 = vmatpush.msra.mxu0 0.0
      %2770 = vmatpush.msra.mxu0 0.0
      %2771 = vmatpush.msra.mxu0 0.0
      %2772 = vmatpush.msra.mxu0 %v2721
      %2773 = vmatmul.f32.gmra.mxu0 %v2755
      %v2774 = vpop.f32.mrf.mxu0
      %v2775 = vadd.f32 0.0, %v2774
      %2776 = vdwg.mxu0
      %v2777 = vld [vmem:[%s16] sm:$0xff]
      %v2778 = vld [vmem:[%s16 + $0x8] sm:$0xff]
      %v2779 = vld [vmem:[%s16 + $0x10] sm:$0xff]
      %v2780 = vld [vmem:[%s16 + $0x18] sm:$0xff]
      %v2782 = vsel %vm732, %v2775, 0
      %2784 = vmatpush.msra.mxu0 0.0
      %2785 = vmatpush.msra.mxu0 0.0
      %2786 = vmatpush.msra.mxu0 0.0
      %2787 = vmatpush.msra.mxu0 0.0
      %2788 = vmatpush.msra.mxu0 0.0
      %2789 = vmatpush.msra.mxu0 0.0
      %2790 = vmatpush.msra.mxu0 0.0
      %2791 = vmatpush.msra.mxu0 0.0
      %2792 = vmatpush.msra.mxu0 0.0
      %2793 = vmatpush.msra.mxu0 0.0
      %2794 = vmatpush.msra.mxu0 0.0
      %2795 = vmatpush.msra.mxu0 0.0
      %2796 = vmatpush.msra.mxu0 %v2780
      %2797 = vmatpush.msra.mxu0 %v2779
      %2798 = vmatpush.msra.mxu0 %v2778
      %2799 = vmatpush.msra.mxu0 %v2777
      %2800 = vmatmul.f32.gmra.mxu0 %v2782
      %v2801 = vpop.f32.mrf.mxu0
      %v2802 = vadd.f32 0.0, %v2801
      %2803 = vdwg.mxu0
      %v2804 = vld [vmem:[%s15] sm:$0xff]
      %v2805 = vld [vmem:[%s15 + $0x8] sm:$0xff]
      %v2806 = vld [vmem:[%s15 + $0x10] sm:$0xff]
      %v2807 = vld [vmem:[%s15 + $0x18] sm:$0xff]
      %v2808 = vld [vmem:[%s15 + $0x20] sm:$0xff]
      %v2809 = vld [vmem:[%s15 + $0x28] sm:$0xff]
      %v2810 = vld [vmem:[%s15 + $0x30] sm:$0xff]
      %v2811 = vld [vmem:[%s15 + $0x38] sm:$0xff]
      %v2812 = vld [vmem:[%s17] sm:$0x1]
      %v2814 = vperm.slane %v2812, 0
      %vm2816 = vcmask 523264
      %v2818 = vsel %vm2816, %v2612, 0
      %2820 = vmatpush.msra.mxu0 0.0
      %2821 = vmatpush.msra.mxu0 0.0
      %2822 = vmatpush.msra.mxu0 0.0
      %2823 = vmatpush.msra.mxu0 0.0
      %2824 = vmatpush.msra.mxu0 0.0
      %2825 = vmatpush.msra.mxu0 0.0
      %2826 = vmatpush.msra.mxu0 0.0
      %2827 = vmatpush.msra.mxu0 0.0
      %2828 = vmatpush.msra.mxu0 %v2811
      %2829 = vmatpush.msra.mxu0 %v2810
      %2830 = vmatpush.msra.mxu0 %v2809
      %2831 = vmatpush.msra.mxu0 %v2808
      %2832 = vmatpush.msra.mxu0 %v2807
      %2833 = vmatpush.msra.mxu0 %v2806
      %2834 = vmatpush.msra.mxu0 %v2805
      %2835 = vmatpush.msra.mxu0 %v2804
      %2836 = vmatmul.f32.gmra.mxu0 %v2818
      %v2837 = vpop.f32.mrf.mxu0
      %v2838 = vadd.f32 %v2814, %v2837
      %2839 = vdwg.mxu0
      %v2840 = vadd.f32 %v2838, %v2802
      %v2841 = vmax.f32 %v2840, 0.0
      %v2843 = vrot.slane %v2802, 4
      %v2845 = vadd.f32 %v2838, %v2843
      %v2846 = vmax.f32 %v2845, 0.0
      %v2848 = vrot.slane %v2846, 4
      %v2850 = vsub.f32 %v2841, %v2848
      %v2851 = vld [vmem:[%s18] sm:$0xff]
      %v2852 = vld [vmem:[%s18 + $0x8] sm:$0xff]
      %v2853 = vld [vmem:[%s18 + $0x10] sm:$0xff]
      %v2854 = vld [vmem:[%s18 + $0x18] sm:$0xff]
      %v2855 = vld [vmem:[%s19] sm:$0x1]
      %v2857 = vperm.slane %v2855, 0
      %v2860 = vsel %vm732, %v2850, 0
      %2862 = vmatpush.msra.mxu0 0.0
      %2863 = vmatpush.msra.mxu0 0.0
      %2864 = vmatpush.msra.mxu0 0.0
      %2865 = vmatpush.msra.mxu0 0.0
      %2866 = vmatpush.msra.mxu0 0.0
      %2867 = vmatpush.msra.mxu0 0.0
      %2868 = vmatpush.msra.mxu0 0.0
      %2869 = vmatpush.msra.mxu0 0.0
      %2870 = vmatpush.msra.mxu0 0.0
      %2871 = vmatpush.msra.mxu0 0.0
      %2872 = vmatpush.msra.mxu0 0.0
      %2873 = vmatpush.msra.mxu0 0.0
      %2874 = vmatpush.msra.mxu0 %v2854
      %2875 = vmatpush.msra.mxu0 %v2853
      %2876 = vmatpush.msra.mxu0 %v2852
      %2877 = vmatpush.msra.mxu0 %v2851
      %2878 = vmatmul.f32.gmra.mxu0 %v2860
      %v2879 = vpop.f32.mrf.mxu0
      %v2880 = vadd.f32 %v2857, %v2879
      %2881 = vdwg.mxu0
      %v2882 = vmax.f32 %v2880, 0.0
      %v2883 = vld [vmem:[%s20] sm:$0xff]
      %v2884 = vld [vmem:[%s20 + $0x8] sm:$0xff]
      %v2885 = vld [vmem:[%s20 + $0x10] sm:$0xff]
      %v2886 = vld [vmem:[%s20 + $0x18] sm:$0xff]
      %v2887 = vld [vmem:[#allocation4] sm:$0x1]
      %v2889 = vperm.slane %v2887, 0
      %v2892 = vsel %vm732, %v2882, 0
      %2894 = vmatpush.msra.mxu0 0.0
      %2895 = vmatpush.msra.mxu0 0.0
      %2896 = vmatpush.msra.mxu0 0.0
      %2897 = vmatpush.msra.mxu0 0.0
      %2898 = vmatpush.msra.mxu0 0.0
      %2899 = vmatpush.msra.mxu0 0.0
      %2900 = vmatpush.msra.mxu0 0.0
      %2901 = vmatpush.msra.mxu0 0.0
      %2902 = vmatpush.msra.mxu0 0.0
      %2903 = vmatpush.msra.mxu0 0.0
      %2904 = vmatpush.msra.mxu0 0.0
      %2905 = vmatpush.msra.mxu0 0.0
      %2906 = vmatpush.msra.mxu0 %v2886
      %2907 = vmatpush.msra.mxu0 %v2885
      %2908 = vmatpush.msra.mxu0 %v2884
      %2909 = vmatpush.msra.mxu0 %v2883
      %2910 = vmatmul.f32.gmra.mxu0 %v2892
      %v2911 = vpop.f32.mrf.mxu0
      %v2912 = vadd.f32 %v2889, %v2911
      %2913 = vdwg.mxu0
      %v2914 = vxor.u32 %v2912, 2147483648
      %v2915 = vmul.f32 %v2914, 1.442695
      %v2916 = vpow.pop %v2915
      %v2917 = vadd.f32 %v2916, 1.0
      %v2918 = vrcp.pop %v2917
      %v2919 = vmul.f32 %v2917, %v2918
      %v2920 = vsub.f32 1.0, %v2919
      %v2921 = vmul.f32 %v2918, %v2920
      %v2922 = vadd.f32 %v2918, %v2921
      %vm2923 = vweird.f32 %v2917
      %vm2924 = vweird.f32 %v2918
      %vm2925 = vmor %vm2923, %vm2924
      %v2926 = vsel %vm2925, %v2918, %v2922
      %v2927 = vand.u32 2147483647, %v2917
      %vm2928 = vcmp.eq.f32.partialorder %v2927, 8.507059e+37
      %v2929 = vand.u32 %v2917, 2147483648
      %v2930 = vor.u32 1.1754944e-38, %v2929
      %v2931 = vsel %vm2928, %v2930, %v2926
      %v2932 = vmul.f32 1.0, %v2931
      %vm2933 = vcmask 3072
      %2934 = vst.msk [vmem:[%s667] sm:$0xf] %vm2933, %v2932
      %p2935 = scmp.lt.s32.totalorder %s43, 1
      %s2936 = scalar_select %p2935, %s43, 1
      %s2937 = smul.addr %s2936, 4
      %s2938 = scalar_lea.vmem %s22, %s2937
      // Predicated region
      $region105: #{pathogenic_prediction_model.1} parent=103 // pred_check
        %p2939 = pneg %p507
      $region106: #{pathogenic_prediction_model.1} parent=103 // pred_check_branch
        %2941 = sbr.rel (%p2939) target = $region108
      $region107: #{pathogenic_prediction_model.1} parent=103 // pred_region
        _
      $region108: #{pathogenic_prediction_model.1} parent=103 // pred_fallthru
        _
    $region104: #{pathogenic_prediction_model.1} parent=5 // pred_fallthru
      _
    %p2942 = scmp.le.s32.totalorder 2, %s38
    // Predicated region
    $region109: #{pathogenic_prediction_model.1} parent=5 // pred_check
      %p2943 = pneg %p2942
    $region110: #{pathogenic_prediction_model.1} parent=5 // pred_check_branch
      %2945 = sbr.rel (%p2943) target = $region112
    $region111: #{pathogenic_prediction_model.1} parent=5 // pred_region
      %s2946 = ssub.s32 %s38, 2
      // Predicated region
      $region113: #{pathogenic_prediction_model.1} parent=111 // pred_check
        %p2947 = pneg %p513
      $region114: #{pathogenic_prediction_model.1} parent=111 // pred_check_branch
        %2949 = sbr.rel (%p2947) target = $region116
      $region115: #{pathogenic_prediction_model.1} parent=111 // pred_region
        %p2950 = scmp.lt.s32.totalorder %s44, 1
        %s2951 = scalar_select %p2950, %s44, 1
        %s2952 = smul.addr %s2951, 4
        %s2953 = scalar_lea.vmem %s22, %s2952
      $region116: #{pathogenic_prediction_model.1} parent=111 // pred_fallthru
        _
    $region112: #{pathogenic_prediction_model.1} parent=5 // pred_fallthru
      _
  $region6: #{pathogenic_prediction_model.1} parent=0 // loop_footer
    %s42 = sadd.s32 1, %s38
  $region7: #{pathogenic_prediction_model.1} parent=0 // loop_footer_branch
    %37 = sbr.rel target = $region3
  $region8: #{pathogenic_prediction_model.1} parent=0 // loop_exit
    _

</llo_original>
